<compile_context>
chip_gen: v7x
topology: tpu7x:2x2x1
jax: 0.10.0
libtpu: 0.0.40
codegen_flags: <defaults>
</compile_context>

<pallas_src>
import jax
import jax.numpy as jnp
import numpy as np
from jax.experimental import pallas as pl
from jax.experimental.pallas import tpu as pltpu


def h_attention_kernel(x_ref, w_ref, b_ref, gamma_ref, o_ref):
    tb, H, C = x_ref.shape
    CT = w_ref.shape[1]                 # 2*C8 + C
    C8 = (CT - C) // 2

    x = x_ref[...].astype(jnp.float32)                              # (TB, H, C)

    # Fused QKV projection: one MXU matmul for all TB*H positions.
    x2 = x.reshape(tb * H, C)
    qkv = jnp.dot(x2, w_ref[...],
                  preferred_element_type=jnp.float32) + b_ref[...]  # (TB*H, CT)
    qkv = qkv.reshape(tb, H, CT)
    q = qkv[:, :, 0:C8]                                             # (TB, H, C8)
    k = qkv[:, :, C8:2 * C8]                                        # (TB, H, C8)
    v = qkv[:, :, 2 * C8:]                                          # (TB, H, C)

    # energy[b, i, j] = sum_c q[b, i, c] * k[b, j, c].
    # Contraction depth C8 = C//8 is tiny (2 here): keep it on the VPU as
    # broadcast outer products instead of a K=2 MXU matmul.
    energy = q[:, :, 0:1] * k[:, :, 0][:, None, :]                  # (TB, H, H)
    for c in range(1, C8):
        energy = energy + q[:, :, c:c + 1] * k[:, :, c][:, None, :]

    # Softmax over the last (key-height) axis.
    energy = energy - jnp.max(energy, axis=-1, keepdims=True)
    p = jnp.exp(energy)
    # NOTE: approx=True would use the (otherwise idle) EUP vrcp; kept exact so
    # the strict f32 1e-5 parity check in __main__ stays meaningful.
    p = p * pl.reciprocal(jnp.sum(p, axis=-1, keepdims=True), approx=False)

    # out[b, i, c] = sum_j p[b, i, j] * v[b, j, c]
    out = jnp.einsum('bij,bjc->bic', p, v,
                     preferred_element_type=jnp.float32)            # (TB, H, C)

    gamma = gamma_ref[0, 0]
    o_ref[...] = (gamma * out + x).astype(o_ref.dtype)


def _pick_block_cols(n_cols, h, c, max_block_bytes=1 << 20):
    """Largest divisor of n_cols that fits the VMEM budget and keeps >=2 steps."""
    col_bytes = h * max(c, 128) * 4          # lane dim pads to 128 in VMEM
    target = max(1, max_block_bytes // col_bytes)
    best = 1
    for d in range(1, n_cols + 1):
        if d > target:
            break
        if n_cols % d == 0 and n_cols // d >= 2:
            best = d
    return best


def h_attention(x, wq, bq, wk, bk, wv, bv, gamma):
    """x: (B, C, H, W) float32. Conv weights pre-transposed to (C_in, C_out)."""
    B, C, H, W = x.shape
    C8 = wq.shape[1]
    CT = 2 * C8 + C
    n_cols = B * W

    # Fuse the three 1x1-conv weight/bias sets once (tiny, outside the kernel).
    w_fused = jnp.concatenate([wq, wk, wv], axis=1)                 # (C, CT)
    b_fused = jnp.concatenate([bq, bk, bv], axis=1)                 # (1, CT)

    # NCHW -> (B, W, H, C) -> (B*W, H, C): each grid step handles TB columns.
    x_cols = jnp.transpose(x, (0, 3, 2, 1)).reshape(n_cols, H, C)

    tb = _pick_block_cols(n_cols, H, C)
    grid = (n_cols // tb,)

    out_cols = pl.pallas_call(
        h_attention_kernel,
        out_shape=jax.ShapeDtypeStruct((n_cols, H, C), x.dtype),
        grid_spec=pltpu.PrefetchScalarGridSpec(
            num_scalar_prefetch=0,
            grid=grid,
            in_specs=[
                pl.BlockSpec((tb, H, C), lambda i: (i, 0, 0)),      # x columns
                pl.BlockSpec((C, CT), lambda i: (0, 0)),            # fused W
                pl.BlockSpec((1, CT), lambda i: (0, 0)),            # fused bias
                pl.BlockSpec(memory_space=pltpu.SMEM),              # gamma
            ],
            out_specs=pl.BlockSpec((tb, H, C), lambda i: (i, 0, 0)),
        ),
        compiler_params=pltpu.CompilerParams(
            dimension_semantics=("parallel",)),
    )(x_cols, w_fused, b_fused, gamma)

    # (B*W, H, C) -> (B, W, H, C) -> (B, C, H, W)
    return jnp.transpose(out_cols.reshape(B, W, H, C), (0, 3, 2, 1))


def h_attention_ref(x, wq, bq, wk, bk, wv, bv, gamma):
    """Pure-JAX reference mirroring the PyTorch forward."""
    B, C, H, W = x.shape
    xc = jnp.transpose(x, (0, 3, 2, 1)).reshape(B * W, H, C)        # (B*W, H, C)
    q = xc @ wq + bq                                                # (B*W, H, C8)
    k = xc @ wk + bk
    v = xc @ wv + bv                                                # (B*W, H, C)
    energy = jnp.einsum('bic,bjc->bij', q, k)
    p = jax.nn.softmax(energy, axis=-1)
    out = jnp.einsum('bij,bjc->bic', p, v)
    out = gamma[0, 0] * out + xc
    return jnp.transpose(out.reshape(B, W, H, C), (0, 3, 2, 1))


if __name__ == "__main__":
    key = jax.random.PRNGKey(0)
    B, C, H, W = 2, 16, 16, 16          # in_dim = 16, so query/key channels = 2
    C8 = C // 8

    k_x, k_wq, k_bq, k_wk, k_bk, k_wv, k_bv = jax.random.split(key, 7)
    x = jax.random.normal(k_x, (B, C, H, W), dtype=jnp.float32)

    # Conv2d(1x1) weights are (C_out, C_in, 1, 1) in torch; stored here
    # pre-transposed as (C_in, C_out) so the kernel does x @ W.
    wq = 0.1 * jax.random.normal(k_wq, (C, C8), dtype=jnp.float32)
    bq = 0.1 * jax.random.normal(k_bq, (1, C8), dtype=jnp.float32)
    wk = 0.1 * jax.random.normal(k_wk, (C, C8), dtype=jnp.float32)
    bk = 0.1 * jax.random.normal(k_bk, (1, C8), dtype=jnp.float32)
    wv = 0.1 * jax.random.normal(k_wv, (C, C), dtype=jnp.float32)
    bv = 0.1 * jax.random.normal(k_bv, (1, C), dtype=jnp.float32)
    # gamma is nn.Parameter(torch.zeros(1)); use a nonzero deterministic value
    # so the attention path is actually exercised in the output.
    gamma = jnp.full((1, 1), 0.5, dtype=jnp.float32)

    out = h_attention(x, wq, bq, wk, bk, wv, bv, gamma)
    out = jax.block_until_ready(out)

    ref = h_attention_ref(x, wq, bq, wk, bk, wv, bv, gamma)
    np.testing.assert_allclose(np.asarray(out), np.asarray(ref), rtol=1e-5, atol=1e-5)
    print("KERNEL_OK")
</pallas_src>

<mosaic_0001>
module attributes {stable_mosaic.version = 11 : i64} {
  func.func @h_attention_kernel(%arg0: i32, %arg1: memref<16x16x16xf32, #tpu.memory_space<vmem>>, %arg2: memref<16x20xf32, #tpu.memory_space<vmem>>, %arg3: memref<1x20xf32, #tpu.memory_space<vmem>>, %arg4: memref<1x1xf32, #tpu.memory_space<smem>>, %arg5: memref<16x16x16xf32, #tpu.memory_space<vmem>>) attributes {dimension_semantics = [#tpu.dimension_semantics<parallel>], iteration_bounds = array<i64: 2>, scalar_prefetch = 0 : i64, scratch_operands = 0 : i64, tpu.core_type = #tpu.core_type<tc>, window_params = [{transform_indices = @transform_0, window_bounds = array<i64: 16, 16, 16>}, {pipeline_mode = #tpu.pipeline_mode<synchronous>, transform_indices = @transform_1, window_bounds = array<i64: 16, 20>}, {pipeline_mode = #tpu.pipeline_mode<synchronous>, transform_indices = @transform_2, window_bounds = array<i64: 1, 20>}, {transform_indices = @transform_3, window_bounds = array<i64: 1, 1>}, {transform_indices = @transform_4, window_bounds = array<i64: 16, 16, 16>}]} {
    %c0 = arith.constant 0 : index
    %c0_0 = arith.constant 0 : index
    %c0_1 = arith.constant 0 : index
    %0 = vector.load %arg1[%c0, %c0_0, %c0_1] : memref<16x16x16xf32, #tpu.memory_space<vmem>>, vector<16x16x16xf32>
    %1 = vector.shape_cast %0 : vector<16x16x16xf32> to vector<256x16xf32>
    %c0_2 = arith.constant 0 : index
    %c0_3 = arith.constant 0 : index
    %2 = vector.load %arg2[%c0_2, %c0_3] : memref<16x20xf32, #tpu.memory_space<vmem>>, vector<16x20xf32>
    %cst = arith.constant dense<0.000000e+00> : vector<256x20xf32>
    %3 = tpu.matmul %1, %2, %cst {dimension_numbers = #tpu.dot_dimension_numbers<[1], [0], [0], [1], [0, 0, 1, 1], [], []>} : vector<256x16xf32>, vector<16x20xf32>, vector<256x20xf32> -> vector<256x20xf32>
    %c0_4 = arith.constant 0 : index
    %c0_5 = arith.constant 0 : index
    %4 = vector.load %arg3[%c0_4, %c0_5] : memref<1x20xf32, #tpu.memory_space<vmem>>, vector<1x20xf32>
    %5 = vector.broadcast %4 : vector<1x20xf32> to vector<256x20xf32>
    %6 = arith.addf %3, %5 : vector<256x20xf32>
    %7 = vector.shape_cast %6 : vector<256x20xf32> to vector<16x16x20xf32>
    %8 = vector.extract_strided_slice %7 {offsets = [0, 0, 0], sizes = [16, 16, 2], strides = [1, 1, 1]} : vector<16x16x20xf32> to vector<16x16x2xf32>
    %9 = vector.extract_strided_slice %7 {offsets = [0, 0, 2], sizes = [16, 16, 2], strides = [1, 1, 1]} : vector<16x16x20xf32> to vector<16x16x2xf32>
    %10 = vector.extract_strided_slice %7 {offsets = [0, 0, 4], sizes = [16, 16, 16], strides = [1, 1, 1]} : vector<16x16x20xf32> to vector<16x16x16xf32>
    %11 = vector.extract_strided_slice %8 {offsets = [0, 0, 0], sizes = [16, 16, 1], strides = [1, 1, 1]} : vector<16x16x2xf32> to vector<16x16x1xf32>
    %12 = vector.extract_strided_slice %9 {offsets = [0, 0, 0], sizes = [16, 16, 1], strides = [1, 1, 1]} : vector<16x16x2xf32> to vector<16x16x1xf32>
    %13 = vector.shape_cast %12 : vector<16x16x1xf32> to vector<16x16xf32>
    %14 = vector.shape_cast %13 : vector<16x16xf32> to vector<16x1x16xf32>
    %15 = vector.broadcast %11 : vector<16x16x1xf32> to vector<16x16x16xf32>
    %16 = vector.broadcast %14 : vector<16x1x16xf32> to vector<16x16x16xf32>
    %17 = arith.mulf %15, %16 : vector<16x16x16xf32>
    %18 = vector.extract_strided_slice %8 {offsets = [0, 0, 1], sizes = [16, 16, 1], strides = [1, 1, 1]} : vector<16x16x2xf32> to vector<16x16x1xf32>
    %19 = vector.extract_strided_slice %9 {offsets = [0, 0, 1], sizes = [16, 16, 1], strides = [1, 1, 1]} : vector<16x16x2xf32> to vector<16x16x1xf32>
    %20 = vector.shape_cast %19 : vector<16x16x1xf32> to vector<16x16xf32>
    %21 = vector.shape_cast %20 : vector<16x16xf32> to vector<16x1x16xf32>
    %22 = vector.broadcast %18 : vector<16x16x1xf32> to vector<16x16x16xf32>
    %23 = vector.broadcast %21 : vector<16x1x16xf32> to vector<16x16x16xf32>
    %24 = arith.mulf %22, %23 : vector<16x16x16xf32>
    %25 = arith.addf %17, %24 : vector<16x16x16xf32>
    %cst_6 = arith.constant dense<0xFF800000> : vector<16x16xf32>
    %26 = vector.multi_reduction <maximumf>, %25, %cst_6 [2] : vector<16x16x16xf32> to vector<16x16xf32>
    %27 = vector.shape_cast %26 : vector<16x16xf32> to vector<16x16x1xf32>
    %28 = vector.broadcast %27 : vector<16x16x1xf32> to vector<16x16x16xf32>
    %29 = arith.subf %25, %28 : vector<16x16x16xf32>
    %30 = math.exp %29 : vector<16x16x16xf32>
    %cst_7 = arith.constant dense<0.000000e+00> : vector<16x16xf32>
    %31 = vector.multi_reduction <add>, %30, %cst_7 [2] : vector<16x16x16xf32> to vector<16x16xf32>
    %32 = vector.shape_cast %31 : vector<16x16xf32> to vector<16x16x1xf32>
    %33 = tpu.reciprocal %32 : vector<16x16x1xf32> -> vector<16x16x1xf32>
    %34 = vector.broadcast %33 : vector<16x16x1xf32> to vector<16x16x16xf32>
    %35 = arith.mulf %30, %34 : vector<16x16x16xf32>
    "tpu.trace_start"() <{level = 10 : i32, message = "bij,bjc->bic"}> : () -> ()
    %cst_8 = arith.constant dense<0.000000e+00> : vector<16x16x16xf32>
    %36 = tpu.matmul %35, %10, %cst_8 {dimension_numbers = #tpu.dot_dimension_numbers<[2], [1], [1], [2], [0, 0, 0, 1, 1, 2], [0], [0]>} : vector<16x16x16xf32>, vector<16x16x16xf32>, vector<16x16x16xf32> -> vector<16x16x16xf32>
    "tpu.trace_stop"() : () -> ()
    %c0_9 = arith.constant 0 : index
    %c0_10 = arith.constant 0 : index
    %37 = memref.load %arg4[%c0_9, %c0_10] : memref<1x1xf32, #tpu.memory_space<smem>>
    %38 = vector.broadcast %37 : f32 to vector<16x16x16xf32>
    %39 = arith.mulf %38, %36 : vector<16x16x16xf32>
    %40 = arith.addf %39, %0 : vector<16x16x16xf32>
    %c0_11 = arith.constant 0 : index
    %c0_12 = arith.constant 0 : index
    %c0_13 = arith.constant 0 : index
    %41 = vector.load %arg5[%c0_11, %c0_12, %c0_13] : memref<16x16x16xf32, #tpu.memory_space<vmem>>, vector<16x16x16xf32>
    tpu.vector_store %arg5[%c0_11, %c0_12, %c0_13], %40 {strides = array<i32>} : memref<16x16x16xf32, #tpu.memory_space<vmem>>, vector<16x16x16xf32>,
    return
  }
  func.func @transform_0(%arg0: i32) -> (i32, i32, i32) {
    %c0_i32 = arith.constant 0 : i32
    %c0_i32_0 = arith.constant 0 : i32
    %c0_i32_1 = arith.constant 0 : i32
    return %arg0, %c0_i32, %c0_i32_0 : i32, i32, i32
  }
  func.func @transform_1(%arg0: i32) -> (i32, i32) {
    %c0_i32 = arith.constant 0 : i32
    %c0_i32_0 = arith.constant 0 : i32
    %c0_i32_1 = arith.constant 0 : i32
    return %c0_i32, %c0_i32_0 : i32, i32
  }
  func.func @transform_2(%arg0: i32) -> (i32, i32) {
    %c0_i32 = arith.constant 0 : i32
    %c0_i32_0 = arith.constant 0 : i32
    %c0_i32_1 = arith.constant 0 : i32
    return %c0_i32, %c0_i32_0 : i32, i32
  }
  func.func @transform_3(%arg0: i32) -> (i32, i32) {
    %c0_i32 = arith.constant 0 : i32
    %c0_i32_0 = arith.constant 0 : i32
    %c0_i32_1 = arith.constant 0 : i32
    return %c0_i32, %c0_i32_0 : i32, i32
  }
  func.func @transform_4(%arg0: i32) -> (i32, i32, i32) {
    %c0_i32 = arith.constant 0 : i32
    %c0_i32_0 = arith.constant 0 : i32
    %c0_i32_1 = arith.constant 0 : i32
    return %arg0, %c0_i32, %c0_i32_0 : i32, i32, i32
  }
}

</mosaic_0001>

<llo_original>
// kernel: tpu_custom_call.1
$region0: #{tpu_custom_call.1}
  #allocation0 [shape = 'u32[]', space=smem, size = 0x4, offset = 0x4, fixed_abs, tag = 'smem constant byte address 0x4 - core index']
  #allocation1 [shape = 'u32[144,128]{1,0:T(1,128)}', space=vmem, size = 0x12000, scoped, tag = 'internal scratch']
  #allocation2 [shape = 'f32[1,1]{1,0:T(1,128)S(6)}', space=smem, size = 0x200, scoped, tag = 'scoped memory for tpu_custom_call.1']
  %s0 = inlined_call_operand.vmem [shape: f32[32,16,16], index: 0, kind: input, shape index: {}]
  %s1 = inlined_call_operand.vmem [shape: f32[16,20], index: 1, kind: input, shape index: {}]
  %s2 = inlined_call_operand.vmem [shape: f32[1,20], index: 2, kind: input, shape index: {}]
  %s3 = inlined_call_operand.<no memory space> [shape: f32[1,1], index: 3, kind: input, shape index: {}]
  %s4 = inlined_call_operand.vmem [shape: f32[32,16,16], index: 4, kind: output, shape index: {}]
  %s5 = sld [smem:[#allocation0]]
  $region49: #{tpu_custom_call.1} parent=0
    _
  %s7 = ssub.s32 1, %s5
  %s8 = scalar_select 0, %s7, %s5
  %9 = sst [smem:[#allocation2]] %s3
  loop: start=0, step=1, limit=4
  $region2: #{tpu_custom_call.1} parent=0 // loop_pre_header
    _
  $region3: #{tpu_custom_call.1} parent=0 // loop_header
    %s11 = sphi 0, %s15
    %p12 = scmp.ge.s32.totalorder %s11, 4
    %s21 = sphi 0, %s23
    %s24 = sphi 0, %s21
    %s25 = sphi 0, %s24
    %s41 = sphi 0, %s25
    %s45 = sphi 0, %s45
    %s47 = sphi 0, %s45
    %s48 = sphi 0, %s47
    %s62 = sphi 0, %s48
    %s66 = sphi 0, %s66
    %s68 = sphi 0, %s66
    %s69 = sphi 0, %s68
    %s83 = sphi 0, %s69
    %s87 = sphi 0, %s87
    %s89 = sphi 0, %s87
    %s90 = sphi 0, %s89
    %s104 = sphi 0, %s90
    %s110 = sphi 0, %s112
    %s113 = sphi 0, %s110
    %s114 = sphi 0, %s113
    %s130 = sphi 0, %s114
  $region4: #{tpu_custom_call.1} parent=0 // loop_header_branch
    %14 = sbr.rel (%p12) target = $region8
  $region5: #{tpu_custom_call.1} parent=0 // loop_body
    %s16 = ssub.s32 %s11, 1
    %s17 = ssub.s32 %s11, 2
    %s18 = sadd.s32 %s11, 1
    %s19 = ssub.s32 %s11, %s18
    %p20 = scmp.eq.s32.totalorder %s19, 0
    %s22 = sadd.s32 %s21, 1
    %s23 = scalar_select %p20, %s21, %s22
    %p26 = pneg %p20
    %p27 = scmp.eq.s32.totalorder %s11, 1
    %p28 = por %p26, %p27
    %p29 = scmp.ne.s32.totalorder %s21, %s24
    %p30 = scmp.eq.s32.totalorder %s11, 0
    %p31 = por %p29, %p30
    %p32 = scmp.ne.s32.totalorder %s21, %s24
    %p33 = scmp.eq.s32.totalorder %s16, 1
    %p34 = por %p32, %p33
    %p35 = scmp.ne.s32.totalorder %s24, %s25
    %p36 = scmp.eq.s32.totalorder %s16, 0
    %p37 = por %p35, %p36
    %p38 = scmp.ne.s32.totalorder %s24, %s25
    %p39 = scmp.eq.s32.totalorder %s17, 1
    %p40 = por %p38, %p39
    %p42 = scmp.ne.s32.totalorder %s25, %s41
    %p43 = scmp.eq.s32.totalorder %s17, 0
    %p44 = por %p42, %p43
    %s46 = sadd.s32 %s45, 1
    %p49 = scmp.eq.s32.totalorder %s11, 1
    %p50 = scmp.ne.s32.totalorder %s45, %s47
    %p51 = scmp.eq.s32.totalorder %s11, 0
    %p52 = por %p50, %p51
    %p53 = scmp.ne.s32.totalorder %s45, %s47
    %p54 = scmp.eq.s32.totalorder %s16, 1
    %p55 = por %p53, %p54
    %p56 = scmp.ne.s32.totalorder %s47, %s48
    %p57 = scmp.eq.s32.totalorder %s16, 0
    %p58 = por %p56, %p57
    %p59 = scmp.ne.s32.totalorder %s47, %s48
    %p60 = scmp.eq.s32.totalorder %s17, 1
    %p61 = por %p59, %p60
    %p63 = scmp.ne.s32.totalorder %s48, %s62
    %p64 = scmp.eq.s32.totalorder %s17, 0
    %p65 = por %p63, %p64
    %s67 = sadd.s32 %s66, 1
    %p70 = scmp.eq.s32.totalorder %s11, 1
    %p71 = scmp.ne.s32.totalorder %s66, %s68
    %p72 = scmp.eq.s32.totalorder %s11, 0
    %p73 = por %p71, %p72
    %p74 = scmp.ne.s32.totalorder %s66, %s68
    %p75 = scmp.eq.s32.totalorder %s16, 1
    %p76 = por %p74, %p75
    %p77 = scmp.ne.s32.totalorder %s68, %s69
    %p78 = scmp.eq.s32.totalorder %s16, 0
    %p79 = por %p77, %p78
    %p80 = scmp.ne.s32.totalorder %s68, %s69
    %p81 = scmp.eq.s32.totalorder %s17, 1
    %p82 = por %p80, %p81
    %p84 = scmp.ne.s32.totalorder %s69, %s83
    %p85 = scmp.eq.s32.totalorder %s17, 0
    %p86 = por %p84, %p85
    %s88 = sadd.s32 %s87, 1
    %p91 = scmp.eq.s32.totalorder %s11, 1
    %p92 = scmp.ne.s32.totalorder %s87, %s89
    %p93 = scmp.eq.s32.totalorder %s11, 0
    %p94 = por %p92, %p93
    %p95 = scmp.ne.s32.totalorder %s87, %s89
    %p96 = scmp.eq.s32.totalorder %s16, 1
    %p97 = por %p95, %p96
    %p98 = scmp.ne.s32.totalorder %s89, %s90
    %p99 = scmp.eq.s32.totalorder %s16, 0
    %p100 = por %p98, %p99
    %p101 = scmp.ne.s32.totalorder %s89, %s90
    %p102 = scmp.eq.s32.totalorder %s17, 1
    %p103 = por %p101, %p102
    %p105 = scmp.ne.s32.totalorder %s90, %s104
    %p106 = scmp.eq.s32.totalorder %s17, 0
    %p107 = por %p105, %p106
    %s108 = ssub.s32 %s11, %s18
    %p109 = scmp.eq.s32.totalorder %s108, 0
    %s111 = sadd.s32 %s110, 1
    %s112 = scalar_select %p109, %s110, %s111
    %p115 = pneg %p109
    %p116 = scmp.eq.s32.totalorder %s11, 1
    %p117 = por %p115, %p116
    %p118 = scmp.ne.s32.totalorder %s110, %s113
    %p119 = scmp.eq.s32.totalorder %s11, 0
    %p120 = por %p118, %p119
    %p121 = scmp.ne.s32.totalorder %s110, %s113
    %p122 = scmp.eq.s32.totalorder %s16, 1
    %p123 = por %p121, %p122
    %p124 = scmp.ne.s32.totalorder %s113, %s114
    %p125 = scmp.eq.s32.totalorder %s16, 0
    %p126 = por %p124, %p125
    %p127 = scmp.ne.s32.totalorder %s113, %s114
    %p128 = scmp.eq.s32.totalorder %s17, 1
    %p129 = por %p127, %p128
    %p131 = scmp.ne.s32.totalorder %s114, %s130
    %p132 = scmp.eq.s32.totalorder %s17, 0
    %p133 = por %p131, %p132
    %p134 = scmp.le.s32.totalorder 1, %s11
    %p135 = scmp.lt.s32.totalorder %s11, 3
    %p136 = pnand %p134, %p135
    %p137 = pneg %p136
    // Predicated region
    $region9: #{tpu_custom_call.1} parent=5 // pred_check
      _
    $region10: #{tpu_custom_call.1} parent=5 // pred_check_branch
      %139 = sbr.rel (%p136) target = $region12
    $region11: #{tpu_custom_call.1} parent=5 // pred_region
      %s140 = ssub.s32 %s11, 1
      // Predicated region
      $region13: #{tpu_custom_call.1} parent=11 // pred_check
        %p141 = pneg %p58
      $region14: #{tpu_custom_call.1} parent=11 // pred_check_branch
        %143 = sbr.rel (%p141) target = $region16
      $region15: #{tpu_custom_call.1} parent=11 // pred_region
        _
      $region16: #{tpu_custom_call.1} parent=11 // pred_fallthru
        _
      // Predicated region
      $region17: #{tpu_custom_call.1} parent=11 // pred_check
        %p144 = pneg %p79
      $region18: #{tpu_custom_call.1} parent=11 // pred_check_branch
        %146 = sbr.rel (%p144) target = $region20
      $region19: #{tpu_custom_call.1} parent=11 // pred_region
        _
      $region20: #{tpu_custom_call.1} parent=11 // pred_fallthru
        _
      // Predicated region
      $region21: #{tpu_custom_call.1} parent=11 // pred_check
        %p147 = pneg %p100
      $region22: #{tpu_custom_call.1} parent=11 // pred_check_branch
        %149 = sbr.rel (%p147) target = $region24
      $region23: #{tpu_custom_call.1} parent=11 // pred_region
        _
      $region24: #{tpu_custom_call.1} parent=11 // pred_fallthru
        _
    $region12: #{tpu_custom_call.1} parent=5 // pred_fallthru
      _
    %p150 = scmp.lt.s32.totalorder %s11, 2
    // Predicated region
    $region25: #{tpu_custom_call.1} parent=5 // pred_check
      %p151 = pneg %p150
    $region26: #{tpu_custom_call.1} parent=5 // pred_check_branch
      %153 = sbr.rel (%p151) target = $region28
    $region27: #{tpu_custom_call.1} parent=5 // pred_region
      // Predicated region
      $region29: #{tpu_custom_call.1} parent=27 // pred_check
        %p154 = pneg %p31
      $region30: #{tpu_custom_call.1} parent=27 // pred_check_branch
        %156 = sbr.rel (%p154) target = $region32
      $region31: #{tpu_custom_call.1} parent=27 // pred_region
        %s157 = smul.u32 16, %s11
        %p158 = scmp.lt.s32.totalorder %s157, 31
        %s159 = scalar_select %p158, %s157, 31
        %s160 = smul.addr %s159, 2
        %s161 = smul.addr %s160, 8
        %s162 = scalar_lea.vmem %s0, %s161
        %s163 = smul.u32 16, %s11
      $region32: #{tpu_custom_call.1} parent=27 // pred_fallthru
        _
    $region28: #{tpu_custom_call.1} parent=5 // pred_fallthru
      _
    %p164 = scmp.le.s32.totalorder 1, %s11
    %p165 = scmp.lt.s32.totalorder %s11, 3
    %p166 = pnand %p164, %p165
    %p167 = pneg %p166
    // Predicated region
    $region33: #{tpu_custom_call.1} parent=5 // pred_check
      _
    $region34: #{tpu_custom_call.1} parent=5 // pred_check_branch
      %169 = sbr.rel (%p166) target = $region36
    $region35: #{tpu_custom_call.1} parent=5 // pred_region
      %s170 = ssub.s32 %s11, 1
      %s171 = smul.u32 16, %s16
      %p172 = scmp.lt.s32.totalorder %s171, 31
      %s173 = scalar_select %p172, %s171, 31
      %s174 = smul.addr %s173, 2
      %s175 = smul.addr %s174, 8
      %s176 = scalar_lea.vmem %s0, %s175
      %p177 = pneg %p37
      %p178 = pneg %p34
      %p179 = pneg %p58
      %p180 = pneg %p55
      %p181 = pneg %p79
      %p182 = pneg %p76
      %p183 = pneg %p100
      %p184 = pneg %p97
      %p185 = pneg %p126
      %p186 = pneg %p123
      %s187 = smul.u32 16, %s16
      %p188 = scmp.lt.s32.totalorder %s187, 31
      %s189 = scalar_select %p188, %s187, 31
      %s190 = smul.addr %s189, 2
      %s191 = smul.addr %s190, 8
      %s192 = scalar_lea.vmem %s4, %s191
      %s193 = smul.u32 16, %s16
      %p194 = scmp.lt.s32.totalorder %s193, 31
      %s195 = scalar_select %p194, %s193, 31
      %s196 = smul.addr %s195, 2
      %s197 = smul.addr %s196, 8
      %s198 = scalar_lea.vmem %s0, %s197
      %s199 = smul.u32 16, %s16
      %s200 = smul.u32 16, %s16
      %p201 = scmp.lt.s32.totalorder %s200, 31
      %s202 = scalar_select %p201, %s200, 31
      %s203 = smul.addr %s202, 2
      %s204 = smul.addr %s203, 8
      %s205 = scalar_lea.vmem %s4, %s204
      %s206 = smul.u32 16, %s16
      %v207 = vld [vmem:[%s198] sm:$0xff]
      %v208 = vld [vmem:[%s198 + $0x8] sm:$0xff]
      %v209 = vld [vmem:[%s198 + $0x10] sm:$0xff]
      %v210 = vld [vmem:[%s198 + $0x18] sm:$0xff]
      %v211 = vld [vmem:[%s198 + $0x20] sm:$0xff]
      %v212 = vld [vmem:[%s198 + $0x28] sm:$0xff]
      %v213 = vld [vmem:[%s198 + $0x30] sm:$0xff]
      %v214 = vld [vmem:[%s198 + $0x38] sm:$0xff]
      %v215 = vld [vmem:[%s198 + $0x40] sm:$0xff]
      %v216 = vld [vmem:[%s198 + $0x48] sm:$0xff]
      %v217 = vld [vmem:[%s198 + $0x50] sm:$0xff]
      %v218 = vld [vmem:[%s198 + $0x58] sm:$0xff]
      %v219 = vld [vmem:[%s198 + $0x60] sm:$0xff]
      %v220 = vld [vmem:[%s198 + $0x68] sm:$0xff]
      %v221 = vld [vmem:[%s198 + $0x70] sm:$0xff]
      %v222 = vld [vmem:[%s198 + $0x78] sm:$0xff]
      %v223 = vld [vmem:[%s198 + $0x80] sm:$0xff]
      %v224 = vld [vmem:[%s198 + $0x88] sm:$0xff]
      %v225 = vld [vmem:[%s198 + $0x90] sm:$0xff]
      %v226 = vld [vmem:[%s198 + $0x98] sm:$0xff]
      %v227 = vld [vmem:[%s198 + $0xa0] sm:$0xff]
      %v228 = vld [vmem:[%s198 + $0xa8] sm:$0xff]
      %v229 = vld [vmem:[%s198 + $0xb0] sm:$0xff]
      %v230 = vld [vmem:[%s198 + $0xb8] sm:$0xff]
      %v231 = vld [vmem:[%s198 + $0xc0] sm:$0xff]
      %v232 = vld [vmem:[%s198 + $0xc8] sm:$0xff]
      %v233 = vld [vmem:[%s198 + $0xd0] sm:$0xff]
      %v234 = vld [vmem:[%s198 + $0xd8] sm:$0xff]
      %v235 = vld [vmem:[%s198 + $0xe0] sm:$0xff]
      %v236 = vld [vmem:[%s198 + $0xe8] sm:$0xff]
      %v237 = vld [vmem:[%s198 + $0xf0] sm:$0xff]
      %v238 = vld [vmem:[%s198 + $0xf8] sm:$0xff]
      %v239 = vld [vmem:[%s1] sm:$0xff]
      %v240 = vld [vmem:[%s1 + $0x8] sm:$0xff]
      %v241 = vld [vmem:[%s2] sm:$0x1]
      %v243 = vlaneseq
      %v244 = vshrl.u32 %v243, 7
      %v245 = vsub.s32 0, %v244
      %v246 = vrot.slane %v241, %v245
      %vm248 = vcmask 130048
      %v250 = vsel %vm248, %v207, 0
      %v253 = vsel %vm248, %v208, 0
      %v256 = vsel %vm248, %v209, 0
      %v259 = vsel %vm248, %v210, 0
      %v262 = vsel %vm248, %v211, 0
      %v265 = vsel %vm248, %v212, 0
      %v268 = vsel %vm248, %v213, 0
      %v271 = vsel %vm248, %v214, 0
      %v274 = vsel %vm248, %v215, 0
      %v277 = vsel %vm248, %v216, 0
      %v280 = vsel %vm248, %v217, 0
      %v283 = vsel %vm248, %v218, 0
      %v286 = vsel %vm248, %v219, 0
      %v289 = vsel %vm248, %v220, 0
      %v292 = vsel %vm248, %v221, 0
      %v295 = vsel %vm248, %v222, 0
      %v298 = vsel %vm248, %v223, 0
      %v301 = vsel %vm248, %v224, 0
      %v304 = vsel %vm248, %v225, 0
      %v307 = vsel %vm248, %v226, 0
      %v310 = vsel %vm248, %v227, 0
      %v313 = vsel %vm248, %v228, 0
      %v316 = vsel %vm248, %v229, 0
      %v319 = vsel %vm248, %v230, 0
      %v322 = vsel %vm248, %v231, 0
      %v325 = vsel %vm248, %v232, 0
      %v328 = vsel %vm248, %v233, 0
      %v331 = vsel %vm248, %v234, 0
      %v334 = vsel %vm248, %v235, 0
      %v337 = vsel %vm248, %v236, 0
      %v340 = vsel %vm248, %v237, 0
      %v343 = vsel %vm248, %v238, 0
      %345 = vmatprep.subr.mxu0 0.0
      %346 = vmatpush1.msra.mxu0 %v239
      %347 = vmatprep.subr.mxu0 0.0
      %348 = vmatpush1.msra.mxu0 %v240
      %349 = vmatprep.subr.mxu0 0.0
      %350 = vmatpush1.msra.mxu0 0.0
      %351 = vmatprep.subr.mxu0 0.0
      %352 = vmatpush1.msra.mxu0 0.0
      %353 = vmatprep.subr.mxu0 0.0
      %354 = vmatpush1.msra.mxu0 0.0
      %355 = vmatprep.subr.mxu0 0.0
      %356 = vmatpush1.msra.mxu0 0.0
      %357 = vmatprep.subr.mxu0 0.0
      %358 = vmatpush1.msra.mxu0 0.0
      %359 = vmatprep.subr.mxu0 0.0
      %360 = vmatpush1.msra.mxu0 0.0
      %361 = vmatprep.subr.mxu0 0.0
      %362 = vmatpush1.msra.mxu0 0.0
      %363 = vmatprep.subr.mxu0 0.0
      %364 = vmatpush1.msra.mxu0 0.0
      %365 = vmatprep.subr.mxu0 0.0
      %366 = vmatpush1.msra.mxu0 0.0
      %367 = vmatprep.subr.mxu0 0.0
      %368 = vmatpush1.msra.mxu0 0.0
      %369 = vmatprep.subr.mxu0 0.0
      %370 = vmatpush1.msra.mxu0 0.0
      %371 = vmatprep.subr.mxu0 0.0
      %372 = vmatpush1.msra.mxu0 0.0
      %373 = vmatprep.subr.mxu0 0.0
      %374 = vmatpush1.msra.mxu0 0.0
      %375 = vmatprep.subr.mxu0 0.0
      %376 = vmatpush1.msra.mxu0 0.0
      %377 = vmatprep.subr.mxu0 0.0
      %378 = vmatpush1.msra.mxu0 0.0
      %379 = vmatprep.subr.mxu0 0.0
      %380 = vmatpush1.msra.mxu0 0.0
      %381 = vmatprep.subr.mxu0 0.0
      %382 = vmatpush1.msra.mxu0 0.0
      %383 = vmatprep.subr.mxu0 0.0
      %384 = vmatpush1.msra.mxu0 0.0
      %385 = vmatprep.subr.mxu0 0.0
      %386 = vmatpush1.msra.mxu0 0.0
      %387 = vmatprep.subr.mxu0 0.0
      %388 = vmatpush1.msra.mxu0 0.0
      %389 = vmatprep.subr.mxu0 0.0
      %390 = vmatpush1.msra.mxu0 0.0
      %391 = vmatprep.subr.mxu0 0.0
      %392 = vmatpush1.msra.mxu0 0.0
      %393 = vmatprep.subr.mxu0 0.0
      %394 = vmatpush1.msra.mxu0 0.0
      %395 = vmatprep.subr.mxu0 0.0
      %396 = vmatpush1.msra.mxu0 0.0
      %397 = vmatprep.subr.mxu0 0.0
      %398 = vmatpush1.msra.mxu0 0.0
      %399 = vmatprep.subr.mxu0 0.0
      %400 = vmatpush1.msra.mxu0 0.0
      %401 = vmatprep.subr.mxu0 0.0
      %402 = vmatpush1.msra.mxu0 0.0
      %403 = vmatprep.subr.mxu0 0.0
      %404 = vmatpush1.msra.mxu0 0.0
      %405 = vmatprep.subr.mxu0 0.0
      %406 = vmatpush1.msra.mxu0 0.0
      %407 = vmatprep.subr.mxu0 0.0
      %408 = vmatpush1.msra.mxu0 0.0
      %409 = vmatprep.mubr.f32.mxu0 0.0
      %410 = vmatmul.mubr.f32.gmra.mrb[0].mxu0 %v250
      %v411 = vpop.f32.mrb[0].mxu0
      %v412 = vadd.f32 %v246, %v411
      %v413 = vpop.f32.mrb[0].mxu0
      %414 = vmatprep.mubr.f32.mxu0 0.0
      %415 = vmatmul.mubr.f32.gmra.mrb[0].mxu0 %v253
      %v416 = vpop.f32.mrb[0].mxu0
      %v417 = vadd.f32 %v246, %v416
      %v418 = vpop.f32.mrb[0].mxu0
      %419 = vmatprep.mubr.f32.mxu0 0.0
      %420 = vmatmul.mubr.f32.gmra.mrb[0].mxu0 %v256
      %v421 = vpop.f32.mrb[0].mxu0
      %v422 = vadd.f32 %v246, %v421
      %v423 = vpop.f32.mrb[0].mxu0
      %424 = vmatprep.mubr.f32.mxu0 0.0
      %425 = vmatmul.mubr.f32.gmra.mrb[0].mxu0 %v259
      %v426 = vpop.f32.mrb[0].mxu0
      %v427 = vadd.f32 %v246, %v426
      %v428 = vpop.f32.mrb[0].mxu0
      %429 = vmatprep.mubr.f32.mxu0 0.0
      %430 = vmatmul.mubr.f32.gmra.mrb[0].mxu0 %v262
      %v431 = vpop.f32.mrb[0].mxu0
      %v432 = vadd.f32 %v246, %v431
      %v433 = vpop.f32.mrb[0].mxu0
      %434 = vmatprep.mubr.f32.mxu0 0.0
      %435 = vmatmul.mubr.f32.gmra.mrb[0].mxu0 %v265
      %v436 = vpop.f32.mrb[0].mxu0
      %v437 = vadd.f32 %v246, %v436
      %v438 = vpop.f32.mrb[0].mxu0
      %439 = vmatprep.mubr.f32.mxu0 0.0
      %440 = vmatmul.mubr.f32.gmra.mrb[0].mxu0 %v268
      %v441 = vpop.f32.mrb[0].mxu0
      %v442 = vadd.f32 %v246, %v441
      %v443 = vpop.f32.mrb[0].mxu0
      %444 = vmatprep.mubr.f32.mxu0 0.0
      %445 = vmatmul.mubr.f32.gmra.mrb[0].mxu0 %v271
      %v446 = vpop.f32.mrb[0].mxu0
      %v447 = vadd.f32 %v246, %v446
      %v448 = vpop.f32.mrb[0].mxu0
      %449 = vmatprep.mubr.f32.mxu0 0.0
      %450 = vmatmul.mubr.f32.gmra.mrb[0].mxu0 %v274
      %v451 = vpop.f32.mrb[0].mxu0
      %v452 = vadd.f32 %v246, %v451
      %v453 = vpop.f32.mrb[0].mxu0
      %454 = vmatprep.mubr.f32.mxu0 0.0
      %455 = vmatmul.mubr.f32.gmra.mrb[0].mxu0 %v277
      %v456 = vpop.f32.mrb[0].mxu0
      %v457 = vadd.f32 %v246, %v456
      %v458 = vpop.f32.mrb[0].mxu0
      %459 = vmatprep.mubr.f32.mxu0 0.0
      %460 = vmatmul.mubr.f32.gmra.mrb[0].mxu0 %v280
      %v461 = vpop.f32.mrb[0].mxu0
      %v462 = vadd.f32 %v246, %v461
      %v463 = vpop.f32.mrb[0].mxu0
      %464 = vmatprep.mubr.f32.mxu0 0.0
      %465 = vmatmul.mubr.f32.gmra.mrb[0].mxu0 %v283
      %v466 = vpop.f32.mrb[0].mxu0
      %v467 = vadd.f32 %v246, %v466
      %v468 = vpop.f32.mrb[0].mxu0
      %469 = vmatprep.mubr.f32.mxu0 0.0
      %470 = vmatmul.mubr.f32.gmra.mrb[0].mxu0 %v286
      %v471 = vpop.f32.mrb[0].mxu0
      %v472 = vadd.f32 %v246, %v471
      %v473 = vpop.f32.mrb[0].mxu0
      %474 = vmatprep.mubr.f32.mxu0 0.0
      %475 = vmatmul.mubr.f32.gmra.mrb[0].mxu0 %v289
      %v476 = vpop.f32.mrb[0].mxu0
      %v477 = vadd.f32 %v246, %v476
      %v478 = vpop.f32.mrb[0].mxu0
      %479 = vmatprep.mubr.f32.mxu0 0.0
      %480 = vmatmul.mubr.f32.gmra.mrb[0].mxu0 %v292
      %v481 = vpop.f32.mrb[0].mxu0
      %v482 = vadd.f32 %v246, %v481
      %v483 = vpop.f32.mrb[0].mxu0
      %484 = vmatprep.mubr.f32.mxu0 0.0
      %485 = vmatmul.mubr.f32.gmra.mrb[0].mxu0 %v295
      %v486 = vpop.f32.mrb[0].mxu0
      %v487 = vadd.f32 %v246, %v486
      %v488 = vpop.f32.mrb[0].mxu0
      %489 = vmatprep.mubr.f32.mxu0 0.0
      %490 = vmatmul.mubr.f32.gmra.mrb[0].mxu0 %v298
      %v491 = vpop.f32.mrb[0].mxu0
      %v492 = vadd.f32 %v246, %v491
      %v493 = vpop.f32.mrb[0].mxu0
      %494 = vmatprep.mubr.f32.mxu0 0.0
      %495 = vmatmul.mubr.f32.gmra.mrb[0].mxu0 %v301
      %v496 = vpop.f32.mrb[0].mxu0
      %v497 = vadd.f32 %v246, %v496
      %v498 = vpop.f32.mrb[0].mxu0
      %499 = vmatprep.mubr.f32.mxu0 0.0
      %500 = vmatmul.mubr.f32.gmra.mrb[0].mxu0 %v304
      %v501 = vpop.f32.mrb[0].mxu0
      %v502 = vadd.f32 %v246, %v501
      %v503 = vpop.f32.mrb[0].mxu0
      %504 = vmatprep.mubr.f32.mxu0 0.0
      %505 = vmatmul.mubr.f32.gmra.mrb[0].mxu0 %v307
      %v506 = vpop.f32.mrb[0].mxu0
      %v507 = vadd.f32 %v246, %v506
      %v508 = vpop.f32.mrb[0].mxu0
      %509 = vmatprep.mubr.f32.mxu0 0.0
      %510 = vmatmul.mubr.f32.gmra.mrb[0].mxu0 %v310
      %v511 = vpop.f32.mrb[0].mxu0
      %v512 = vadd.f32 %v246, %v511
      %v513 = vpop.f32.mrb[0].mxu0
      %514 = vmatprep.mubr.f32.mxu0 0.0
      %515 = vmatmul.mubr.f32.gmra.mrb[0].mxu0 %v313
      %v516 = vpop.f32.mrb[0].mxu0
      %v517 = vadd.f32 %v246, %v516
      %v518 = vpop.f32.mrb[0].mxu0
      %519 = vmatprep.mubr.f32.mxu0 0.0
      %520 = vmatmul.mubr.f32.gmra.mrb[0].mxu0 %v316
      %v521 = vpop.f32.mrb[0].mxu0
      %v522 = vadd.f32 %v246, %v521
      %v523 = vpop.f32.mrb[0].mxu0
      %524 = vmatprep.mubr.f32.mxu0 0.0
      %525 = vmatmul.mubr.f32.gmra.mrb[0].mxu0 %v319
      %v526 = vpop.f32.mrb[0].mxu0
      %v527 = vadd.f32 %v246, %v526
      %v528 = vpop.f32.mrb[0].mxu0
      %529 = vmatprep.mubr.f32.mxu0 0.0
      %530 = vmatmul.mubr.f32.gmra.mrb[0].mxu0 %v322
      %v531 = vpop.f32.mrb[0].mxu0
      %v532 = vadd.f32 %v246, %v531
      %v533 = vpop.f32.mrb[0].mxu0
      %534 = vmatprep.mubr.f32.mxu0 0.0
      %535 = vmatmul.mubr.f32.gmra.mrb[0].mxu0 %v325
      %v536 = vpop.f32.mrb[0].mxu0
      %v537 = vadd.f32 %v246, %v536
      %v538 = vpop.f32.mrb[0].mxu0
      %539 = vmatprep.mubr.f32.mxu0 0.0
      %540 = vmatmul.mubr.f32.gmra.mrb[0].mxu0 %v328
      %v541 = vpop.f32.mrb[0].mxu0
      %v542 = vadd.f32 %v246, %v541
      %v543 = vpop.f32.mrb[0].mxu0
      %544 = vmatprep.mubr.f32.mxu0 0.0
      %545 = vmatmul.mubr.f32.gmra.mrb[0].mxu0 %v331
      %v546 = vpop.f32.mrb[0].mxu0
      %v547 = vadd.f32 %v246, %v546
      %v548 = vpop.f32.mrb[0].mxu0
      %549 = vmatprep.mubr.f32.mxu0 0.0
      %550 = vmatmul.mubr.f32.gmra.mrb[0].mxu0 %v334
      %v551 = vpop.f32.mrb[0].mxu0
      %v552 = vadd.f32 %v246, %v551
      %v553 = vpop.f32.mrb[0].mxu0
      %554 = vmatprep.mubr.f32.mxu0 0.0
      %555 = vmatmul.mubr.f32.gmra.mrb[0].mxu0 %v337
      %v556 = vpop.f32.mrb[0].mxu0
      %v557 = vadd.f32 %v246, %v556
      %v558 = vpop.f32.mrb[0].mxu0
      %559 = vmatprep.mubr.f32.mxu0 0.0
      %560 = vmatmul.mubr.f32.gmra.mrb[0].mxu0 %v340
      %v561 = vpop.f32.mrb[0].mxu0
      %v562 = vadd.f32 %v246, %v561
      %v563 = vpop.f32.mrb[0].mxu0
      %564 = vmatprep.mubr.f32.mxu0 0.0
      %565 = vmatmul.mubr.f32.gmra.mrb[0].mxu0 %v343
      %v566 = vpop.f32.mrb[0].mxu0
      %v567 = vadd.f32 %v246, %v566
      %v568 = vpop.f32.mrb[0].mxu0
      %569 = vdwg.mxu0
      %571 = vset.pattern.permute.xlu0 0
      %572 = vperm.xlu0 %571, %v412
      %v573 = vpop.permute.xlu0 %572
      %576 = vset.pattern.permute.xlu0 0
      %577 = vperm.xlu0 %576, %v417
      %v578 = vpop.permute.xlu0 %577
      %581 = vset.pattern.permute.xlu0 0
      %582 = vperm.xlu0 %581, %v422
      %v583 = vpop.permute.xlu0 %582
      %586 = vset.pattern.permute.xlu0 0
      %587 = vperm.xlu0 %586, %v427
      %v588 = vpop.permute.xlu0 %587
      %591 = vset.pattern.permute.xlu0 0
      %592 = vperm.xlu0 %591, %v432
      %v593 = vpop.permute.xlu0 %592
      %596 = vset.pattern.permute.xlu0 0
      %597 = vperm.xlu0 %596, %v437
      %v598 = vpop.permute.xlu0 %597
      %601 = vset.pattern.permute.xlu0 0
      %602 = vperm.xlu0 %601, %v442
      %v603 = vpop.permute.xlu0 %602
      %606 = vset.pattern.permute.xlu0 0
      %607 = vperm.xlu0 %606, %v447
      %v608 = vpop.permute.xlu0 %607
      %611 = vset.pattern.permute.xlu0 0
      %612 = vperm.xlu0 %611, %v452
      %v613 = vpop.permute.xlu0 %612
      %616 = vset.pattern.permute.xlu0 0
      %617 = vperm.xlu0 %616, %v457
      %v618 = vpop.permute.xlu0 %617
      %621 = vset.pattern.permute.xlu0 0
      %622 = vperm.xlu0 %621, %v462
      %v623 = vpop.permute.xlu0 %622
      %626 = vset.pattern.permute.xlu0 0
      %627 = vperm.xlu0 %626, %v467
      %v628 = vpop.permute.xlu0 %627
      %631 = vset.pattern.permute.xlu0 0
      %632 = vperm.xlu0 %631, %v472
      %v633 = vpop.permute.xlu0 %632
      %636 = vset.pattern.permute.xlu0 0
      %637 = vperm.xlu0 %636, %v477
      %v638 = vpop.permute.xlu0 %637
      %641 = vset.pattern.permute.xlu0 0
      %642 = vperm.xlu0 %641, %v482
      %v643 = vpop.permute.xlu0 %642
      %646 = vset.pattern.permute.xlu0 0
      %647 = vperm.xlu0 %646, %v487
      %v648 = vpop.permute.xlu0 %647
      %651 = vset.pattern.permute.xlu0 0
      %652 = vperm.xlu0 %651, %v492
      %v653 = vpop.permute.xlu0 %652
      %656 = vset.pattern.permute.xlu0 0
      %657 = vperm.xlu0 %656, %v497
      %v658 = vpop.permute.xlu0 %657
      %661 = vset.pattern.permute.xlu0 0
      %662 = vperm.xlu0 %661, %v502
      %v663 = vpop.permute.xlu0 %662
      %666 = vset.pattern.permute.xlu0 0
      %667 = vperm.xlu0 %666, %v507
      %v668 = vpop.permute.xlu0 %667
      %671 = vset.pattern.permute.xlu0 0
      %672 = vperm.xlu0 %671, %v512
      %v673 = vpop.permute.xlu0 %672
      %676 = vset.pattern.permute.xlu0 0
      %677 = vperm.xlu0 %676, %v517
      %v678 = vpop.permute.xlu0 %677
      %681 = vset.pattern.permute.xlu0 0
      %682 = vperm.xlu0 %681, %v522
      %v683 = vpop.permute.xlu0 %682
      %686 = vset.pattern.permute.xlu0 0
      %687 = vperm.xlu0 %686, %v527
      %v688 = vpop.permute.xlu0 %687
      %691 = vset.pattern.permute.xlu0 0
      %692 = vperm.xlu0 %691, %v532
      %v693 = vpop.permute.xlu0 %692
      %696 = vset.pattern.permute.xlu0 0
      %697 = vperm.xlu0 %696, %v537
      %v698 = vpop.permute.xlu0 %697
      %701 = vset.pattern.permute.xlu0 0
      %702 = vperm.xlu0 %701, %v542
      %v703 = vpop.permute.xlu0 %702
      %706 = vset.pattern.permute.xlu0 0
      %707 = vperm.xlu0 %706, %v547
      %v708 = vpop.permute.xlu0 %707
      %711 = vset.pattern.permute.xlu0 0
      %712 = vperm.xlu0 %711, %v552
      %v713 = vpop.permute.xlu0 %712
      %716 = vset.pattern.permute.xlu0 0
      %717 = vperm.xlu0 %716, %v557
      %v718 = vpop.permute.xlu0 %717
      %721 = vset.pattern.permute.xlu0 0
      %722 = vperm.xlu0 %721, %v562
      %v723 = vpop.permute.xlu0 %722
      %726 = vset.pattern.permute.xlu0 0
      %727 = vperm.xlu0 %726, %v567
      %v728 = vpop.permute.xlu0 %727
      %730 = vset.pattern.permute.xlu0 2
      %731 = vperm.xlu0 %730, %v412
      %v732 = vpop.permute.xlu0 %731
      %733 = vset.pattern.permute.xlu0 2
      %734 = vperm.xlu0 %733, %v417
      %v735 = vpop.permute.xlu0 %734
      %736 = vset.pattern.permute.xlu0 2
      %737 = vperm.xlu0 %736, %v422
      %v738 = vpop.permute.xlu0 %737
      %739 = vset.pattern.permute.xlu0 2
      %740 = vperm.xlu0 %739, %v427
      %v741 = vpop.permute.xlu0 %740
      %742 = vset.pattern.permute.xlu0 2
      %743 = vperm.xlu0 %742, %v432
      %v744 = vpop.permute.xlu0 %743
      %745 = vset.pattern.permute.xlu0 2
      %746 = vperm.xlu0 %745, %v437
      %v747 = vpop.permute.xlu0 %746
      %748 = vset.pattern.permute.xlu0 2
      %749 = vperm.xlu0 %748, %v442
      %v750 = vpop.permute.xlu0 %749
      %751 = vset.pattern.permute.xlu0 2
      %752 = vperm.xlu0 %751, %v447
      %v753 = vpop.permute.xlu0 %752
      %754 = vset.pattern.permute.xlu0 2
      %755 = vperm.xlu0 %754, %v452
      %v756 = vpop.permute.xlu0 %755
      %757 = vset.pattern.permute.xlu0 2
      %758 = vperm.xlu0 %757, %v457
      %v759 = vpop.permute.xlu0 %758
      %760 = vset.pattern.permute.xlu0 2
      %761 = vperm.xlu0 %760, %v462
      %v762 = vpop.permute.xlu0 %761
      %763 = vset.pattern.permute.xlu0 2
      %764 = vperm.xlu0 %763, %v467
      %v765 = vpop.permute.xlu0 %764
      %766 = vset.pattern.permute.xlu0 2
      %767 = vperm.xlu0 %766, %v472
      %v768 = vpop.permute.xlu0 %767
      %769 = vset.pattern.permute.xlu0 2
      %770 = vperm.xlu0 %769, %v477
      %v771 = vpop.permute.xlu0 %770
      %772 = vset.pattern.permute.xlu0 2
      %773 = vperm.xlu0 %772, %v482
      %v774 = vpop.permute.xlu0 %773
      %775 = vset.pattern.permute.xlu0 2
      %776 = vperm.xlu0 %775, %v487
      %v777 = vpop.permute.xlu0 %776
      %778 = vset.pattern.permute.xlu0 2
      %779 = vperm.xlu0 %778, %v492
      %v780 = vpop.permute.xlu0 %779
      %781 = vset.pattern.permute.xlu0 2
      %782 = vperm.xlu0 %781, %v497
      %v783 = vpop.permute.xlu0 %782
      %784 = vset.pattern.permute.xlu0 2
      %785 = vperm.xlu0 %784, %v502
      %v786 = vpop.permute.xlu0 %785
      %787 = vset.pattern.permute.xlu0 2
      %788 = vperm.xlu0 %787, %v507
      %v789 = vpop.permute.xlu0 %788
      %790 = vset.pattern.permute.xlu0 2
      %791 = vperm.xlu0 %790, %v512
      %v792 = vpop.permute.xlu0 %791
      %793 = vset.pattern.permute.xlu0 2
      %794 = vperm.xlu0 %793, %v517
      %v795 = vpop.permute.xlu0 %794
      %796 = vset.pattern.permute.xlu0 2
      %797 = vperm.xlu0 %796, %v522
      %v798 = vpop.permute.xlu0 %797
      %799 = vset.pattern.permute.xlu0 2
      %800 = vperm.xlu0 %799, %v527
      %v801 = vpop.permute.xlu0 %800
      %802 = vset.pattern.permute.xlu0 2
      %803 = vperm.xlu0 %802, %v532
      %v804 = vpop.permute.xlu0 %803
      %805 = vset.pattern.permute.xlu0 2
      %806 = vperm.xlu0 %805, %v537
      %v807 = vpop.permute.xlu0 %806
      %808 = vset.pattern.permute.xlu0 2
      %809 = vperm.xlu0 %808, %v542
      %v810 = vpop.permute.xlu0 %809
      %811 = vset.pattern.permute.xlu0 2
      %812 = vperm.xlu0 %811, %v547
      %v813 = vpop.permute.xlu0 %812
      %814 = vset.pattern.permute.xlu0 2
      %815 = vperm.xlu0 %814, %v552
      %v816 = vpop.permute.xlu0 %815
      %817 = vset.pattern.permute.xlu0 2
      %818 = vperm.xlu0 %817, %v557
      %v819 = vpop.permute.xlu0 %818
      %820 = vset.pattern.permute.xlu0 2
      %821 = vperm.xlu0 %820, %v562
      %v822 = vpop.permute.xlu0 %821
      %823 = vset.pattern.permute.xlu0 2
      %824 = vperm.xlu0 %823, %v567
      %v825 = vpop.permute.xlu0 %824
      %v826 = vlaneseq
      %v827 = vand.u32 %v826, 127
      %v828 = vlaneseq
      %v829 = vshrl.u32 %v828, 7
      %v830 = vsub.s32 %v827, %v829
      %v831 = vrot.slane %v732, %v830
      %v832 = vadd.s32 %v827, 4294967288
      %v833 = vlaneseq
      %v834 = vshrl.u32 %v833, 7
      %v835 = vsub.s32 %v832, %v834
      %v836 = vrot.slane %v735, %v835
      %vm837 = vcmask 130112
      %v838 = vsel %vm837, %v836, %v831
      %v839 = vlaneseq
      %v840 = vshrl.u32 %v839, 7
      %v841 = vsub.s32 %v827, %v840
      %v842 = vrot.slane %v738, %v841
      %v843 = vlaneseq
      %v844 = vshrl.u32 %v843, 7
      %v845 = vsub.s32 %v832, %v844
      %v846 = vrot.slane %v741, %v845
      %v847 = vsel %vm837, %v846, %v842
      %v848 = vlaneseq
      %v849 = vshrl.u32 %v848, 7
      %v850 = vsub.s32 %v827, %v849
      %v851 = vrot.slane %v744, %v850
      %v852 = vlaneseq
      %v853 = vshrl.u32 %v852, 7
      %v854 = vsub.s32 %v832, %v853
      %v855 = vrot.slane %v747, %v854
      %v856 = vsel %vm837, %v855, %v851
      %v857 = vlaneseq
      %v858 = vshrl.u32 %v857, 7
      %v859 = vsub.s32 %v827, %v858
      %v860 = vrot.slane %v750, %v859
      %v861 = vlaneseq
      %v862 = vshrl.u32 %v861, 7
      %v863 = vsub.s32 %v832, %v862
      %v864 = vrot.slane %v753, %v863
      %v865 = vsel %vm837, %v864, %v860
      %v866 = vlaneseq
      %v867 = vshrl.u32 %v866, 7
      %v868 = vsub.s32 %v827, %v867
      %v869 = vrot.slane %v756, %v868
      %v870 = vlaneseq
      %v871 = vshrl.u32 %v870, 7
      %v872 = vsub.s32 %v832, %v871
      %v873 = vrot.slane %v759, %v872
      %v874 = vsel %vm837, %v873, %v869
      %v875 = vlaneseq
      %v876 = vshrl.u32 %v875, 7
      %v877 = vsub.s32 %v827, %v876
      %v878 = vrot.slane %v762, %v877
      %v879 = vlaneseq
      %v880 = vshrl.u32 %v879, 7
      %v881 = vsub.s32 %v832, %v880
      %v882 = vrot.slane %v765, %v881
      %v883 = vsel %vm837, %v882, %v878
      %v884 = vlaneseq
      %v885 = vshrl.u32 %v884, 7
      %v886 = vsub.s32 %v827, %v885
      %v887 = vrot.slane %v768, %v886
      %v888 = vlaneseq
      %v889 = vshrl.u32 %v888, 7
      %v890 = vsub.s32 %v832, %v889
      %v891 = vrot.slane %v771, %v890
      %v892 = vsel %vm837, %v891, %v887
      %v893 = vlaneseq
      %v894 = vshrl.u32 %v893, 7
      %v895 = vsub.s32 %v827, %v894
      %v896 = vrot.slane %v774, %v895
      %v897 = vlaneseq
      %v898 = vshrl.u32 %v897, 7
      %v899 = vsub.s32 %v832, %v898
      %v900 = vrot.slane %v777, %v899
      %v901 = vsel %vm837, %v900, %v896
      %v902 = vlaneseq
      %v903 = vshrl.u32 %v902, 7
      %v904 = vsub.s32 %v827, %v903
      %v905 = vrot.slane %v780, %v904
      %v906 = vlaneseq
      %v907 = vshrl.u32 %v906, 7
      %v908 = vsub.s32 %v832, %v907
      %v909 = vrot.slane %v783, %v908
      %v910 = vsel %vm837, %v909, %v905
      %v911 = vlaneseq
      %v912 = vshrl.u32 %v911, 7
      %v913 = vsub.s32 %v827, %v912
      %v914 = vrot.slane %v786, %v913
      %v915 = vlaneseq
      %v916 = vshrl.u32 %v915, 7
      %v917 = vsub.s32 %v832, %v916
      %v918 = vrot.slane %v789, %v917
      %v919 = vsel %vm837, %v918, %v914
      %v920 = vlaneseq
      %v921 = vshrl.u32 %v920, 7
      %v922 = vsub.s32 %v827, %v921
      %v923 = vrot.slane %v792, %v922
      %v924 = vlaneseq
      %v925 = vshrl.u32 %v924, 7
      %v926 = vsub.s32 %v832, %v925
      %v927 = vrot.slane %v795, %v926
      %v928 = vsel %vm837, %v927, %v923
      %v929 = vlaneseq
      %v930 = vshrl.u32 %v929, 7
      %v931 = vsub.s32 %v827, %v930
      %v932 = vrot.slane %v798, %v931
      %v933 = vlaneseq
      %v934 = vshrl.u32 %v933, 7
      %v935 = vsub.s32 %v832, %v934
      %v936 = vrot.slane %v801, %v935
      %v937 = vsel %vm837, %v936, %v932
      %v938 = vlaneseq
      %v939 = vshrl.u32 %v938, 7
      %v940 = vsub.s32 %v827, %v939
      %v941 = vrot.slane %v804, %v940
      %v942 = vlaneseq
      %v943 = vshrl.u32 %v942, 7
      %v944 = vsub.s32 %v832, %v943
      %v945 = vrot.slane %v807, %v944
      %v946 = vsel %vm837, %v945, %v941
      %v947 = vlaneseq
      %v948 = vshrl.u32 %v947, 7
      %v949 = vsub.s32 %v827, %v948
      %v950 = vrot.slane %v810, %v949
      %v951 = vlaneseq
      %v952 = vshrl.u32 %v951, 7
      %v953 = vsub.s32 %v832, %v952
      %v954 = vrot.slane %v813, %v953
      %v955 = vsel %vm837, %v954, %v950
      %v956 = vlaneseq
      %v957 = vshrl.u32 %v956, 7
      %v958 = vsub.s32 %v827, %v957
      %v959 = vrot.slane %v816, %v958
      %v960 = vlaneseq
      %v961 = vshrl.u32 %v960, 7
      %v962 = vsub.s32 %v832, %v961
      %v963 = vrot.slane %v819, %v962
      %v964 = vsel %vm837, %v963, %v959
      %v965 = vlaneseq
      %v966 = vshrl.u32 %v965, 7
      %v967 = vsub.s32 %v827, %v966
      %v968 = vrot.slane %v822, %v967
      %v969 = vlaneseq
      %v970 = vshrl.u32 %v969, 7
      %v971 = vsub.s32 %v832, %v970
      %v972 = vrot.slane %v825, %v971
      %v973 = vsel %vm837, %v972, %v968
      %vm974 = vcmask 1042434
      %v975 = vsel %vm974, %v838, %v838
      %vm976 = vcmask 1043459
      %v977 = vsel %vm976, %v838, %v975
      %vm978 = vcmask 1044484
      %v979 = vsel %vm978, %v838, %v977
      %vm980 = vcmask 1045509
      %v981 = vsel %vm980, %v838, %v979
      %vm982 = vcmask 1046534
      %v983 = vsel %vm982, %v838, %v981
      %vm984 = vcmask 1047559
      %v985 = vsel %vm984, %v838, %v983
      %v986 = vsel %vm974, %v847, %v847
      %v987 = vsel %vm976, %v847, %v986
      %v988 = vsel %vm978, %v847, %v987
      %v989 = vsel %vm980, %v847, %v988
      %v990 = vsel %vm982, %v847, %v989
      %v991 = vsel %vm984, %v847, %v990
      %v992 = vsel %vm974, %v856, %v856
      %v993 = vsel %vm976, %v856, %v992
      %v994 = vsel %vm978, %v856, %v993
      %v995 = vsel %vm980, %v856, %v994
      %v996 = vsel %vm982, %v856, %v995
      %v997 = vsel %vm984, %v856, %v996
      %v998 = vsel %vm974, %v865, %v865
      %v999 = vsel %vm976, %v865, %v998
      %v1000 = vsel %vm978, %v865, %v999
      %v1001 = vsel %vm980, %v865, %v1000
      %v1002 = vsel %vm982, %v865, %v1001
      %v1003 = vsel %vm984, %v865, %v1002
      %v1004 = vsel %vm974, %v874, %v874
      %v1005 = vsel %vm976, %v874, %v1004
      %v1006 = vsel %vm978, %v874, %v1005
      %v1007 = vsel %vm980, %v874, %v1006
      %v1008 = vsel %vm982, %v874, %v1007
      %v1009 = vsel %vm984, %v874, %v1008
      %v1010 = vsel %vm974, %v883, %v883
      %v1011 = vsel %vm976, %v883, %v1010
      %v1012 = vsel %vm978, %v883, %v1011
      %v1013 = vsel %vm980, %v883, %v1012
      %v1014 = vsel %vm982, %v883, %v1013
      %v1015 = vsel %vm984, %v883, %v1014
      %v1016 = vsel %vm974, %v892, %v892
      %v1017 = vsel %vm976, %v892, %v1016
      %v1018 = vsel %vm978, %v892, %v1017
      %v1019 = vsel %vm980, %v892, %v1018
      %v1020 = vsel %vm982, %v892, %v1019
      %v1021 = vsel %vm984, %v892, %v1020
      %v1022 = vsel %vm974, %v901, %v901
      %v1023 = vsel %vm976, %v901, %v1022
      %v1024 = vsel %vm978, %v901, %v1023
      %v1025 = vsel %vm980, %v901, %v1024
      %v1026 = vsel %vm982, %v901, %v1025
      %v1027 = vsel %vm984, %v901, %v1026
      %v1028 = vsel %vm974, %v910, %v910
      %v1029 = vsel %vm976, %v910, %v1028
      %v1030 = vsel %vm978, %v910, %v1029
      %v1031 = vsel %vm980, %v910, %v1030
      %v1032 = vsel %vm982, %v910, %v1031
      %v1033 = vsel %vm984, %v910, %v1032
      %v1034 = vsel %vm974, %v919, %v919
      %v1035 = vsel %vm976, %v919, %v1034
      %v1036 = vsel %vm978, %v919, %v1035
      %v1037 = vsel %vm980, %v919, %v1036
      %v1038 = vsel %vm982, %v919, %v1037
      %v1039 = vsel %vm984, %v919, %v1038
      %v1040 = vsel %vm974, %v928, %v928
      %v1041 = vsel %vm976, %v928, %v1040
      %v1042 = vsel %vm978, %v928, %v1041
      %v1043 = vsel %vm980, %v928, %v1042
      %v1044 = vsel %vm982, %v928, %v1043
      %v1045 = vsel %vm984, %v928, %v1044
      %v1046 = vsel %vm974, %v937, %v937
      %v1047 = vsel %vm976, %v937, %v1046
      %v1048 = vsel %vm978, %v937, %v1047
      %v1049 = vsel %vm980, %v937, %v1048
      %v1050 = vsel %vm982, %v937, %v1049
      %v1051 = vsel %vm984, %v937, %v1050
      %v1052 = vsel %vm974, %v946, %v946
      %v1053 = vsel %vm976, %v946, %v1052
      %v1054 = vsel %vm978, %v946, %v1053
      %v1055 = vsel %vm980, %v946, %v1054
      %v1056 = vsel %vm982, %v946, %v1055
      %v1057 = vsel %vm984, %v946, %v1056
      %v1058 = vsel %vm974, %v955, %v955
      %v1059 = vsel %vm976, %v955, %v1058
      %v1060 = vsel %vm978, %v955, %v1059
      %v1061 = vsel %vm980, %v955, %v1060
      %v1062 = vsel %vm982, %v955, %v1061
      %v1063 = vsel %vm984, %v955, %v1062
      %v1064 = vsel %vm974, %v964, %v964
      %v1065 = vsel %vm976, %v964, %v1064
      %v1066 = vsel %vm978, %v964, %v1065
      %v1067 = vsel %vm980, %v964, %v1066
      %v1068 = vsel %vm982, %v964, %v1067
      %v1069 = vsel %vm984, %v964, %v1068
      %v1070 = vsel %vm974, %v973, %v973
      %v1071 = vsel %vm976, %v973, %v1070
      %v1072 = vsel %vm978, %v973, %v1071
      %v1073 = vsel %vm980, %v973, %v1072
      %v1074 = vsel %vm982, %v973, %v1073
      %v1075 = vsel %vm984, %v973, %v1074
      %v1092 = vmul.f32 %v573, %v985
      %v1093 = vmul.f32 %v578, %v985
      %v1094 = vmul.f32 %v583, %v991
      %v1095 = vmul.f32 %v588, %v991
      %v1096 = vmul.f32 %v593, %v997
      %v1097 = vmul.f32 %v598, %v997
      %v1098 = vmul.f32 %v603, %v1003
      %v1099 = vmul.f32 %v608, %v1003
      %v1100 = vmul.f32 %v613, %v1009
      %v1101 = vmul.f32 %v618, %v1009
      %v1102 = vmul.f32 %v623, %v1015
      %v1103 = vmul.f32 %v628, %v1015
      %v1104 = vmul.f32 %v633, %v1021
      %v1105 = vmul.f32 %v638, %v1021
      %v1106 = vmul.f32 %v643, %v1027
      %v1107 = vmul.f32 %v648, %v1027
      %v1108 = vmul.f32 %v653, %v1033
      %v1109 = vmul.f32 %v658, %v1033
      %v1110 = vmul.f32 %v663, %v1039
      %v1111 = vmul.f32 %v668, %v1039
      %v1112 = vmul.f32 %v673, %v1045
      %v1113 = vmul.f32 %v678, %v1045
      %v1114 = vmul.f32 %v683, %v1051
      %v1115 = vmul.f32 %v688, %v1051
      %v1116 = vmul.f32 %v693, %v1057
      %v1117 = vmul.f32 %v698, %v1057
      %v1118 = vmul.f32 %v703, %v1063
      %v1119 = vmul.f32 %v708, %v1063
      %v1120 = vmul.f32 %v713, %v1069
      %v1121 = vmul.f32 %v718, %v1069
      %v1122 = vmul.f32 %v723, %v1075
      %v1123 = vmul.f32 %v728, %v1075
      %1124 = vset.pattern.permute.xlu0 1
      %1125 = vperm.xlu0 %1124, %v412
      %v1126 = vpop.permute.xlu0 %1125
      %1128 = vset.pattern.permute.xlu0 1
      %1129 = vperm.xlu0 %1128, %v417
      %v1130 = vpop.permute.xlu0 %1129
      %1132 = vset.pattern.permute.xlu0 1
      %1133 = vperm.xlu0 %1132, %v422
      %v1134 = vpop.permute.xlu0 %1133
      %1136 = vset.pattern.permute.xlu0 1
      %1137 = vperm.xlu0 %1136, %v427
      %v1138 = vpop.permute.xlu0 %1137
      %1140 = vset.pattern.permute.xlu0 1
      %1141 = vperm.xlu0 %1140, %v432
      %v1142 = vpop.permute.xlu0 %1141
      %1144 = vset.pattern.permute.xlu0 1
      %1145 = vperm.xlu0 %1144, %v437
      %v1146 = vpop.permute.xlu0 %1145
      %1148 = vset.pattern.permute.xlu0 1
      %1149 = vperm.xlu0 %1148, %v442
      %v1150 = vpop.permute.xlu0 %1149
      %1152 = vset.pattern.permute.xlu0 1
      %1153 = vperm.xlu0 %1152, %v447
      %v1154 = vpop.permute.xlu0 %1153
      %1156 = vset.pattern.permute.xlu0 1
      %1157 = vperm.xlu0 %1156, %v452
      %v1158 = vpop.permute.xlu0 %1157
      %1160 = vset.pattern.permute.xlu0 1
      %1161 = vperm.xlu0 %1160, %v457
      %v1162 = vpop.permute.xlu0 %1161
      %1164 = vset.pattern.permute.xlu0 1
      %1165 = vperm.xlu0 %1164, %v462
      %v1166 = vpop.permute.xlu0 %1165
      %1168 = vset.pattern.permute.xlu0 1
      %1169 = vperm.xlu0 %1168, %v467
      %v1170 = vpop.permute.xlu0 %1169
      %1172 = vset.pattern.permute.xlu0 1
      %1173 = vperm.xlu0 %1172, %v472
      %v1174 = vpop.permute.xlu0 %1173
      %1176 = vset.pattern.permute.xlu0 1
      %1177 = vperm.xlu0 %1176, %v477
      %v1178 = vpop.permute.xlu0 %1177
      %1180 = vset.pattern.permute.xlu0 1
      %1181 = vperm.xlu0 %1180, %v482
      %v1182 = vpop.permute.xlu0 %1181
      %1184 = vset.pattern.permute.xlu0 1
      %1185 = vperm.xlu0 %1184, %v487
      %v1186 = vpop.permute.xlu0 %1185
      %1188 = vset.pattern.permute.xlu0 1
      %1189 = vperm.xlu0 %1188, %v492
      %v1190 = vpop.permute.xlu0 %1189
      %1192 = vset.pattern.permute.xlu0 1
      %1193 = vperm.xlu0 %1192, %v497
      %v1194 = vpop.permute.xlu0 %1193
      %1196 = vset.pattern.permute.xlu0 1
      %1197 = vperm.xlu0 %1196, %v502
      %v1198 = vpop.permute.xlu0 %1197
      %1200 = vset.pattern.permute.xlu0 1
      %1201 = vperm.xlu0 %1200, %v507
      %v1202 = vpop.permute.xlu0 %1201
      %1204 = vset.pattern.permute.xlu0 1
      %1205 = vperm.xlu0 %1204, %v512
      %v1206 = vpop.permute.xlu0 %1205
      %1208 = vset.pattern.permute.xlu0 1
      %1209 = vperm.xlu0 %1208, %v517
      %v1210 = vpop.permute.xlu0 %1209
      %1212 = vset.pattern.permute.xlu0 1
      %1213 = vperm.xlu0 %1212, %v522
      %v1214 = vpop.permute.xlu0 %1213
      %1216 = vset.pattern.permute.xlu0 1
      %1217 = vperm.xlu0 %1216, %v527
      %v1218 = vpop.permute.xlu0 %1217
      %1220 = vset.pattern.permute.xlu0 1
      %1221 = vperm.xlu0 %1220, %v532
      %v1222 = vpop.permute.xlu0 %1221
      %1224 = vset.pattern.permute.xlu0 1
      %1225 = vperm.xlu0 %1224, %v537
      %v1226 = vpop.permute.xlu0 %1225
      %1228 = vset.pattern.permute.xlu0 1
      %1229 = vperm.xlu0 %1228, %v542
      %v1230 = vpop.permute.xlu0 %1229
      %1232 = vset.pattern.permute.xlu0 1
      %1233 = vperm.xlu0 %1232, %v547
      %v1234 = vpop.permute.xlu0 %1233
      %1236 = vset.pattern.permute.xlu0 1
      %1237 = vperm.xlu0 %1236, %v552
      %v1238 = vpop.permute.xlu0 %1237
      %1240 = vset.pattern.permute.xlu0 1
      %1241 = vperm.xlu0 %1240, %v557
      %v1242 = vpop.permute.xlu0 %1241
      %1244 = vset.pattern.permute.xlu0 1
      %1245 = vperm.xlu0 %1244, %v562
      %v1246 = vpop.permute.xlu0 %1245
      %1248 = vset.pattern.permute.xlu0 1
      %1249 = vperm.xlu0 %1248, %v567
      %v1250 = vpop.permute.xlu0 %1249
      %1252 = vset.pattern.permute.xlu0 3
      %1253 = vperm.xlu0 %1252, %v412
      %v1254 = vpop.permute.xlu0 %1253
      %1255 = vset.pattern.permute.xlu0 3
      %1256 = vperm.xlu0 %1255, %v417
      %v1257 = vpop.permute.xlu0 %1256
      %1258 = vset.pattern.permute.xlu0 3
      %1259 = vperm.xlu0 %1258, %v422
      %v1260 = vpop.permute.xlu0 %1259
      %1261 = vset.pattern.permute.xlu0 3
      %1262 = vperm.xlu0 %1261, %v427
      %v1263 = vpop.permute.xlu0 %1262
      %1264 = vset.pattern.permute.xlu0 3
      %1265 = vperm.xlu0 %1264, %v432
      %v1266 = vpop.permute.xlu0 %1265
      %1267 = vset.pattern.permute.xlu0 3
      %1268 = vperm.xlu0 %1267, %v437
      %v1269 = vpop.permute.xlu0 %1268
      %1270 = vset.pattern.permute.xlu0 3
      %1271 = vperm.xlu0 %1270, %v442
      %v1272 = vpop.permute.xlu0 %1271
      %1273 = vset.pattern.permute.xlu0 3
      %1274 = vperm.xlu0 %1273, %v447
      %v1275 = vpop.permute.xlu0 %1274
      %1276 = vset.pattern.permute.xlu0 3
      %1277 = vperm.xlu0 %1276, %v452
      %v1278 = vpop.permute.xlu0 %1277
      %1279 = vset.pattern.permute.xlu0 3
      %1280 = vperm.xlu0 %1279, %v457
      %v1281 = vpop.permute.xlu0 %1280
      %1282 = vset.pattern.permute.xlu0 3
      %1283 = vperm.xlu0 %1282, %v462
      %v1284 = vpop.permute.xlu0 %1283
      %1285 = vset.pattern.permute.xlu0 3
      %1286 = vperm.xlu0 %1285, %v467
      %v1287 = vpop.permute.xlu0 %1286
      %1288 = vset.pattern.permute.xlu0 3
      %1289 = vperm.xlu0 %1288, %v472
      %v1290 = vpop.permute.xlu0 %1289
      %1291 = vset.pattern.permute.xlu0 3
      %1292 = vperm.xlu0 %1291, %v477
      %v1293 = vpop.permute.xlu0 %1292
      %1294 = vset.pattern.permute.xlu0 3
      %1295 = vperm.xlu0 %1294, %v482
      %v1296 = vpop.permute.xlu0 %1295
      %1297 = vset.pattern.permute.xlu0 3
      %1298 = vperm.xlu0 %1297, %v487
      %v1299 = vpop.permute.xlu0 %1298
      %1300 = vset.pattern.permute.xlu0 3
      %1301 = vperm.xlu0 %1300, %v492
      %v1302 = vpop.permute.xlu0 %1301
      %1303 = vset.pattern.permute.xlu0 3
      %1304 = vperm.xlu0 %1303, %v497
      %v1305 = vpop.permute.xlu0 %1304
      %1306 = vset.pattern.permute.xlu0 3
      %1307 = vperm.xlu0 %1306, %v502
      %v1308 = vpop.permute.xlu0 %1307
      %1309 = vset.pattern.permute.xlu0 3
      %1310 = vperm.xlu0 %1309, %v507
      %v1311 = vpop.permute.xlu0 %1310
      %1312 = vset.pattern.permute.xlu0 3
      %1313 = vperm.xlu0 %1312, %v512
      %v1314 = vpop.permute.xlu0 %1313
      %1315 = vset.pattern.permute.xlu0 3
      %1316 = vperm.xlu0 %1315, %v517
      %v1317 = vpop.permute.xlu0 %1316
      %1318 = vset.pattern.permute.xlu0 3
      %1319 = vperm.xlu0 %1318, %v522
      %v1320 = vpop.permute.xlu0 %1319
      %1321 = vset.pattern.permute.xlu0 3
      %1322 = vperm.xlu0 %1321, %v527
      %v1323 = vpop.permute.xlu0 %1322
      %1324 = vset.pattern.permute.xlu0 3
      %1325 = vperm.xlu0 %1324, %v532
      %v1326 = vpop.permute.xlu0 %1325
      %1327 = vset.pattern.permute.xlu0 3
      %1328 = vperm.xlu0 %1327, %v537
      %v1329 = vpop.permute.xlu0 %1328
      %1330 = vset.pattern.permute.xlu0 3
      %1331 = vperm.xlu0 %1330, %v542
      %v1332 = vpop.permute.xlu0 %1331
      %1333 = vset.pattern.permute.xlu0 3
      %1334 = vperm.xlu0 %1333, %v547
      %v1335 = vpop.permute.xlu0 %1334
      %1336 = vset.pattern.permute.xlu0 3
      %1337 = vperm.xlu0 %1336, %v552
      %v1338 = vpop.permute.xlu0 %1337
      %1339 = vset.pattern.permute.xlu0 3
      %1340 = vperm.xlu0 %1339, %v557
      %v1341 = vpop.permute.xlu0 %1340
      %1342 = vset.pattern.permute.xlu0 3
      %1343 = vperm.xlu0 %1342, %v562
      %v1344 = vpop.permute.xlu0 %1343
      %1345 = vset.pattern.permute.xlu0 3
      %1346 = vperm.xlu0 %1345, %v567
      %v1347 = vpop.permute.xlu0 %1346
      %v1348 = vlaneseq
      %v1349 = vshrl.u32 %v1348, 7
      %v1350 = vsub.s32 %v827, %v1349
      %v1351 = vrot.slane %v1254, %v1350
      %v1352 = vlaneseq
      %v1353 = vshrl.u32 %v1352, 7
      %v1354 = vsub.s32 %v832, %v1353
      %v1355 = vrot.slane %v1257, %v1354
      %v1356 = vsel %vm837, %v1355, %v1351
      %v1357 = vlaneseq
      %v1358 = vshrl.u32 %v1357, 7
      %v1359 = vsub.s32 %v827, %v1358
      %v1360 = vrot.slane %v1260, %v1359
      %v1361 = vlaneseq
      %v1362 = vshrl.u32 %v1361, 7
      %v1363 = vsub.s32 %v832, %v1362
      %v1364 = vrot.slane %v1263, %v1363
      %v1365 = vsel %vm837, %v1364, %v1360
      %v1366 = vlaneseq
      %v1367 = vshrl.u32 %v1366, 7
      %v1368 = vsub.s32 %v827, %v1367
      %v1369 = vrot.slane %v1266, %v1368
      %v1370 = vlaneseq
      %v1371 = vshrl.u32 %v1370, 7
      %v1372 = vsub.s32 %v832, %v1371
      %v1373 = vrot.slane %v1269, %v1372
      %v1374 = vsel %vm837, %v1373, %v1369
      %v1375 = vlaneseq
      %v1376 = vshrl.u32 %v1375, 7
      %v1377 = vsub.s32 %v827, %v1376
      %v1378 = vrot.slane %v1272, %v1377
      %v1379 = vlaneseq
      %v1380 = vshrl.u32 %v1379, 7
      %v1381 = vsub.s32 %v832, %v1380
      %v1382 = vrot.slane %v1275, %v1381
      %v1383 = vsel %vm837, %v1382, %v1378
      %v1384 = vlaneseq
      %v1385 = vshrl.u32 %v1384, 7
      %v1386 = vsub.s32 %v827, %v1385
      %v1387 = vrot.slane %v1278, %v1386
      %v1388 = vlaneseq
      %v1389 = vshrl.u32 %v1388, 7
      %v1390 = vsub.s32 %v832, %v1389
      %v1391 = vrot.slane %v1281, %v1390
      %v1392 = vsel %vm837, %v1391, %v1387
      %v1393 = vlaneseq
      %v1394 = vshrl.u32 %v1393, 7
      %v1395 = vsub.s32 %v827, %v1394
      %v1396 = vrot.slane %v1284, %v1395
      %v1397 = vlaneseq
      %v1398 = vshrl.u32 %v1397, 7
      %v1399 = vsub.s32 %v832, %v1398
      %v1400 = vrot.slane %v1287, %v1399
      %v1401 = vsel %vm837, %v1400, %v1396
      %v1402 = vlaneseq
      %v1403 = vshrl.u32 %v1402, 7
      %v1404 = vsub.s32 %v827, %v1403
      %v1405 = vrot.slane %v1290, %v1404
      %v1406 = vlaneseq
      %v1407 = vshrl.u32 %v1406, 7
      %v1408 = vsub.s32 %v832, %v1407
      %v1409 = vrot.slane %v1293, %v1408
      %v1410 = vsel %vm837, %v1409, %v1405
      %v1411 = vlaneseq
      %v1412 = vshrl.u32 %v1411, 7
      %v1413 = vsub.s32 %v827, %v1412
      %v1414 = vrot.slane %v1296, %v1413
      %v1415 = vlaneseq
      %v1416 = vshrl.u32 %v1415, 7
      %v1417 = vsub.s32 %v832, %v1416
      %v1418 = vrot.slane %v1299, %v1417
      %v1419 = vsel %vm837, %v1418, %v1414
      %v1420 = vlaneseq
      %v1421 = vshrl.u32 %v1420, 7
      %v1422 = vsub.s32 %v827, %v1421
      %v1423 = vrot.slane %v1302, %v1422
      %v1424 = vlaneseq
      %v1425 = vshrl.u32 %v1424, 7
      %v1426 = vsub.s32 %v832, %v1425
      %v1427 = vrot.slane %v1305, %v1426
      %v1428 = vsel %vm837, %v1427, %v1423
      %v1429 = vlaneseq
      %v1430 = vshrl.u32 %v1429, 7
      %v1431 = vsub.s32 %v827, %v1430
      %v1432 = vrot.slane %v1308, %v1431
      %v1433 = vlaneseq
      %v1434 = vshrl.u32 %v1433, 7
      %v1435 = vsub.s32 %v832, %v1434
      %v1436 = vrot.slane %v1311, %v1435
      %v1437 = vsel %vm837, %v1436, %v1432
      %v1438 = vlaneseq
      %v1439 = vshrl.u32 %v1438, 7
      %v1440 = vsub.s32 %v827, %v1439
      %v1441 = vrot.slane %v1314, %v1440
      %v1442 = vlaneseq
      %v1443 = vshrl.u32 %v1442, 7
      %v1444 = vsub.s32 %v832, %v1443
      %v1445 = vrot.slane %v1317, %v1444
      %v1446 = vsel %vm837, %v1445, %v1441
      %v1447 = vlaneseq
      %v1448 = vshrl.u32 %v1447, 7
      %v1449 = vsub.s32 %v827, %v1448
      %v1450 = vrot.slane %v1320, %v1449
      %v1451 = vlaneseq
      %v1452 = vshrl.u32 %v1451, 7
      %v1453 = vsub.s32 %v832, %v1452
      %v1454 = vrot.slane %v1323, %v1453
      %v1455 = vsel %vm837, %v1454, %v1450
      %v1456 = vlaneseq
      %v1457 = vshrl.u32 %v1456, 7
      %v1458 = vsub.s32 %v827, %v1457
      %v1459 = vrot.slane %v1326, %v1458
      %v1460 = vlaneseq
      %v1461 = vshrl.u32 %v1460, 7
      %v1462 = vsub.s32 %v832, %v1461
      %v1463 = vrot.slane %v1329, %v1462
      %v1464 = vsel %vm837, %v1463, %v1459
      %v1465 = vlaneseq
      %v1466 = vshrl.u32 %v1465, 7
      %v1467 = vsub.s32 %v827, %v1466
      %v1468 = vrot.slane %v1332, %v1467
      %v1469 = vlaneseq
      %v1470 = vshrl.u32 %v1469, 7
      %v1471 = vsub.s32 %v832, %v1470
      %v1472 = vrot.slane %v1335, %v1471
      %v1473 = vsel %vm837, %v1472, %v1468
      %v1474 = vlaneseq
      %v1475 = vshrl.u32 %v1474, 7
      %v1476 = vsub.s32 %v827, %v1475
      %v1477 = vrot.slane %v1338, %v1476
      %v1478 = vlaneseq
      %v1479 = vshrl.u32 %v1478, 7
      %v1480 = vsub.s32 %v832, %v1479
      %v1481 = vrot.slane %v1341, %v1480
      %v1482 = vsel %vm837, %v1481, %v1477
      %v1483 = vlaneseq
      %v1484 = vshrl.u32 %v1483, 7
      %v1485 = vsub.s32 %v827, %v1484
      %v1486 = vrot.slane %v1344, %v1485
      %v1487 = vlaneseq
      %v1488 = vshrl.u32 %v1487, 7
      %v1489 = vsub.s32 %v832, %v1488
      %v1490 = vrot.slane %v1347, %v1489
      %v1491 = vsel %vm837, %v1490, %v1486
      %v1492 = vsel %vm974, %v1356, %v1356
      %v1493 = vsel %vm976, %v1356, %v1492
      %v1494 = vsel %vm978, %v1356, %v1493
      %v1495 = vsel %vm980, %v1356, %v1494
      %v1496 = vsel %vm982, %v1356, %v1495
      %v1497 = vsel %vm984, %v1356, %v1496
      %v1498 = vsel %vm974, %v1365, %v1365
      %v1499 = vsel %vm976, %v1365, %v1498
      %v1500 = vsel %vm978, %v1365, %v1499
      %v1501 = vsel %vm980, %v1365, %v1500
      %v1502 = vsel %vm982, %v1365, %v1501
      %v1503 = vsel %vm984, %v1365, %v1502
      %v1504 = vsel %vm974, %v1374, %v1374
      %v1505 = vsel %vm976, %v1374, %v1504
      %v1506 = vsel %vm978, %v1374, %v1505
      %v1507 = vsel %vm980, %v1374, %v1506
      %v1508 = vsel %vm982, %v1374, %v1507
      %v1509 = vsel %vm984, %v1374, %v1508
      %v1510 = vsel %vm974, %v1383, %v1383
      %v1511 = vsel %vm976, %v1383, %v1510
      %v1512 = vsel %vm978, %v1383, %v1511
      %v1513 = vsel %vm980, %v1383, %v1512
      %v1514 = vsel %vm982, %v1383, %v1513
      %v1515 = vsel %vm984, %v1383, %v1514
      %v1516 = vsel %vm974, %v1392, %v1392
      %v1517 = vsel %vm976, %v1392, %v1516
      %v1518 = vsel %vm978, %v1392, %v1517
      %v1519 = vsel %vm980, %v1392, %v1518
      %v1520 = vsel %vm982, %v1392, %v1519
      %v1521 = vsel %vm984, %v1392, %v1520
      %v1522 = vsel %vm974, %v1401, %v1401
      %v1523 = vsel %vm976, %v1401, %v1522
      %v1524 = vsel %vm978, %v1401, %v1523
      %v1525 = vsel %vm980, %v1401, %v1524
      %v1526 = vsel %vm982, %v1401, %v1525
      %v1527 = vsel %vm984, %v1401, %v1526
      %v1528 = vsel %vm974, %v1410, %v1410
      %v1529 = vsel %vm976, %v1410, %v1528
      %v1530 = vsel %vm978, %v1410, %v1529
      %v1531 = vsel %vm980, %v1410, %v1530
      %v1532 = vsel %vm982, %v1410, %v1531
      %v1533 = vsel %vm984, %v1410, %v1532
      %v1534 = vsel %vm974, %v1419, %v1419
      %v1535 = vsel %vm976, %v1419, %v1534
      %v1536 = vsel %vm978, %v1419, %v1535
      %v1537 = vsel %vm980, %v1419, %v1536
      %v1538 = vsel %vm982, %v1419, %v1537
      %v1539 = vsel %vm984, %v1419, %v1538
      %v1540 = vsel %vm974, %v1428, %v1428
      %v1541 = vsel %vm976, %v1428, %v1540
      %v1542 = vsel %vm978, %v1428, %v1541
      %v1543 = vsel %vm980, %v1428, %v1542
      %v1544 = vsel %vm982, %v1428, %v1543
      %v1545 = vsel %vm984, %v1428, %v1544
      %v1546 = vsel %vm974, %v1437, %v1437
      %v1547 = vsel %vm976, %v1437, %v1546
      %v1548 = vsel %vm978, %v1437, %v1547
      %v1549 = vsel %vm980, %v1437, %v1548
      %v1550 = vsel %vm982, %v1437, %v1549
      %v1551 = vsel %vm984, %v1437, %v1550
      %v1552 = vsel %vm974, %v1446, %v1446
      %v1553 = vsel %vm976, %v1446, %v1552
      %v1554 = vsel %vm978, %v1446, %v1553
      %v1555 = vsel %vm980, %v1446, %v1554
      %v1556 = vsel %vm982, %v1446, %v1555
      %v1557 = vsel %vm984, %v1446, %v1556
      %v1558 = vsel %vm974, %v1455, %v1455
      %v1559 = vsel %vm976, %v1455, %v1558
      %v1560 = vsel %vm978, %v1455, %v1559
      %v1561 = vsel %vm980, %v1455, %v1560
      %v1562 = vsel %vm982, %v1455, %v1561
      %v1563 = vsel %vm984, %v1455, %v1562
      %v1564 = vsel %vm974, %v1464, %v1464
      %v1565 = vsel %vm976, %v1464, %v1564
      %v1566 = vsel %vm978, %v1464, %v1565
      %v1567 = vsel %vm980, %v1464, %v1566
      %v1568 = vsel %vm982, %v1464, %v1567
      %v1569 = vsel %vm984, %v1464, %v1568
      %v1570 = vsel %vm974, %v1473, %v1473
      %v1571 = vsel %vm976, %v1473, %v1570
      %v1572 = vsel %vm978, %v1473, %v1571
      %v1573 = vsel %vm980, %v1473, %v1572
      %v1574 = vsel %vm982, %v1473, %v1573
      %v1575 = vsel %vm984, %v1473, %v1574
      %v1576 = vsel %vm974, %v1482, %v1482
      %v1577 = vsel %vm976, %v1482, %v1576
      %v1578 = vsel %vm978, %v1482, %v1577
      %v1579 = vsel %vm980, %v1482, %v1578
      %v1580 = vsel %vm982, %v1482, %v1579
      %v1581 = vsel %vm984, %v1482, %v1580
      %v1582 = vsel %vm974, %v1491, %v1491
      %v1583 = vsel %vm976, %v1491, %v1582
      %v1584 = vsel %vm978, %v1491, %v1583
      %v1585 = vsel %vm980, %v1491, %v1584
      %v1586 = vsel %vm982, %v1491, %v1585
      %v1587 = vsel %vm984, %v1491, %v1586
      %v1604 = vmul.f32 %v1126, %v1497
      %v1605 = vmul.f32 %v1130, %v1497
      %v1606 = vmul.f32 %v1134, %v1503
      %v1607 = vmul.f32 %v1138, %v1503
      %v1608 = vmul.f32 %v1142, %v1509
      %v1609 = vmul.f32 %v1146, %v1509
      %v1610 = vmul.f32 %v1150, %v1515
      %v1611 = vmul.f32 %v1154, %v1515
      %v1612 = vmul.f32 %v1158, %v1521
      %v1613 = vmul.f32 %v1162, %v1521
      %v1614 = vmul.f32 %v1166, %v1527
      %v1615 = vmul.f32 %v1170, %v1527
      %v1616 = vmul.f32 %v1174, %v1533
      %v1617 = vmul.f32 %v1178, %v1533
      %v1618 = vmul.f32 %v1182, %v1539
      %v1619 = vmul.f32 %v1186, %v1539
      %v1620 = vmul.f32 %v1190, %v1545
      %v1621 = vmul.f32 %v1194, %v1545
      %v1622 = vmul.f32 %v1198, %v1551
      %v1623 = vmul.f32 %v1202, %v1551
      %v1624 = vmul.f32 %v1206, %v1557
      %v1625 = vmul.f32 %v1210, %v1557
      %v1626 = vmul.f32 %v1214, %v1563
      %v1627 = vmul.f32 %v1218, %v1563
      %v1628 = vmul.f32 %v1222, %v1569
      %v1629 = vmul.f32 %v1226, %v1569
      %v1630 = vmul.f32 %v1230, %v1575
      %v1631 = vmul.f32 %v1234, %v1575
      %v1632 = vmul.f32 %v1238, %v1581
      %v1633 = vmul.f32 %v1242, %v1581
      %v1634 = vmul.f32 %v1246, %v1587
      %v1635 = vmul.f32 %v1250, %v1587
      %v1636 = vadd.f32 %v1092, %v1604
      %v1637 = vadd.f32 %v1093, %v1605
      %v1638 = vadd.f32 %v1094, %v1606
      %v1639 = vadd.f32 %v1095, %v1607
      %v1640 = vadd.f32 %v1096, %v1608
      %v1641 = vadd.f32 %v1097, %v1609
      %v1642 = vadd.f32 %v1098, %v1610
      %v1643 = vadd.f32 %v1099, %v1611
      %v1644 = vadd.f32 %v1100, %v1612
      %v1645 = vadd.f32 %v1101, %v1613
      %v1646 = vadd.f32 %v1102, %v1614
      %v1647 = vadd.f32 %v1103, %v1615
      %v1648 = vadd.f32 %v1104, %v1616
      %v1649 = vadd.f32 %v1105, %v1617
      %v1650 = vadd.f32 %v1106, %v1618
      %v1651 = vadd.f32 %v1107, %v1619
      %v1652 = vadd.f32 %v1108, %v1620
      %v1653 = vadd.f32 %v1109, %v1621
      %v1654 = vadd.f32 %v1110, %v1622
      %v1655 = vadd.f32 %v1111, %v1623
      %v1656 = vadd.f32 %v1112, %v1624
      %v1657 = vadd.f32 %v1113, %v1625
      %v1658 = vadd.f32 %v1114, %v1626
      %v1659 = vadd.f32 %v1115, %v1627
      %v1660 = vadd.f32 %v1116, %v1628
      %v1661 = vadd.f32 %v1117, %v1629
      %v1662 = vadd.f32 %v1118, %v1630
      %v1663 = vadd.f32 %v1119, %v1631
      %v1664 = vadd.f32 %v1120, %v1632
      %v1665 = vadd.f32 %v1121, %v1633
      %v1666 = vadd.f32 %v1122, %v1634
      %v1667 = vadd.f32 %v1123, %v1635
      %v1668 = vsel %vm248, %v1636, -inf
      %1669 = vmax.xlane.f32.xlu0 %v1668
      %v1670 = vpop.xlane.xlu0 %1669
      %v1671 = vsel %vm248, %v1637, -inf
      %1672 = vmax.xlane.f32.xlu0 %v1671
      %v1673 = vpop.xlane.xlu0 %1672
      %v1674 = vsel %vm248, %v1638, -inf
      %1675 = vmax.xlane.f32.xlu0 %v1674
      %v1676 = vpop.xlane.xlu0 %1675
      %v1677 = vsel %vm248, %v1639, -inf
      %1678 = vmax.xlane.f32.xlu0 %v1677
      %v1679 = vpop.xlane.xlu0 %1678
      %v1680 = vsel %vm248, %v1640, -inf
      %1681 = vmax.xlane.f32.xlu0 %v1680
      %v1682 = vpop.xlane.xlu0 %1681
      %v1683 = vsel %vm248, %v1641, -inf
      %1684 = vmax.xlane.f32.xlu0 %v1683
      %v1685 = vpop.xlane.xlu0 %1684
      %v1686 = vsel %vm248, %v1642, -inf
      %1687 = vmax.xlane.f32.xlu0 %v1686
      %v1688 = vpop.xlane.xlu0 %1687
      %v1689 = vsel %vm248, %v1643, -inf
      %1690 = vmax.xlane.f32.xlu0 %v1689
      %v1691 = vpop.xlane.xlu0 %1690
      %v1692 = vsel %vm248, %v1644, -inf
      %1693 = vmax.xlane.f32.xlu0 %v1692
      %v1694 = vpop.xlane.xlu0 %1693
      %v1695 = vsel %vm248, %v1645, -inf
      %1696 = vmax.xlane.f32.xlu0 %v1695
      %v1697 = vpop.xlane.xlu0 %1696
      %v1698 = vsel %vm248, %v1646, -inf
      %1699 = vmax.xlane.f32.xlu0 %v1698
      %v1700 = vpop.xlane.xlu0 %1699
      %v1701 = vsel %vm248, %v1647, -inf
      %1702 = vmax.xlane.f32.xlu0 %v1701
      %v1703 = vpop.xlane.xlu0 %1702
      %v1704 = vsel %vm248, %v1648, -inf
      %1705 = vmax.xlane.f32.xlu0 %v1704
      %v1706 = vpop.xlane.xlu0 %1705
      %v1707 = vsel %vm248, %v1649, -inf
      %1708 = vmax.xlane.f32.xlu0 %v1707
      %v1709 = vpop.xlane.xlu0 %1708
      %v1710 = vsel %vm248, %v1650, -inf
      %1711 = vmax.xlane.f32.xlu0 %v1710
      %v1712 = vpop.xlane.xlu0 %1711
      %v1713 = vsel %vm248, %v1651, -inf
      %1714 = vmax.xlane.f32.xlu0 %v1713
      %v1715 = vpop.xlane.xlu0 %1714
      %v1716 = vsel %vm248, %v1652, -inf
      %1717 = vmax.xlane.f32.xlu0 %v1716
      %v1718 = vpop.xlane.xlu0 %1717
      %v1719 = vsel %vm248, %v1653, -inf
      %1720 = vmax.xlane.f32.xlu0 %v1719
      %v1721 = vpop.xlane.xlu0 %1720
      %v1722 = vsel %vm248, %v1654, -inf
      %1723 = vmax.xlane.f32.xlu0 %v1722
      %v1724 = vpop.xlane.xlu0 %1723
      %v1725 = vsel %vm248, %v1655, -inf
      %1726 = vmax.xlane.f32.xlu0 %v1725
      %v1727 = vpop.xlane.xlu0 %1726
      %v1728 = vsel %vm248, %v1656, -inf
      %1729 = vmax.xlane.f32.xlu0 %v1728
      %v1730 = vpop.xlane.xlu0 %1729
      %v1731 = vsel %vm248, %v1657, -inf
      %1732 = vmax.xlane.f32.xlu0 %v1731
      %v1733 = vpop.xlane.xlu0 %1732
      %v1734 = vsel %vm248, %v1658, -inf
      %1735 = vmax.xlane.f32.xlu0 %v1734
      %v1736 = vpop.xlane.xlu0 %1735
      %v1737 = vsel %vm248, %v1659, -inf
      %1738 = vmax.xlane.f32.xlu0 %v1737
      %v1739 = vpop.xlane.xlu0 %1738
      %v1740 = vsel %vm248, %v1660, -inf
      %1741 = vmax.xlane.f32.xlu0 %v1740
      %v1742 = vpop.xlane.xlu0 %1741
      %v1743 = vsel %vm248, %v1661, -inf
      %1744 = vmax.xlane.f32.xlu0 %v1743
      %v1745 = vpop.xlane.xlu0 %1744
      %v1746 = vsel %vm248, %v1662, -inf
      %1747 = vmax.xlane.f32.xlu0 %v1746
      %v1748 = vpop.xlane.xlu0 %1747
      %v1749 = vsel %vm248, %v1663, -inf
      %1750 = vmax.xlane.f32.xlu0 %v1749
      %v1751 = vpop.xlane.xlu0 %1750
      %v1752 = vsel %vm248, %v1664, -inf
      %1753 = vmax.xlane.f32.xlu0 %v1752
      %v1754 = vpop.xlane.xlu0 %1753
      %v1755 = vsel %vm248, %v1665, -inf
      %1756 = vmax.xlane.f32.xlu0 %v1755
      %v1757 = vpop.xlane.xlu0 %1756
      %v1758 = vsel %vm248, %v1666, -inf
      %1759 = vmax.xlane.f32.xlu0 %v1758
      %v1760 = vpop.xlane.xlu0 %1759
      %v1761 = vsel %vm248, %v1667, -inf
      %1762 = vmax.xlane.f32.xlu0 %v1761
      %v1763 = vpop.xlane.xlu0 %1762
      %v1764 = vsub.f32 %v1636, %v1670
      %v1765 = vsub.f32 %v1637, %v1673
      %v1766 = vsub.f32 %v1638, %v1676
      %v1767 = vsub.f32 %v1639, %v1679
      %v1768 = vsub.f32 %v1640, %v1682
      %v1769 = vsub.f32 %v1641, %v1685
      %v1770 = vsub.f32 %v1642, %v1688
      %v1771 = vsub.f32 %v1643, %v1691
      %v1772 = vsub.f32 %v1644, %v1694
      %v1773 = vsub.f32 %v1645, %v1697
      %v1774 = vsub.f32 %v1646, %v1700
      %v1775 = vsub.f32 %v1647, %v1703
      %v1776 = vsub.f32 %v1648, %v1706
      %v1777 = vsub.f32 %v1649, %v1709
      %v1778 = vsub.f32 %v1650, %v1712
      %v1779 = vsub.f32 %v1651, %v1715
      %v1780 = vsub.f32 %v1652, %v1718
      %v1781 = vsub.f32 %v1653, %v1721
      %v1782 = vsub.f32 %v1654, %v1724
      %v1783 = vsub.f32 %v1655, %v1727
      %v1784 = vsub.f32 %v1656, %v1730
      %v1785 = vsub.f32 %v1657, %v1733
      %v1786 = vsub.f32 %v1658, %v1736
      %v1787 = vsub.f32 %v1659, %v1739
      %v1788 = vsub.f32 %v1660, %v1742
      %v1789 = vsub.f32 %v1661, %v1745
      %v1790 = vsub.f32 %v1662, %v1748
      %v1791 = vsub.f32 %v1663, %v1751
      %v1792 = vsub.f32 %v1664, %v1754
      %v1793 = vsub.f32 %v1665, %v1757
      %v1794 = vsub.f32 %v1666, %v1760
      %v1795 = vsub.f32 %v1667, %v1763
      %v1796 = vmul.f32 %v1764, 1.442695
      %v1797 = vpow.pop %v1796
      %v1798 = vmul.f32 %v1765, 1.442695
      %v1799 = vpow.pop %v1798
      %v1800 = vmul.f32 %v1766, 1.442695
      %v1801 = vpow.pop %v1800
      %v1802 = vmul.f32 %v1767, 1.442695
      %v1803 = vpow.pop %v1802
      %v1804 = vmul.f32 %v1768, 1.442695
      %v1805 = vpow.pop %v1804
      %v1806 = vmul.f32 %v1769, 1.442695
      %v1807 = vpow.pop %v1806
      %v1808 = vmul.f32 %v1770, 1.442695
      %v1809 = vpow.pop %v1808
      %v1810 = vmul.f32 %v1771, 1.442695
      %v1811 = vpow.pop %v1810
      %v1812 = vmul.f32 %v1772, 1.442695
      %v1813 = vpow.pop %v1812
      %v1814 = vmul.f32 %v1773, 1.442695
      %v1815 = vpow.pop %v1814
      %v1816 = vmul.f32 %v1774, 1.442695
      %v1817 = vpow.pop %v1816
      %v1818 = vmul.f32 %v1775, 1.442695
      %v1819 = vpow.pop %v1818
      %v1820 = vmul.f32 %v1776, 1.442695
      %v1821 = vpow.pop %v1820
      %v1822 = vmul.f32 %v1777, 1.442695
      %v1823 = vpow.pop %v1822
      %v1824 = vmul.f32 %v1778, 1.442695
      %v1825 = vpow.pop %v1824
      %v1826 = vmul.f32 %v1779, 1.442695
      %v1827 = vpow.pop %v1826
      %v1828 = vmul.f32 %v1780, 1.442695
      %v1829 = vpow.pop %v1828
      %v1830 = vmul.f32 %v1781, 1.442695
      %v1831 = vpow.pop %v1830
      %v1832 = vmul.f32 %v1782, 1.442695
      %v1833 = vpow.pop %v1832
      %v1834 = vmul.f32 %v1783, 1.442695
      %v1835 = vpow.pop %v1834
      %v1836 = vmul.f32 %v1784, 1.442695
      %v1837 = vpow.pop %v1836
      %v1838 = vmul.f32 %v1785, 1.442695
      %v1839 = vpow.pop %v1838
      %v1840 = vmul.f32 %v1786, 1.442695
      %v1841 = vpow.pop %v1840
      %v1842 = vmul.f32 %v1787, 1.442695
      %v1843 = vpow.pop %v1842
      %v1844 = vmul.f32 %v1788, 1.442695
      %v1845 = vpow.pop %v1844
      %v1846 = vmul.f32 %v1789, 1.442695
      %v1847 = vpow.pop %v1846
      %v1848 = vmul.f32 %v1790, 1.442695
      %v1849 = vpow.pop %v1848
      %v1850 = vmul.f32 %v1791, 1.442695
      %v1851 = vpow.pop %v1850
      %v1852 = vmul.f32 %v1792, 1.442695
      %v1853 = vpow.pop %v1852
      %v1854 = vmul.f32 %v1793, 1.442695
      %v1855 = vpow.pop %v1854
      %v1856 = vmul.f32 %v1794, 1.442695
      %v1857 = vpow.pop %v1856
      %v1858 = vmul.f32 %v1795, 1.442695
      %v1859 = vpow.pop %v1858
      %v1860 = vsel %vm248, %v1797, 0.0
      %1861 = vadd.xlane.f32.xlu0 %v1860
      %v1862 = vpop.xlane.xlu0 %1861
      %v1863 = vsel %vm248, %v1799, 0.0
      %1864 = vadd.xlane.f32.xlu0 %v1863
      %v1865 = vpop.xlane.xlu0 %1864
      %v1866 = vsel %vm248, %v1801, 0.0
      %1867 = vadd.xlane.f32.xlu0 %v1866
      %v1868 = vpop.xlane.xlu0 %1867
      %v1869 = vsel %vm248, %v1803, 0.0
      %1870 = vadd.xlane.f32.xlu0 %v1869
      %v1871 = vpop.xlane.xlu0 %1870
      %v1872 = vsel %vm248, %v1805, 0.0
      %1873 = vadd.xlane.f32.xlu0 %v1872
      %v1874 = vpop.xlane.xlu0 %1873
      %v1875 = vsel %vm248, %v1807, 0.0
      %1876 = vadd.xlane.f32.xlu0 %v1875
      %v1877 = vpop.xlane.xlu0 %1876
      %v1878 = vsel %vm248, %v1809, 0.0
      %1879 = vadd.xlane.f32.xlu0 %v1878
      %v1880 = vpop.xlane.xlu0 %1879
      %v1881 = vsel %vm248, %v1811, 0.0
      %1882 = vadd.xlane.f32.xlu0 %v1881
      %v1883 = vpop.xlane.xlu0 %1882
      %v1884 = vsel %vm248, %v1813, 0.0
      %1885 = vadd.xlane.f32.xlu0 %v1884
      %v1886 = vpop.xlane.xlu0 %1885
      %v1887 = vsel %vm248, %v1815, 0.0
      %1888 = vadd.xlane.f32.xlu0 %v1887
      %v1889 = vpop.xlane.xlu0 %1888
      %v1890 = vsel %vm248, %v1817, 0.0
      %1891 = vadd.xlane.f32.xlu0 %v1890
      %v1892 = vpop.xlane.xlu0 %1891
      %v1893 = vsel %vm248, %v1819, 0.0
      %1894 = vadd.xlane.f32.xlu0 %v1893
      %v1895 = vpop.xlane.xlu0 %1894
      %v1896 = vsel %vm248, %v1821, 0.0
      %1897 = vadd.xlane.f32.xlu0 %v1896
      %v1898 = vpop.xlane.xlu0 %1897
      %v1899 = vsel %vm248, %v1823, 0.0
      %1900 = vadd.xlane.f32.xlu0 %v1899
      %v1901 = vpop.xlane.xlu0 %1900
      %v1902 = vsel %vm248, %v1825, 0.0
      %1903 = vadd.xlane.f32.xlu0 %v1902
      %v1904 = vpop.xlane.xlu0 %1903
      %v1905 = vsel %vm248, %v1827, 0.0
      %1906 = vadd.xlane.f32.xlu0 %v1905
      %v1907 = vpop.xlane.xlu0 %1906
      %v1908 = vsel %vm248, %v1829, 0.0
      %1909 = vadd.xlane.f32.xlu0 %v1908
      %v1910 = vpop.xlane.xlu0 %1909
      %v1911 = vsel %vm248, %v1831, 0.0
      %1912 = vadd.xlane.f32.xlu0 %v1911
      %v1913 = vpop.xlane.xlu0 %1912
      %v1914 = vsel %vm248, %v1833, 0.0
      %1915 = vadd.xlane.f32.xlu0 %v1914
      %v1916 = vpop.xlane.xlu0 %1915
      %v1917 = vsel %vm248, %v1835, 0.0
      %1918 = vadd.xlane.f32.xlu0 %v1917
      %v1919 = vpop.xlane.xlu0 %1918
      %v1920 = vsel %vm248, %v1837, 0.0
      %1921 = vadd.xlane.f32.xlu0 %v1920
      %v1922 = vpop.xlane.xlu0 %1921
      %v1923 = vsel %vm248, %v1839, 0.0
      %1924 = vadd.xlane.f32.xlu0 %v1923
      %v1925 = vpop.xlane.xlu0 %1924
      %v1926 = vsel %vm248, %v1841, 0.0
      %1927 = vadd.xlane.f32.xlu0 %v1926
      %v1928 = vpop.xlane.xlu0 %1927
      %v1929 = vsel %vm248, %v1843, 0.0
      %1930 = vadd.xlane.f32.xlu0 %v1929
      %v1931 = vpop.xlane.xlu0 %1930
      %v1932 = vsel %vm248, %v1845, 0.0
      %1933 = vadd.xlane.f32.xlu0 %v1932
      %v1934 = vpop.xlane.xlu0 %1933
      %v1935 = vsel %vm248, %v1847, 0.0
      %1936 = vadd.xlane.f32.xlu0 %v1935
      %v1937 = vpop.xlane.xlu0 %1936
      %v1938 = vsel %vm248, %v1849, 0.0
      %1939 = vadd.xlane.f32.xlu0 %v1938
      %v1940 = vpop.xlane.xlu0 %1939
      %v1941 = vsel %vm248, %v1851, 0.0
      %1942 = vadd.xlane.f32.xlu0 %v1941
      %v1943 = vpop.xlane.xlu0 %1942
      %v1944 = vsel %vm248, %v1853, 0.0
      %1945 = vadd.xlane.f32.xlu0 %v1944
      %v1946 = vpop.xlane.xlu0 %1945
      %v1947 = vsel %vm248, %v1855, 0.0
      %1948 = vadd.xlane.f32.xlu0 %v1947
      %v1949 = vpop.xlane.xlu0 %1948
      %v1950 = vsel %vm248, %v1857, 0.0
      %1951 = vadd.xlane.f32.xlu0 %v1950
      %v1952 = vpop.xlane.xlu0 %1951
      %v1953 = vsel %vm248, %v1859, 0.0
      %1954 = vadd.xlane.f32.xlu0 %v1953
      %v1955 = vpop.xlane.xlu0 %1954
      %v1956 = vrcp.pop %v1862
      %v1957 = vrcp.pop %v1865
      %v1958 = vrcp.pop %v1868
      %v1959 = vrcp.pop %v1871
      %v1960 = vrcp.pop %v1874
      %v1961 = vrcp.pop %v1877
      %v1962 = vrcp.pop %v1880
      %v1963 = vrcp.pop %v1883
      %v1964 = vrcp.pop %v1886
      %v1965 = vrcp.pop %v1889
      %v1966 = vrcp.pop %v1892
      %v1967 = vrcp.pop %v1895
      %v1968 = vrcp.pop %v1898
      %v1969 = vrcp.pop %v1901
      %v1970 = vrcp.pop %v1904
      %v1971 = vrcp.pop %v1907
      %v1972 = vrcp.pop %v1910
      %v1973 = vrcp.pop %v1913
      %v1974 = vrcp.pop %v1916
      %v1975 = vrcp.pop %v1919
      %v1976 = vrcp.pop %v1922
      %v1977 = vrcp.pop %v1925
      %v1978 = vrcp.pop %v1928
      %v1979 = vrcp.pop %v1931
      %v1980 = vrcp.pop %v1934
      %v1981 = vrcp.pop %v1937
      %v1982 = vrcp.pop %v1940
      %v1983 = vrcp.pop %v1943
      %v1984 = vrcp.pop %v1946
      %v1985 = vrcp.pop %v1949
      %v1986 = vrcp.pop %v1952
      %v1987 = vrcp.pop %v1955
      %v1988 = vmul.f32 %v1797, %v1956
      %v1989 = vmul.f32 %v1799, %v1957
      %v1990 = vmul.f32 %v1801, %v1958
      %v1991 = vmul.f32 %v1803, %v1959
      %v1992 = vmul.f32 %v1805, %v1960
      %v1993 = vmul.f32 %v1807, %v1961
      %v1994 = vmul.f32 %v1809, %v1962
      %v1995 = vmul.f32 %v1811, %v1963
      %v1996 = vmul.f32 %v1813, %v1964
      %v1997 = vmul.f32 %v1815, %v1965
      %v1998 = vmul.f32 %v1817, %v1966
      %v1999 = vmul.f32 %v1819, %v1967
      %v2000 = vmul.f32 %v1821, %v1968
      %v2001 = vmul.f32 %v1823, %v1969
      %v2002 = vmul.f32 %v1825, %v1970
      %v2003 = vmul.f32 %v1827, %v1971
      %v2004 = vmul.f32 %v1829, %v1972
      %v2005 = vmul.f32 %v1831, %v1973
      %v2006 = vmul.f32 %v1833, %v1974
      %v2007 = vmul.f32 %v1835, %v1975
      %v2008 = vmul.f32 %v1837, %v1976
      %v2009 = vmul.f32 %v1839, %v1977
      %v2010 = vmul.f32 %v1841, %v1978
      %v2011 = vmul.f32 %v1843, %v1979
      %v2012 = vmul.f32 %v1845, %v1980
      %v2013 = vmul.f32 %v1847, %v1981
      %v2014 = vmul.f32 %v1849, %v1982
      %v2015 = vmul.f32 %v1851, %v1983
      %v2016 = vmul.f32 %v1853, %v1984
      %v2017 = vmul.f32 %v1855, %v1985
      %v2018 = vmul.f32 %v1857, %v1986
      %v2019 = vmul.f32 %v1859, %v1987
      %2020 = vrot.lane.b32.xlu0 %v412, 124
      %v2021 = vpop.permute.xlu0 %2020
      %2022 = vrot.lane.b32.xlu0 %v417, 124
      %v2023 = vpop.permute.xlu0 %2022
      %v2027 = vsel %vm248, %v1988, 0
      %v2030 = vsel %vm248, %v1989, 0
      %2032 = vmatprep.subr.mxu0 0.0
      %2033 = vmatpush1.msra.mxu0 %v2021
      %2034 = vmatprep.subr.mxu0 0.0
      %2035 = vmatpush1.msra.mxu0 %v2023
      %2036 = vmatprep.subr.mxu0 0.0
      %2037 = vmatpush1.msra.mxu0 0.0
      %2038 = vmatprep.subr.mxu0 0.0
      %2039 = vmatpush1.msra.mxu0 0.0
      %2040 = vmatprep.subr.mxu0 0.0
      %2041 = vmatpush1.msra.mxu0 0.0
      %2042 = vmatprep.subr.mxu0 0.0
      %2043 = vmatpush1.msra.mxu0 0.0
      %2044 = vmatprep.subr.mxu0 0.0
      %2045 = vmatpush1.msra.mxu0 0.0
      %2046 = vmatprep.subr.mxu0 0.0
      %2047 = vmatpush1.msra.mxu0 0.0
      %2048 = vmatprep.subr.mxu0 0.0
      %2049 = vmatpush1.msra.mxu0 0.0
      %2050 = vmatprep.subr.mxu0 0.0
      %2051 = vmatpush1.msra.mxu0 0.0
      %2052 = vmatprep.subr.mxu0 0.0
      %2053 = vmatpush1.msra.mxu0 0.0
      %2054 = vmatprep.subr.mxu0 0.0
      %2055 = vmatpush1.msra.mxu0 0.0
      %2056 = vmatprep.subr.mxu0 0.0
      %2057 = vmatpush1.msra.mxu0 0.0
      %2058 = vmatprep.subr.mxu0 0.0
      %2059 = vmatpush1.msra.mxu0 0.0
      %2060 = vmatprep.subr.mxu0 0.0
      %2061 = vmatpush1.msra.mxu0 0.0
      %2062 = vmatprep.subr.mxu0 0.0
      %2063 = vmatpush1.msra.mxu0 0.0
      %2064 = vmatprep.subr.mxu0 0.0
      %2065 = vmatpush1.msra.mxu0 0.0
      %2066 = vmatprep.subr.mxu0 0.0
      %2067 = vmatpush1.msra.mxu0 0.0
      %2068 = vmatprep.subr.mxu0 0.0
      %2069 = vmatpush1.msra.mxu0 0.0
      %2070 = vmatprep.subr.mxu0 0.0
      %2071 = vmatpush1.msra.mxu0 0.0
      %2072 = vmatprep.subr.mxu0 0.0
      %2073 = vmatpush1.msra.mxu0 0.0
      %2074 = vmatprep.subr.mxu0 0.0
      %2075 = vmatpush1.msra.mxu0 0.0
      %2076 = vmatprep.subr.mxu0 0.0
      %2077 = vmatpush1.msra.mxu0 0.0
      %2078 = vmatprep.subr.mxu0 0.0
      %2079 = vmatpush1.msra.mxu0 0.0
      %2080 = vmatprep.subr.mxu0 0.0
      %2081 = vmatpush1.msra.mxu0 0.0
      %2082 = vmatprep.subr.mxu0 0.0
      %2083 = vmatpush1.msra.mxu0 0.0
      %2084 = vmatprep.subr.mxu0 0.0
      %2085 = vmatpush1.msra.mxu0 0.0
      %2086 = vmatprep.subr.mxu0 0.0
      %2087 = vmatpush1.msra.mxu0 0.0
      %2088 = vmatprep.subr.mxu0 0.0
      %2089 = vmatpush1.msra.mxu0 0.0
      %2090 = vmatprep.subr.mxu0 0.0
      %2091 = vmatpush1.msra.mxu0 0.0
      %2092 = vmatprep.subr.mxu0 0.0
      %2093 = vmatpush1.msra.mxu0 0.0
      %2094 = vmatprep.subr.mxu0 0.0
      %2095 = vmatpush1.msra.mxu0 0.0
      %2096 = vmatprep.mubr.f32.mxu0 0.0
      %2097 = vmatmul.mubr.f32.gmra.mrb[0].mxu0 %v2027
      %v2098 = vpop.f32.mrb[0].mxu0
      %v2099 = vadd.f32 0.0, %v2098
      %v2100 = vpop.f32.mrb[0].mxu0
      %2101 = vmatprep.mubr.f32.mxu0 0.0
      %2102 = vmatmul.mubr.f32.gmra.mrb[0].mxu0 %v2030
      %v2103 = vpop.f32.mrb[0].mxu0
      %v2104 = vadd.f32 0.0, %v2103
      %v2105 = vpop.f32.mrb[0].mxu0
      %2106 = vdwg.mxu0
      %2107 = vrot.lane.b32.xlu0 %v422, 124
      %v2108 = vpop.permute.xlu0 %2107
      %2109 = vrot.lane.b32.xlu0 %v427, 124
      %v2110 = vpop.permute.xlu0 %2109
      %v2114 = vsel %vm248, %v1990, 0
      %v2117 = vsel %vm248, %v1991, 0
      %2119 = vmatprep.subr.mxu0 0.0
      %2120 = vmatpush1.msra.mxu0 %v2108
      %2121 = vmatprep.subr.mxu0 0.0
      %2122 = vmatpush1.msra.mxu0 %v2110
      %2123 = vmatprep.subr.mxu0 0.0
      %2124 = vmatpush1.msra.mxu0 0.0
      %2125 = vmatprep.subr.mxu0 0.0
      %2126 = vmatpush1.msra.mxu0 0.0
      %2127 = vmatprep.subr.mxu0 0.0
      %2128 = vmatpush1.msra.mxu0 0.0
      %2129 = vmatprep.subr.mxu0 0.0
      %2130 = vmatpush1.msra.mxu0 0.0
      %2131 = vmatprep.subr.mxu0 0.0
      %2132 = vmatpush1.msra.mxu0 0.0
      %2133 = vmatprep.subr.mxu0 0.0
      %2134 = vmatpush1.msra.mxu0 0.0
      %2135 = vmatprep.subr.mxu0 0.0
      %2136 = vmatpush1.msra.mxu0 0.0
      %2137 = vmatprep.subr.mxu0 0.0
      %2138 = vmatpush1.msra.mxu0 0.0
      %2139 = vmatprep.subr.mxu0 0.0
      %2140 = vmatpush1.msra.mxu0 0.0
      %2141 = vmatprep.subr.mxu0 0.0
      %2142 = vmatpush1.msra.mxu0 0.0
      %2143 = vmatprep.subr.mxu0 0.0
      %2144 = vmatpush1.msra.mxu0 0.0
      %2145 = vmatprep.subr.mxu0 0.0
      %2146 = vmatpush1.msra.mxu0 0.0
      %2147 = vmatprep.subr.mxu0 0.0
      %2148 = vmatpush1.msra.mxu0 0.0
      %2149 = vmatprep.subr.mxu0 0.0
      %2150 = vmatpush1.msra.mxu0 0.0
      %2151 = vmatprep.subr.mxu0 0.0
      %2152 = vmatpush1.msra.mxu0 0.0
      %2153 = vmatprep.subr.mxu0 0.0
      %2154 = vmatpush1.msra.mxu0 0.0
      %2155 = vmatprep.subr.mxu0 0.0
      %2156 = vmatpush1.msra.mxu0 0.0
      %2157 = vmatprep.subr.mxu0 0.0
      %2158 = vmatpush1.msra.mxu0 0.0
      %2159 = vmatprep.subr.mxu0 0.0
      %2160 = vmatpush1.msra.mxu0 0.0
      %2161 = vmatprep.subr.mxu0 0.0
      %2162 = vmatpush1.msra.mxu0 0.0
      %2163 = vmatprep.subr.mxu0 0.0
      %2164 = vmatpush1.msra.mxu0 0.0
      %2165 = vmatprep.subr.mxu0 0.0
      %2166 = vmatpush1.msra.mxu0 0.0
      %2167 = vmatprep.subr.mxu0 0.0
      %2168 = vmatpush1.msra.mxu0 0.0
      %2169 = vmatprep.subr.mxu0 0.0
      %2170 = vmatpush1.msra.mxu0 0.0
      %2171 = vmatprep.subr.mxu0 0.0
      %2172 = vmatpush1.msra.mxu0 0.0
      %2173 = vmatprep.subr.mxu0 0.0
      %2174 = vmatpush1.msra.mxu0 0.0
      %2175 = vmatprep.subr.mxu0 0.0
      %2176 = vmatpush1.msra.mxu0 0.0
      %2177 = vmatprep.subr.mxu0 0.0
      %2178 = vmatpush1.msra.mxu0 0.0
      %2179 = vmatprep.subr.mxu0 0.0
      %2180 = vmatpush1.msra.mxu0 0.0
      %2181 = vmatprep.subr.mxu0 0.0
      %2182 = vmatpush1.msra.mxu0 0.0
      %2183 = vmatprep.mubr.f32.mxu0 0.0
      %2184 = vmatmul.mubr.f32.gmra.mrb[0].mxu0 %v2114
      %v2185 = vpop.f32.mrb[0].mxu0
      %v2186 = vadd.f32 0.0, %v2185
      %v2187 = vpop.f32.mrb[0].mxu0
      %2188 = vmatprep.mubr.f32.mxu0 0.0
      %2189 = vmatmul.mubr.f32.gmra.mrb[0].mxu0 %v2117
      %v2190 = vpop.f32.mrb[0].mxu0
      %v2191 = vadd.f32 0.0, %v2190
      %v2192 = vpop.f32.mrb[0].mxu0
      %2193 = vdwg.mxu0
      %2194 = vrot.lane.b32.xlu0 %v432, 124
      %v2195 = vpop.permute.xlu0 %2194
      %2196 = vrot.lane.b32.xlu0 %v437, 124
      %v2197 = vpop.permute.xlu0 %2196
      %v2201 = vsel %vm248, %v1992, 0
      %v2204 = vsel %vm248, %v1993, 0
      %2206 = vmatprep.subr.mxu0 0.0
      %2207 = vmatpush1.msra.mxu0 %v2195
      %2208 = vmatprep.subr.mxu0 0.0
      %2209 = vmatpush1.msra.mxu0 %v2197
      %2210 = vmatprep.subr.mxu0 0.0
      %2211 = vmatpush1.msra.mxu0 0.0
      %2212 = vmatprep.subr.mxu0 0.0
      %2213 = vmatpush1.msra.mxu0 0.0
      %2214 = vmatprep.subr.mxu0 0.0
      %2215 = vmatpush1.msra.mxu0 0.0
      %2216 = vmatprep.subr.mxu0 0.0
      %2217 = vmatpush1.msra.mxu0 0.0
      %2218 = vmatprep.subr.mxu0 0.0
      %2219 = vmatpush1.msra.mxu0 0.0
      %2220 = vmatprep.subr.mxu0 0.0
      %2221 = vmatpush1.msra.mxu0 0.0
      %2222 = vmatprep.subr.mxu0 0.0
      %2223 = vmatpush1.msra.mxu0 0.0
      %2224 = vmatprep.subr.mxu0 0.0
      %2225 = vmatpush1.msra.mxu0 0.0
      %2226 = vmatprep.subr.mxu0 0.0
      %2227 = vmatpush1.msra.mxu0 0.0
      %2228 = vmatprep.subr.mxu0 0.0
      %2229 = vmatpush1.msra.mxu0 0.0
      %2230 = vmatprep.subr.mxu0 0.0
      %2231 = vmatpush1.msra.mxu0 0.0
      %2232 = vmatprep.subr.mxu0 0.0
      %2233 = vmatpush1.msra.mxu0 0.0
      %2234 = vmatprep.subr.mxu0 0.0
      %2235 = vmatpush1.msra.mxu0 0.0
      %2236 = vmatprep.subr.mxu0 0.0
      %2237 = vmatpush1.msra.mxu0 0.0
      %2238 = vmatprep.subr.mxu0 0.0
      %2239 = vmatpush1.msra.mxu0 0.0
      %2240 = vmatprep.subr.mxu0 0.0
      %2241 = vmatpush1.msra.mxu0 0.0
      %2242 = vmatprep.subr.mxu0 0.0
      %2243 = vmatpush1.msra.mxu0 0.0
      %2244 = vmatprep.subr.mxu0 0.0
      %2245 = vmatpush1.msra.mxu0 0.0
      %2246 = vmatprep.subr.mxu0 0.0
      %2247 = vmatpush1.msra.mxu0 0.0
      %2248 = vmatprep.subr.mxu0 0.0
      %2249 = vmatpush1.msra.mxu0 0.0
      %2250 = vmatprep.subr.mxu0 0.0
      %2251 = vmatpush1.msra.mxu0 0.0
      %2252 = vmatprep.subr.mxu0 0.0
      %2253 = vmatpush1.msra.mxu0 0.0
      %2254 = vmatprep.subr.mxu0 0.0
      %2255 = vmatpush1.msra.mxu0 0.0
      %2256 = vmatprep.subr.mxu0 0.0
      %2257 = vmatpush1.msra.mxu0 0.0
      %2258 = vmatprep.subr.mxu0 0.0
      %2259 = vmatpush1.msra.mxu0 0.0
      %2260 = vmatprep.subr.mxu0 0.0
      %2261 = vmatpush1.msra.mxu0 0.0
      %2262 = vmatprep.subr.mxu0 0.0
      %2263 = vmatpush1.msra.mxu0 0.0
      %2264 = vmatprep.subr.mxu0 0.0
      %2265 = vmatpush1.msra.mxu0 0.0
      %2266 = vmatprep.subr.mxu0 0.0
      %2267 = vmatpush1.msra.mxu0 0.0
      %2268 = vmatprep.subr.mxu0 0.0
      %2269 = vmatpush1.msra.mxu0 0.0
      %2270 = vmatprep.mubr.f32.mxu0 0.0
      %2271 = vmatmul.mubr.f32.gmra.mrb[0].mxu0 %v2201
      %v2272 = vpop.f32.mrb[0].mxu0
      %v2273 = vadd.f32 0.0, %v2272
      %v2274 = vpop.f32.mrb[0].mxu0
      %2275 = vmatprep.mubr.f32.mxu0 0.0
      %2276 = vmatmul.mubr.f32.gmra.mrb[0].mxu0 %v2204
      %v2277 = vpop.f32.mrb[0].mxu0
      %v2278 = vadd.f32 0.0, %v2277
      %v2279 = vpop.f32.mrb[0].mxu0
      %2280 = vdwg.mxu0
      %2281 = vrot.lane.b32.xlu0 %v442, 124
      %v2282 = vpop.permute.xlu0 %2281
      %2283 = vrot.lane.b32.xlu0 %v447, 124
      %v2284 = vpop.permute.xlu0 %2283
      %v2288 = vsel %vm248, %v1994, 0
      %v2291 = vsel %vm248, %v1995, 0
      %2293 = vmatprep.subr.mxu0 0.0
      %2294 = vmatpush1.msra.mxu0 %v2282
      %2295 = vmatprep.subr.mxu0 0.0
      %2296 = vmatpush1.msra.mxu0 %v2284
      %2297 = vmatprep.subr.mxu0 0.0
      %2298 = vmatpush1.msra.mxu0 0.0
      %2299 = vmatprep.subr.mxu0 0.0
      %2300 = vmatpush1.msra.mxu0 0.0
      %2301 = vmatprep.subr.mxu0 0.0
      %2302 = vmatpush1.msra.mxu0 0.0
      %2303 = vmatprep.subr.mxu0 0.0
      %2304 = vmatpush1.msra.mxu0 0.0
      %2305 = vmatprep.subr.mxu0 0.0
      %2306 = vmatpush1.msra.mxu0 0.0
      %2307 = vmatprep.subr.mxu0 0.0
      %2308 = vmatpush1.msra.mxu0 0.0
      %2309 = vmatprep.subr.mxu0 0.0
      %2310 = vmatpush1.msra.mxu0 0.0
      %2311 = vmatprep.subr.mxu0 0.0
      %2312 = vmatpush1.msra.mxu0 0.0
      %2313 = vmatprep.subr.mxu0 0.0
      %2314 = vmatpush1.msra.mxu0 0.0
      %2315 = vmatprep.subr.mxu0 0.0
      %2316 = vmatpush1.msra.mxu0 0.0
      %2317 = vmatprep.subr.mxu0 0.0
      %2318 = vmatpush1.msra.mxu0 0.0
      %2319 = vmatprep.subr.mxu0 0.0
      %2320 = vmatpush1.msra.mxu0 0.0
      %2321 = vmatprep.subr.mxu0 0.0
      %2322 = vmatpush1.msra.mxu0 0.0
      %2323 = vmatprep.subr.mxu0 0.0
      %2324 = vmatpush1.msra.mxu0 0.0
      %2325 = vmatprep.subr.mxu0 0.0
      %2326 = vmatpush1.msra.mxu0 0.0
      %2327 = vmatprep.subr.mxu0 0.0
      %2328 = vmatpush1.msra.mxu0 0.0
      %2329 = vmatprep.subr.mxu0 0.0
      %2330 = vmatpush1.msra.mxu0 0.0
      %2331 = vmatprep.subr.mxu0 0.0
      %2332 = vmatpush1.msra.mxu0 0.0
      %2333 = vmatprep.subr.mxu0 0.0
      %2334 = vmatpush1.msra.mxu0 0.0
      %2335 = vmatprep.subr.mxu0 0.0
      %2336 = vmatpush1.msra.mxu0 0.0
      %2337 = vmatprep.subr.mxu0 0.0
      %2338 = vmatpush1.msra.mxu0 0.0
      %2339 = vmatprep.subr.mxu0 0.0
      %2340 = vmatpush1.msra.mxu0 0.0
      %2341 = vmatprep.subr.mxu0 0.0
      %2342 = vmatpush1.msra.mxu0 0.0
      %2343 = vmatprep.subr.mxu0 0.0
      %2344 = vmatpush1.msra.mxu0 0.0
      %2345 = vmatprep.subr.mxu0 0.0
      %2346 = vmatpush1.msra.mxu0 0.0
      %2347 = vmatprep.subr.mxu0 0.0
      %2348 = vmatpush1.msra.mxu0 0.0
      %2349 = vmatprep.subr.mxu0 0.0
      %2350 = vmatpush1.msra.mxu0 0.0
      %2351 = vmatprep.subr.mxu0 0.0
      %2352 = vmatpush1.msra.mxu0 0.0
      %2353 = vmatprep.subr.mxu0 0.0
      %2354 = vmatpush1.msra.mxu0 0.0
      %2355 = vmatprep.subr.mxu0 0.0
      %2356 = vmatpush1.msra.mxu0 0.0
      %2357 = vmatprep.mubr.f32.mxu0 0.0
      %2358 = vmatmul.mubr.f32.gmra.mrb[0].mxu0 %v2288
      %v2359 = vpop.f32.mrb[0].mxu0
      %v2360 = vadd.f32 0.0, %v2359
      %v2361 = vpop.f32.mrb[0].mxu0
      %2362 = vmatprep.mubr.f32.mxu0 0.0
      %2363 = vmatmul.mubr.f32.gmra.mrb[0].mxu0 %v2291
      %v2364 = vpop.f32.mrb[0].mxu0
      %v2365 = vadd.f32 0.0, %v2364
      %v2366 = vpop.f32.mrb[0].mxu0
      %2367 = vdwg.mxu0
      %2368 = vrot.lane.b32.xlu0 %v452, 124
      %v2369 = vpop.permute.xlu0 %2368
      %2370 = vrot.lane.b32.xlu0 %v457, 124
      %v2371 = vpop.permute.xlu0 %2370
      %v2375 = vsel %vm248, %v1996, 0
      %v2378 = vsel %vm248, %v1997, 0
      %2380 = vmatprep.subr.mxu0 0.0
      %2381 = vmatpush1.msra.mxu0 %v2369
      %2382 = vmatprep.subr.mxu0 0.0
      %2383 = vmatpush1.msra.mxu0 %v2371
      %2384 = vmatprep.subr.mxu0 0.0
      %2385 = vmatpush1.msra.mxu0 0.0
      %2386 = vmatprep.subr.mxu0 0.0
      %2387 = vmatpush1.msra.mxu0 0.0
      %2388 = vmatprep.subr.mxu0 0.0
      %2389 = vmatpush1.msra.mxu0 0.0
      %2390 = vmatprep.subr.mxu0 0.0
      %2391 = vmatpush1.msra.mxu0 0.0
      %2392 = vmatprep.subr.mxu0 0.0
      %2393 = vmatpush1.msra.mxu0 0.0
      %2394 = vmatprep.subr.mxu0 0.0
      %2395 = vmatpush1.msra.mxu0 0.0
      %2396 = vmatprep.subr.mxu0 0.0
      %2397 = vmatpush1.msra.mxu0 0.0
      %2398 = vmatprep.subr.mxu0 0.0
      %2399 = vmatpush1.msra.mxu0 0.0
      %2400 = vmatprep.subr.mxu0 0.0
      %2401 = vmatpush1.msra.mxu0 0.0
      %2402 = vmatprep.subr.mxu0 0.0
      %2403 = vmatpush1.msra.mxu0 0.0
      %2404 = vmatprep.subr.mxu0 0.0
      %2405 = vmatpush1.msra.mxu0 0.0
      %2406 = vmatprep.subr.mxu0 0.0
      %2407 = vmatpush1.msra.mxu0 0.0
      %2408 = vmatprep.subr.mxu0 0.0
      %2409 = vmatpush1.msra.mxu0 0.0
      %2410 = vmatprep.subr.mxu0 0.0
      %2411 = vmatpush1.msra.mxu0 0.0
      %2412 = vmatprep.subr.mxu0 0.0
      %2413 = vmatpush1.msra.mxu0 0.0
      %2414 = vmatprep.subr.mxu0 0.0
      %2415 = vmatpush1.msra.mxu0 0.0
      %2416 = vmatprep.subr.mxu0 0.0
      %2417 = vmatpush1.msra.mxu0 0.0
      %2418 = vmatprep.subr.mxu0 0.0
      %2419 = vmatpush1.msra.mxu0 0.0
      %2420 = vmatprep.subr.mxu0 0.0
      %2421 = vmatpush1.msra.mxu0 0.0
      %2422 = vmatprep.subr.mxu0 0.0
      %2423 = vmatpush1.msra.mxu0 0.0
      %2424 = vmatprep.subr.mxu0 0.0
      %2425 = vmatpush1.msra.mxu0 0.0
      %2426 = vmatprep.subr.mxu0 0.0
      %2427 = vmatpush1.msra.mxu0 0.0
      %2428 = vmatprep.subr.mxu0 0.0
      %2429 = vmatpush1.msra.mxu0 0.0
      %2430 = vmatprep.subr.mxu0 0.0
      %2431 = vmatpush1.msra.mxu0 0.0
      %2432 = vmatprep.subr.mxu0 0.0
      %2433 = vmatpush1.msra.mxu0 0.0
      %2434 = vmatprep.subr.mxu0 0.0
      %2435 = vmatpush1.msra.mxu0 0.0
      %2436 = vmatprep.subr.mxu0 0.0
      %2437 = vmatpush1.msra.mxu0 0.0
      %2438 = vmatprep.subr.mxu0 0.0
      %2439 = vmatpush1.msra.mxu0 0.0
      %2440 = vmatprep.subr.mxu0 0.0
      %2441 = vmatpush1.msra.mxu0 0.0
      %2442 = vmatprep.subr.mxu0 0.0
      %2443 = vmatpush1.msra.mxu0 0.0
      %2444 = vmatprep.mubr.f32.mxu0 0.0
      %2445 = vmatmul.mubr.f32.gmra.mrb[0].mxu0 %v2375
      %v2446 = vpop.f32.mrb[0].mxu0
      %v2447 = vadd.f32 0.0, %v2446
      %v2448 = vpop.f32.mrb[0].mxu0
      %2449 = vmatprep.mubr.f32.mxu0 0.0
      %2450 = vmatmul.mubr.f32.gmra.mrb[0].mxu0 %v2378
      %v2451 = vpop.f32.mrb[0].mxu0
      %v2452 = vadd.f32 0.0, %v2451
      %v2453 = vpop.f32.mrb[0].mxu0
      %2454 = vdwg.mxu0
      %2455 = vrot.lane.b32.xlu0 %v462, 124
      %v2456 = vpop.permute.xlu0 %2455
      %2457 = vrot.lane.b32.xlu0 %v467, 124
      %v2458 = vpop.permute.xlu0 %2457
      %v2462 = vsel %vm248, %v1998, 0
      %v2465 = vsel %vm248, %v1999, 0
      %2467 = vmatprep.subr.mxu0 0.0
      %2468 = vmatpush1.msra.mxu0 %v2456
      %2469 = vmatprep.subr.mxu0 0.0
      %2470 = vmatpush1.msra.mxu0 %v2458
      %2471 = vmatprep.subr.mxu0 0.0
      %2472 = vmatpush1.msra.mxu0 0.0
      %2473 = vmatprep.subr.mxu0 0.0
      %2474 = vmatpush1.msra.mxu0 0.0
      %2475 = vmatprep.subr.mxu0 0.0
      %2476 = vmatpush1.msra.mxu0 0.0
      %2477 = vmatprep.subr.mxu0 0.0
      %2478 = vmatpush1.msra.mxu0 0.0
      %2479 = vmatprep.subr.mxu0 0.0
      %2480 = vmatpush1.msra.mxu0 0.0
      %2481 = vmatprep.subr.mxu0 0.0
      %2482 = vmatpush1.msra.mxu0 0.0
      %2483 = vmatprep.subr.mxu0 0.0
      %2484 = vmatpush1.msra.mxu0 0.0
      %2485 = vmatprep.subr.mxu0 0.0
      %2486 = vmatpush1.msra.mxu0 0.0
      %2487 = vmatprep.subr.mxu0 0.0
      %2488 = vmatpush1.msra.mxu0 0.0
      %2489 = vmatprep.subr.mxu0 0.0
      %2490 = vmatpush1.msra.mxu0 0.0
      %2491 = vmatprep.subr.mxu0 0.0
      %2492 = vmatpush1.msra.mxu0 0.0
      %2493 = vmatprep.subr.mxu0 0.0
      %2494 = vmatpush1.msra.mxu0 0.0
      %2495 = vmatprep.subr.mxu0 0.0
      %2496 = vmatpush1.msra.mxu0 0.0
      %2497 = vmatprep.subr.mxu0 0.0
      %2498 = vmatpush1.msra.mxu0 0.0
      %2499 = vmatprep.subr.mxu0 0.0
      %2500 = vmatpush1.msra.mxu0 0.0
      %2501 = vmatprep.subr.mxu0 0.0
      %2502 = vmatpush1.msra.mxu0 0.0
      %2503 = vmatprep.subr.mxu0 0.0
      %2504 = vmatpush1.msra.mxu0 0.0
      %2505 = vmatprep.subr.mxu0 0.0
      %2506 = vmatpush1.msra.mxu0 0.0
      %2507 = vmatprep.subr.mxu0 0.0
      %2508 = vmatpush1.msra.mxu0 0.0
      %2509 = vmatprep.subr.mxu0 0.0
      %2510 = vmatpush1.msra.mxu0 0.0
      %2511 = vmatprep.subr.mxu0 0.0
      %2512 = vmatpush1.msra.mxu0 0.0
      %2513 = vmatprep.subr.mxu0 0.0
      %2514 = vmatpush1.msra.mxu0 0.0
      %2515 = vmatprep.subr.mxu0 0.0
      %2516 = vmatpush1.msra.mxu0 0.0
      %2517 = vmatprep.subr.mxu0 0.0
      %2518 = vmatpush1.msra.mxu0 0.0
      %2519 = vmatprep.subr.mxu0 0.0
      %2520 = vmatpush1.msra.mxu0 0.0
      %2521 = vmatprep.subr.mxu0 0.0
      %2522 = vmatpush1.msra.mxu0 0.0
      %2523 = vmatprep.subr.mxu0 0.0
      %2524 = vmatpush1.msra.mxu0 0.0
      %2525 = vmatprep.subr.mxu0 0.0
      %2526 = vmatpush1.msra.mxu0 0.0
      %2527 = vmatprep.subr.mxu0 0.0
      %2528 = vmatpush1.msra.mxu0 0.0
      %2529 = vmatprep.subr.mxu0 0.0
      %2530 = vmatpush1.msra.mxu0 0.0
      %2531 = vmatprep.mubr.f32.mxu0 0.0
      %2532 = vmatmul.mubr.f32.gmra.mrb[0].mxu0 %v2462
      %v2533 = vpop.f32.mrb[0].mxu0
      %v2534 = vadd.f32 0.0, %v2533
      %v2535 = vpop.f32.mrb[0].mxu0
      %2536 = vmatprep.mubr.f32.mxu0 0.0
      %2537 = vmatmul.mubr.f32.gmra.mrb[0].mxu0 %v2465
      %v2538 = vpop.f32.mrb[0].mxu0
      %v2539 = vadd.f32 0.0, %v2538
      %v2540 = vpop.f32.mrb[0].mxu0
      %2541 = vdwg.mxu0
      %2542 = vrot.lane.b32.xlu0 %v472, 124
      %v2543 = vpop.permute.xlu0 %2542
      %2544 = vrot.lane.b32.xlu0 %v477, 124
      %v2545 = vpop.permute.xlu0 %2544
      %v2549 = vsel %vm248, %v2000, 0
      %v2552 = vsel %vm248, %v2001, 0
      %2554 = vmatprep.subr.mxu0 0.0
      %2555 = vmatpush1.msra.mxu0 %v2543
      %2556 = vmatprep.subr.mxu0 0.0
      %2557 = vmatpush1.msra.mxu0 %v2545
      %2558 = vmatprep.subr.mxu0 0.0
      %2559 = vmatpush1.msra.mxu0 0.0
      %2560 = vmatprep.subr.mxu0 0.0
      %2561 = vmatpush1.msra.mxu0 0.0
      %2562 = vmatprep.subr.mxu0 0.0
      %2563 = vmatpush1.msra.mxu0 0.0
      %2564 = vmatprep.subr.mxu0 0.0
      %2565 = vmatpush1.msra.mxu0 0.0
      %2566 = vmatprep.subr.mxu0 0.0
      %2567 = vmatpush1.msra.mxu0 0.0
      %2568 = vmatprep.subr.mxu0 0.0
      %2569 = vmatpush1.msra.mxu0 0.0
      %2570 = vmatprep.subr.mxu0 0.0
      %2571 = vmatpush1.msra.mxu0 0.0
      %2572 = vmatprep.subr.mxu0 0.0
      %2573 = vmatpush1.msra.mxu0 0.0
      %2574 = vmatprep.subr.mxu0 0.0
      %2575 = vmatpush1.msra.mxu0 0.0
      %2576 = vmatprep.subr.mxu0 0.0
      %2577 = vmatpush1.msra.mxu0 0.0
      %2578 = vmatprep.subr.mxu0 0.0
      %2579 = vmatpush1.msra.mxu0 0.0
      %2580 = vmatprep.subr.mxu0 0.0
      %2581 = vmatpush1.msra.mxu0 0.0
      %2582 = vmatprep.subr.mxu0 0.0
      %2583 = vmatpush1.msra.mxu0 0.0
      %2584 = vmatprep.subr.mxu0 0.0
      %2585 = vmatpush1.msra.mxu0 0.0
      %2586 = vmatprep.subr.mxu0 0.0
      %2587 = vmatpush1.msra.mxu0 0.0
      %2588 = vmatprep.subr.mxu0 0.0
      %2589 = vmatpush1.msra.mxu0 0.0
      %2590 = vmatprep.subr.mxu0 0.0
      %2591 = vmatpush1.msra.mxu0 0.0
      %2592 = vmatprep.subr.mxu0 0.0
      %2593 = vmatpush1.msra.mxu0 0.0
      %2594 = vmatprep.subr.mxu0 0.0
      %2595 = vmatpush1.msra.mxu0 0.0
      %2596 = vmatprep.subr.mxu0 0.0
      %2597 = vmatpush1.msra.mxu0 0.0
      %2598 = vmatprep.subr.mxu0 0.0
      %2599 = vmatpush1.msra.mxu0 0.0
      %2600 = vmatprep.subr.mxu0 0.0
      %2601 = vmatpush1.msra.mxu0 0.0
      %2602 = vmatprep.subr.mxu0 0.0
      %2603 = vmatpush1.msra.mxu0 0.0
      %2604 = vmatprep.subr.mxu0 0.0
      %2605 = vmatpush1.msra.mxu0 0.0
      %2606 = vmatprep.subr.mxu0 0.0
      %2607 = vmatpush1.msra.mxu0 0.0
      %2608 = vmatprep.subr.mxu0 0.0
      %2609 = vmatpush1.msra.mxu0 0.0
      %2610 = vmatprep.subr.mxu0 0.0
      %2611 = vmatpush1.msra.mxu0 0.0
      %2612 = vmatprep.subr.mxu0 0.0
      %2613 = vmatpush1.msra.mxu0 0.0
      %2614 = vmatprep.subr.mxu0 0.0
      %2615 = vmatpush1.msra.mxu0 0.0
      %2616 = vmatprep.subr.mxu0 0.0
      %2617 = vmatpush1.msra.mxu0 0.0
      %2618 = vmatprep.mubr.f32.mxu0 0.0
      %2619 = vmatmul.mubr.f32.gmra.mrb[0].mxu0 %v2549
      %v2620 = vpop.f32.mrb[0].mxu0
      %v2621 = vadd.f32 0.0, %v2620
      %v2622 = vpop.f32.mrb[0].mxu0
      %2623 = vmatprep.mubr.f32.mxu0 0.0
      %2624 = vmatmul.mubr.f32.gmra.mrb[0].mxu0 %v2552
      %v2625 = vpop.f32.mrb[0].mxu0
      %v2626 = vadd.f32 0.0, %v2625
      %v2627 = vpop.f32.mrb[0].mxu0
      %2628 = vdwg.mxu0
      %2629 = vrot.lane.b32.xlu0 %v482, 124
      %v2630 = vpop.permute.xlu0 %2629
      %2631 = vrot.lane.b32.xlu0 %v487, 124
      %v2632 = vpop.permute.xlu0 %2631
      %v2636 = vsel %vm248, %v2002, 0
      %v2639 = vsel %vm248, %v2003, 0
      %2641 = vmatprep.subr.mxu0 0.0
      %2642 = vmatpush1.msra.mxu0 %v2630
      %2643 = vmatprep.subr.mxu0 0.0
      %2644 = vmatpush1.msra.mxu0 %v2632
      %2645 = vmatprep.subr.mxu0 0.0
      %2646 = vmatpush1.msra.mxu0 0.0
      %2647 = vmatprep.subr.mxu0 0.0
      %2648 = vmatpush1.msra.mxu0 0.0
      %2649 = vmatprep.subr.mxu0 0.0
      %2650 = vmatpush1.msra.mxu0 0.0
      %2651 = vmatprep.subr.mxu0 0.0
      %2652 = vmatpush1.msra.mxu0 0.0
      %2653 = vmatprep.subr.mxu0 0.0
      %2654 = vmatpush1.msra.mxu0 0.0
      %2655 = vmatprep.subr.mxu0 0.0
      %2656 = vmatpush1.msra.mxu0 0.0
      %2657 = vmatprep.subr.mxu0 0.0
      %2658 = vmatpush1.msra.mxu0 0.0
      %2659 = vmatprep.subr.mxu0 0.0
      %2660 = vmatpush1.msra.mxu0 0.0
      %2661 = vmatprep.subr.mxu0 0.0
      %2662 = vmatpush1.msra.mxu0 0.0
      %2663 = vmatprep.subr.mxu0 0.0
      %2664 = vmatpush1.msra.mxu0 0.0
      %2665 = vmatprep.subr.mxu0 0.0
      %2666 = vmatpush1.msra.mxu0 0.0
      %2667 = vmatprep.subr.mxu0 0.0
      %2668 = vmatpush1.msra.mxu0 0.0
      %2669 = vmatprep.subr.mxu0 0.0
      %2670 = vmatpush1.msra.mxu0 0.0
      %2671 = vmatprep.subr.mxu0 0.0
      %2672 = vmatpush1.msra.mxu0 0.0
      %2673 = vmatprep.subr.mxu0 0.0
      %2674 = vmatpush1.msra.mxu0 0.0
      %2675 = vmatprep.subr.mxu0 0.0
      %2676 = vmatpush1.msra.mxu0 0.0
      %2677 = vmatprep.subr.mxu0 0.0
      %2678 = vmatpush1.msra.mxu0 0.0
      %2679 = vmatprep.subr.mxu0 0.0
      %2680 = vmatpush1.msra.mxu0 0.0
      %2681 = vmatprep.subr.mxu0 0.0
      %2682 = vmatpush1.msra.mxu0 0.0
      %2683 = vmatprep.subr.mxu0 0.0
      %2684 = vmatpush1.msra.mxu0 0.0
      %2685 = vmatprep.subr.mxu0 0.0
      %2686 = vmatpush1.msra.mxu0 0.0
      %2687 = vmatprep.subr.mxu0 0.0
      %2688 = vmatpush1.msra.mxu0 0.0
      %2689 = vmatprep.subr.mxu0 0.0
      %2690 = vmatpush1.msra.mxu0 0.0
      %2691 = vmatprep.subr.mxu0 0.0
      %2692 = vmatpush1.msra.mxu0 0.0
      %2693 = vmatprep.subr.mxu0 0.0
      %2694 = vmatpush1.msra.mxu0 0.0
      %2695 = vmatprep.subr.mxu0 0.0
      %2696 = vmatpush1.msra.mxu0 0.0
      %2697 = vmatprep.subr.mxu0 0.0
      %2698 = vmatpush1.msra.mxu0 0.0
      %2699 = vmatprep.subr.mxu0 0.0
      %2700 = vmatpush1.msra.mxu0 0.0
      %2701 = vmatprep.subr.mxu0 0.0
      %2702 = vmatpush1.msra.mxu0 0.0
      %2703 = vmatprep.subr.mxu0 0.0
      %2704 = vmatpush1.msra.mxu0 0.0
      %2705 = vmatprep.mubr.f32.mxu0 0.0
      %2706 = vmatmul.mubr.f32.gmra.mrb[0].mxu0 %v2636
      %v2707 = vpop.f32.mrb[0].mxu0
      %v2708 = vadd.f32 0.0, %v2707
      %v2709 = vpop.f32.mrb[0].mxu0
      %2710 = vmatprep.mubr.f32.mxu0 0.0
      %2711 = vmatmul.mubr.f32.gmra.mrb[0].mxu0 %v2639
      %v2712 = vpop.f32.mrb[0].mxu0
      %v2713 = vadd.f32 0.0, %v2712
      %v2714 = vpop.f32.mrb[0].mxu0
      %2715 = vdwg.mxu0
      %2716 = vrot.lane.b32.xlu0 %v492, 124
      %v2717 = vpop.permute.xlu0 %2716
      %2718 = vrot.lane.b32.xlu0 %v497, 124
      %v2719 = vpop.permute.xlu0 %2718
      %v2723 = vsel %vm248, %v2004, 0
      %v2726 = vsel %vm248, %v2005, 0
      %2728 = vmatprep.subr.mxu0 0.0
      %2729 = vmatpush1.msra.mxu0 %v2717
      %2730 = vmatprep.subr.mxu0 0.0
      %2731 = vmatpush1.msra.mxu0 %v2719
      %2732 = vmatprep.subr.mxu0 0.0
      %2733 = vmatpush1.msra.mxu0 0.0
      %2734 = vmatprep.subr.mxu0 0.0
      %2735 = vmatpush1.msra.mxu0 0.0
      %2736 = vmatprep.subr.mxu0 0.0
      %2737 = vmatpush1.msra.mxu0 0.0
      %2738 = vmatprep.subr.mxu0 0.0
      %2739 = vmatpush1.msra.mxu0 0.0
      %2740 = vmatprep.subr.mxu0 0.0
      %2741 = vmatpush1.msra.mxu0 0.0
      %2742 = vmatprep.subr.mxu0 0.0
      %2743 = vmatpush1.msra.mxu0 0.0
      %2744 = vmatprep.subr.mxu0 0.0
      %2745 = vmatpush1.msra.mxu0 0.0
      %2746 = vmatprep.subr.mxu0 0.0
      %2747 = vmatpush1.msra.mxu0 0.0
      %2748 = vmatprep.subr.mxu0 0.0
      %2749 = vmatpush1.msra.mxu0 0.0
      %2750 = vmatprep.subr.mxu0 0.0
      %2751 = vmatpush1.msra.mxu0 0.0
      %2752 = vmatprep.subr.mxu0 0.0
      %2753 = vmatpush1.msra.mxu0 0.0
      %2754 = vmatprep.subr.mxu0 0.0
      %2755 = vmatpush1.msra.mxu0 0.0
      %2756 = vmatprep.subr.mxu0 0.0
      %2757 = vmatpush1.msra.mxu0 0.0
      %2758 = vmatprep.subr.mxu0 0.0
      %2759 = vmatpush1.msra.mxu0 0.0
      %2760 = vmatprep.subr.mxu0 0.0
      %2761 = vmatpush1.msra.mxu0 0.0
      %2762 = vmatprep.subr.mxu0 0.0
      %2763 = vmatpush1.msra.mxu0 0.0
      %2764 = vmatprep.subr.mxu0 0.0
      %2765 = vmatpush1.msra.mxu0 0.0
      %2766 = vmatprep.subr.mxu0 0.0
      %2767 = vmatpush1.msra.mxu0 0.0
      %2768 = vmatprep.subr.mxu0 0.0
      %2769 = vmatpush1.msra.mxu0 0.0
      %2770 = vmatprep.subr.mxu0 0.0
      %2771 = vmatpush1.msra.mxu0 0.0
      %2772 = vmatprep.subr.mxu0 0.0
      %2773 = vmatpush1.msra.mxu0 0.0
      %2774 = vmatprep.subr.mxu0 0.0
      %2775 = vmatpush1.msra.mxu0 0.0
      %2776 = vmatprep.subr.mxu0 0.0
      %2777 = vmatpush1.msra.mxu0 0.0
      %2778 = vmatprep.subr.mxu0 0.0
      %2779 = vmatpush1.msra.mxu0 0.0
      %2780 = vmatprep.subr.mxu0 0.0
      %2781 = vmatpush1.msra.mxu0 0.0
      %2782 = vmatprep.subr.mxu0 0.0
      %2783 = vmatpush1.msra.mxu0 0.0
      %2784 = vmatprep.subr.mxu0 0.0
      %2785 = vmatpush1.msra.mxu0 0.0
      %2786 = vmatprep.subr.mxu0 0.0
      %2787 = vmatpush1.msra.mxu0 0.0
      %2788 = vmatprep.subr.mxu0 0.0
      %2789 = vmatpush1.msra.mxu0 0.0
      %2790 = vmatprep.subr.mxu0 0.0
      %2791 = vmatpush1.msra.mxu0 0.0
      %2792 = vmatprep.mubr.f32.mxu0 0.0
      %2793 = vmatmul.mubr.f32.gmra.mrb[0].mxu0 %v2723
      %v2794 = vpop.f32.mrb[0].mxu0
      %v2795 = vadd.f32 0.0, %v2794
      %v2796 = vpop.f32.mrb[0].mxu0
      %2797 = vmatprep.mubr.f32.mxu0 0.0
      %2798 = vmatmul.mubr.f32.gmra.mrb[0].mxu0 %v2726
      %v2799 = vpop.f32.mrb[0].mxu0
      %v2800 = vadd.f32 0.0, %v2799
      %v2801 = vpop.f32.mrb[0].mxu0
      %2802 = vdwg.mxu0
      %2803 = vrot.lane.b32.xlu0 %v502, 124
      %v2804 = vpop.permute.xlu0 %2803
      %2805 = vrot.lane.b32.xlu0 %v507, 124
      %v2806 = vpop.permute.xlu0 %2805
      %v2810 = vsel %vm248, %v2006, 0
      %v2813 = vsel %vm248, %v2007, 0
      %2815 = vmatprep.subr.mxu0 0.0
      %2816 = vmatpush1.msra.mxu0 %v2804
      %2817 = vmatprep.subr.mxu0 0.0
      %2818 = vmatpush1.msra.mxu0 %v2806
      %2819 = vmatprep.subr.mxu0 0.0
      %2820 = vmatpush1.msra.mxu0 0.0
      %2821 = vmatprep.subr.mxu0 0.0
      %2822 = vmatpush1.msra.mxu0 0.0
      %2823 = vmatprep.subr.mxu0 0.0
      %2824 = vmatpush1.msra.mxu0 0.0
      %2825 = vmatprep.subr.mxu0 0.0
      %2826 = vmatpush1.msra.mxu0 0.0
      %2827 = vmatprep.subr.mxu0 0.0
      %2828 = vmatpush1.msra.mxu0 0.0
      %2829 = vmatprep.subr.mxu0 0.0
      %2830 = vmatpush1.msra.mxu0 0.0
      %2831 = vmatprep.subr.mxu0 0.0
      %2832 = vmatpush1.msra.mxu0 0.0
      %2833 = vmatprep.subr.mxu0 0.0
      %2834 = vmatpush1.msra.mxu0 0.0
      %2835 = vmatprep.subr.mxu0 0.0
      %2836 = vmatpush1.msra.mxu0 0.0
      %2837 = vmatprep.subr.mxu0 0.0
      %2838 = vmatpush1.msra.mxu0 0.0
      %2839 = vmatprep.subr.mxu0 0.0
      %2840 = vmatpush1.msra.mxu0 0.0
      %2841 = vmatprep.subr.mxu0 0.0
      %2842 = vmatpush1.msra.mxu0 0.0
      %2843 = vmatprep.subr.mxu0 0.0
      %2844 = vmatpush1.msra.mxu0 0.0
      %2845 = vmatprep.subr.mxu0 0.0
      %2846 = vmatpush1.msra.mxu0 0.0
      %2847 = vmatprep.subr.mxu0 0.0
      %2848 = vmatpush1.msra.mxu0 0.0
      %2849 = vmatprep.subr.mxu0 0.0
      %2850 = vmatpush1.msra.mxu0 0.0
      %2851 = vmatprep.subr.mxu0 0.0
      %2852 = vmatpush1.msra.mxu0 0.0
      %2853 = vmatprep.subr.mxu0 0.0
      %2854 = vmatpush1.msra.mxu0 0.0
      %2855 = vmatprep.subr.mxu0 0.0
      %2856 = vmatpush1.msra.mxu0 0.0
      %2857 = vmatprep.subr.mxu0 0.0
      %2858 = vmatpush1.msra.mxu0 0.0
      %2859 = vmatprep.subr.mxu0 0.0
      %2860 = vmatpush1.msra.mxu0 0.0
      %2861 = vmatprep.subr.mxu0 0.0
      %2862 = vmatpush1.msra.mxu0 0.0
      %2863 = vmatprep.subr.mxu0 0.0
      %2864 = vmatpush1.msra.mxu0 0.0
      %2865 = vmatprep.subr.mxu0 0.0
      %2866 = vmatpush1.msra.mxu0 0.0
      %2867 = vmatprep.subr.mxu0 0.0
      %2868 = vmatpush1.msra.mxu0 0.0
      %2869 = vmatprep.subr.mxu0 0.0
      %2870 = vmatpush1.msra.mxu0 0.0
      %2871 = vmatprep.subr.mxu0 0.0
      %2872 = vmatpush1.msra.mxu0 0.0
      %2873 = vmatprep.subr.mxu0 0.0
      %2874 = vmatpush1.msra.mxu0 0.0
      %2875 = vmatprep.subr.mxu0 0.0
      %2876 = vmatpush1.msra.mxu0 0.0
      %2877 = vmatprep.subr.mxu0 0.0
      %2878 = vmatpush1.msra.mxu0 0.0
      %2879 = vmatprep.mubr.f32.mxu0 0.0
      %2880 = vmatmul.mubr.f32.gmra.mrb[0].mxu0 %v2810
      %v2881 = vpop.f32.mrb[0].mxu0
      %v2882 = vadd.f32 0.0, %v2881
      %v2883 = vpop.f32.mrb[0].mxu0
      %2884 = vmatprep.mubr.f32.mxu0 0.0
      %2885 = vmatmul.mubr.f32.gmra.mrb[0].mxu0 %v2813
      %v2886 = vpop.f32.mrb[0].mxu0
      %v2887 = vadd.f32 0.0, %v2886
      %v2888 = vpop.f32.mrb[0].mxu0
      %2889 = vdwg.mxu0
      %2890 = vrot.lane.b32.xlu0 %v512, 124
      %v2891 = vpop.permute.xlu0 %2890
      %2892 = vrot.lane.b32.xlu0 %v517, 124
      %v2893 = vpop.permute.xlu0 %2892
      %v2897 = vsel %vm248, %v2008, 0
      %v2900 = vsel %vm248, %v2009, 0
      %2902 = vmatprep.subr.mxu0 0.0
      %2903 = vmatpush1.msra.mxu0 %v2891
      %2904 = vmatprep.subr.mxu0 0.0
      %2905 = vmatpush1.msra.mxu0 %v2893
      %2906 = vmatprep.subr.mxu0 0.0
      %2907 = vmatpush1.msra.mxu0 0.0
      %2908 = vmatprep.subr.mxu0 0.0
      %2909 = vmatpush1.msra.mxu0 0.0
      %2910 = vmatprep.subr.mxu0 0.0
      %2911 = vmatpush1.msra.mxu0 0.0
      %2912 = vmatprep.subr.mxu0 0.0
      %2913 = vmatpush1.msra.mxu0 0.0
      %2914 = vmatprep.subr.mxu0 0.0
      %2915 = vmatpush1.msra.mxu0 0.0
      %2916 = vmatprep.subr.mxu0 0.0
      %2917 = vmatpush1.msra.mxu0 0.0
      %2918 = vmatprep.subr.mxu0 0.0
      %2919 = vmatpush1.msra.mxu0 0.0
      %2920 = vmatprep.subr.mxu0 0.0
      %2921 = vmatpush1.msra.mxu0 0.0
      %2922 = vmatprep.subr.mxu0 0.0
      %2923 = vmatpush1.msra.mxu0 0.0
      %2924 = vmatprep.subr.mxu0 0.0
      %2925 = vmatpush1.msra.mxu0 0.0
      %2926 = vmatprep.subr.mxu0 0.0
      %2927 = vmatpush1.msra.mxu0 0.0
      %2928 = vmatprep.subr.mxu0 0.0
      %2929 = vmatpush1.msra.mxu0 0.0
      %2930 = vmatprep.subr.mxu0 0.0
      %2931 = vmatpush1.msra.mxu0 0.0
      %2932 = vmatprep.subr.mxu0 0.0
      %2933 = vmatpush1.msra.mxu0 0.0
      %2934 = vmatprep.subr.mxu0 0.0
      %2935 = vmatpush1.msra.mxu0 0.0
      %2936 = vmatprep.subr.mxu0 0.0
      %2937 = vmatpush1.msra.mxu0 0.0
      %2938 = vmatprep.subr.mxu0 0.0
      %2939 = vmatpush1.msra.mxu0 0.0
      %2940 = vmatprep.subr.mxu0 0.0
      %2941 = vmatpush1.msra.mxu0 0.0
      %2942 = vmatprep.subr.mxu0 0.0
      %2943 = vmatpush1.msra.mxu0 0.0
      %2944 = vmatprep.subr.mxu0 0.0
      %2945 = vmatpush1.msra.mxu0 0.0
      %2946 = vmatprep.subr.mxu0 0.0
      %2947 = vmatpush1.msra.mxu0 0.0
      %2948 = vmatprep.subr.mxu0 0.0
      %2949 = vmatpush1.msra.mxu0 0.0
      %2950 = vmatprep.subr.mxu0 0.0
      %2951 = vmatpush1.msra.mxu0 0.0
      %2952 = vmatprep.subr.mxu0 0.0
      %2953 = vmatpush1.msra.mxu0 0.0
      %2954 = vmatprep.subr.mxu0 0.0
      %2955 = vmatpush1.msra.mxu0 0.0
      %2956 = vmatprep.subr.mxu0 0.0
      %2957 = vmatpush1.msra.mxu0 0.0
      %2958 = vmatprep.subr.mxu0 0.0
      %2959 = vmatpush1.msra.mxu0 0.0
      %2960 = vmatprep.subr.mxu0 0.0
      %2961 = vmatpush1.msra.mxu0 0.0
      %2962 = vmatprep.subr.mxu0 0.0
      %2963 = vmatpush1.msra.mxu0 0.0
      %2964 = vmatprep.subr.mxu0 0.0
      %2965 = vmatpush1.msra.mxu0 0.0
      %2966 = vmatprep.mubr.f32.mxu0 0.0
      %2967 = vmatmul.mubr.f32.gmra.mrb[0].mxu0 %v2897
      %v2968 = vpop.f32.mrb[0].mxu0
      %v2969 = vadd.f32 0.0, %v2968
      %v2970 = vpop.f32.mrb[0].mxu0
      %2971 = vmatprep.mubr.f32.mxu0 0.0
      %2972 = vmatmul.mubr.f32.gmra.mrb[0].mxu0 %v2900
      %v2973 = vpop.f32.mrb[0].mxu0
      %v2974 = vadd.f32 0.0, %v2973
      %v2975 = vpop.f32.mrb[0].mxu0
      %2976 = vdwg.mxu0
      %2977 = vrot.lane.b32.xlu0 %v522, 124
      %v2978 = vpop.permute.xlu0 %2977
      %2979 = vrot.lane.b32.xlu0 %v527, 124
      %v2980 = vpop.permute.xlu0 %2979
      %v2984 = vsel %vm248, %v2010, 0
      %v2987 = vsel %vm248, %v2011, 0
      %2989 = vmatprep.subr.mxu0 0.0
      %2990 = vmatpush1.msra.mxu0 %v2978
      %2991 = vmatprep.subr.mxu0 0.0
      %2992 = vmatpush1.msra.mxu0 %v2980
      %2993 = vmatprep.subr.mxu0 0.0
      %2994 = vmatpush1.msra.mxu0 0.0
      %2995 = vmatprep.subr.mxu0 0.0
      %2996 = vmatpush1.msra.mxu0 0.0
      %2997 = vmatprep.subr.mxu0 0.0
      %2998 = vmatpush1.msra.mxu0 0.0
      %2999 = vmatprep.subr.mxu0 0.0
      %3000 = vmatpush1.msra.mxu0 0.0
      %3001 = vmatprep.subr.mxu0 0.0
      %3002 = vmatpush1.msra.mxu0 0.0
      %3003 = vmatprep.subr.mxu0 0.0
      %3004 = vmatpush1.msra.mxu0 0.0
      %3005 = vmatprep.subr.mxu0 0.0
      %3006 = vmatpush1.msra.mxu0 0.0
      %3007 = vmatprep.subr.mxu0 0.0
      %3008 = vmatpush1.msra.mxu0 0.0
      %3009 = vmatprep.subr.mxu0 0.0
      %3010 = vmatpush1.msra.mxu0 0.0
      %3011 = vmatprep.subr.mxu0 0.0
      %3012 = vmatpush1.msra.mxu0 0.0
      %3013 = vmatprep.subr.mxu0 0.0
      %3014 = vmatpush1.msra.mxu0 0.0
      %3015 = vmatprep.subr.mxu0 0.0
      %3016 = vmatpush1.msra.mxu0 0.0
      %3017 = vmatprep.subr.mxu0 0.0
      %3018 = vmatpush1.msra.mxu0 0.0
      %3019 = vmatprep.subr.mxu0 0.0
      %3020 = vmatpush1.msra.mxu0 0.0
      %3021 = vmatprep.subr.mxu0 0.0
      %3022 = vmatpush1.msra.mxu0 0.0
      %3023 = vmatprep.subr.mxu0 0.0
      %3024 = vmatpush1.msra.mxu0 0.0
      %3025 = vmatprep.subr.mxu0 0.0
      %3026 = vmatpush1.msra.mxu0 0.0
      %3027 = vmatprep.subr.mxu0 0.0
      %3028 = vmatpush1.msra.mxu0 0.0
      %3029 = vmatprep.subr.mxu0 0.0
      %3030 = vmatpush1.msra.mxu0 0.0
      %3031 = vmatprep.subr.mxu0 0.0
      %3032 = vmatpush1.msra.mxu0 0.0
      %3033 = vmatprep.subr.mxu0 0.0
      %3034 = vmatpush1.msra.mxu0 0.0
      %3035 = vmatprep.subr.mxu0 0.0
      %3036 = vmatpush1.msra.mxu0 0.0
      %3037 = vmatprep.subr.mxu0 0.0
      %3038 = vmatpush1.msra.mxu0 0.0
      %3039 = vmatprep.subr.mxu0 0.0
      %3040 = vmatpush1.msra.mxu0 0.0
      %3041 = vmatprep.subr.mxu0 0.0
      %3042 = vmatpush1.msra.mxu0 0.0
      %3043 = vmatprep.subr.mxu0 0.0
      %3044 = vmatpush1.msra.mxu0 0.0
      %3045 = vmatprep.subr.mxu0 0.0
      %3046 = vmatpush1.msra.mxu0 0.0
      %3047 = vmatprep.subr.mxu0 0.0
      %3048 = vmatpush1.msra.mxu0 0.0
      %3049 = vmatprep.subr.mxu0 0.0
      %3050 = vmatpush1.msra.mxu0 0.0
      %3051 = vmatprep.subr.mxu0 0.0
      %3052 = vmatpush1.msra.mxu0 0.0
      %3053 = vmatprep.mubr.f32.mxu0 0.0
      %3054 = vmatmul.mubr.f32.gmra.mrb[0].mxu0 %v2984
      %v3055 = vpop.f32.mrb[0].mxu0
      %v3056 = vadd.f32 0.0, %v3055
      %v3057 = vpop.f32.mrb[0].mxu0
      %3058 = vmatprep.mubr.f32.mxu0 0.0
      %3059 = vmatmul.mubr.f32.gmra.mrb[0].mxu0 %v2987
      %v3060 = vpop.f32.mrb[0].mxu0
      %v3061 = vadd.f32 0.0, %v3060
      %v3062 = vpop.f32.mrb[0].mxu0
      %3063 = vdwg.mxu0
      %3064 = vrot.lane.b32.xlu0 %v532, 124
      %v3065 = vpop.permute.xlu0 %3064
      %3066 = vrot.lane.b32.xlu0 %v537, 124
      %v3067 = vpop.permute.xlu0 %3066
      %v3071 = vsel %vm248, %v2012, 0
      %v3074 = vsel %vm248, %v2013, 0
      %3076 = vmatprep.subr.mxu0 0.0
      %3077 = vmatpush1.msra.mxu0 %v3065
      %3078 = vmatprep.subr.mxu0 0.0
      %3079 = vmatpush1.msra.mxu0 %v3067
      %3080 = vmatprep.subr.mxu0 0.0
      %3081 = vmatpush1.msra.mxu0 0.0
      %3082 = vmatprep.subr.mxu0 0.0
      %3083 = vmatpush1.msra.mxu0 0.0
      %3084 = vmatprep.subr.mxu0 0.0
      %3085 = vmatpush1.msra.mxu0 0.0
      %3086 = vmatprep.subr.mxu0 0.0
      %3087 = vmatpush1.msra.mxu0 0.0
      %3088 = vmatprep.subr.mxu0 0.0
      %3089 = vmatpush1.msra.mxu0 0.0
      %3090 = vmatprep.subr.mxu0 0.0
      %3091 = vmatpush1.msra.mxu0 0.0
      %3092 = vmatprep.subr.mxu0 0.0
      %3093 = vmatpush1.msra.mxu0 0.0
      %3094 = vmatprep.subr.mxu0 0.0
      %3095 = vmatpush1.msra.mxu0 0.0
      %3096 = vmatprep.subr.mxu0 0.0
      %3097 = vmatpush1.msra.mxu0 0.0
      %3098 = vmatprep.subr.mxu0 0.0
      %3099 = vmatpush1.msra.mxu0 0.0
      %3100 = vmatprep.subr.mxu0 0.0
      %3101 = vmatpush1.msra.mxu0 0.0
      %3102 = vmatprep.subr.mxu0 0.0
      %3103 = vmatpush1.msra.mxu0 0.0
      %3104 = vmatprep.subr.mxu0 0.0
      %3105 = vmatpush1.msra.mxu0 0.0
      %3106 = vmatprep.subr.mxu0 0.0
      %3107 = vmatpush1.msra.mxu0 0.0
      %3108 = vmatprep.subr.mxu0 0.0
      %3109 = vmatpush1.msra.mxu0 0.0
      %3110 = vmatprep.subr.mxu0 0.0
      %3111 = vmatpush1.msra.mxu0 0.0
      %3112 = vmatprep.subr.mxu0 0.0
      %3113 = vmatpush1.msra.mxu0 0.0
      %3114 = vmatprep.subr.mxu0 0.0
      %3115 = vmatpush1.msra.mxu0 0.0
      %3116 = vmatprep.subr.mxu0 0.0
      %3117 = vmatpush1.msra.mxu0 0.0
      %3118 = vmatprep.subr.mxu0 0.0
      %3119 = vmatpush1.msra.mxu0 0.0
      %3120 = vmatprep.subr.mxu0 0.0
      %3121 = vmatpush1.msra.mxu0 0.0
      %3122 = vmatprep.subr.mxu0 0.0
      %3123 = vmatpush1.msra.mxu0 0.0
      %3124 = vmatprep.subr.mxu0 0.0
      %3125 = vmatpush1.msra.mxu0 0.0
      %3126 = vmatprep.subr.mxu0 0.0
      %3127 = vmatpush1.msra.mxu0 0.0
      %3128 = vmatprep.subr.mxu0 0.0
      %3129 = vmatpush1.msra.mxu0 0.0
      %3130 = vmatprep.subr.mxu0 0.0
      %3131 = vmatpush1.msra.mxu0 0.0
      %3132 = vmatprep.subr.mxu0 0.0
      %3133 = vmatpush1.msra.mxu0 0.0
      %3134 = vmatprep.subr.mxu0 0.0
      %3135 = vmatpush1.msra.mxu0 0.0
      %3136 = vmatprep.subr.mxu0 0.0
      %3137 = vmatpush1.msra.mxu0 0.0
      %3138 = vmatprep.subr.mxu0 0.0
      %3139 = vmatpush1.msra.mxu0 0.0
      %3140 = vmatprep.mubr.f32.mxu0 0.0
      %3141 = vmatmul.mubr.f32.gmra.mrb[0].mxu0 %v3071
      %v3142 = vpop.f32.mrb[0].mxu0
      %v3143 = vadd.f32 0.0, %v3142
      %v3144 = vpop.f32.mrb[0].mxu0
      %3145 = vmatprep.mubr.f32.mxu0 0.0
      %3146 = vmatmul.mubr.f32.gmra.mrb[0].mxu0 %v3074
      %v3147 = vpop.f32.mrb[0].mxu0
      %v3148 = vadd.f32 0.0, %v3147
      %v3149 = vpop.f32.mrb[0].mxu0
      %3150 = vdwg.mxu0
      %3151 = vrot.lane.b32.xlu0 %v542, 124
      %v3152 = vpop.permute.xlu0 %3151
      %3153 = vrot.lane.b32.xlu0 %v547, 124
      %v3154 = vpop.permute.xlu0 %3153
      %v3158 = vsel %vm248, %v2014, 0
      %v3161 = vsel %vm248, %v2015, 0
      %3163 = vmatprep.subr.mxu0 0.0
      %3164 = vmatpush1.msra.mxu0 %v3152
      %3165 = vmatprep.subr.mxu0 0.0
      %3166 = vmatpush1.msra.mxu0 %v3154
      %3167 = vmatprep.subr.mxu0 0.0
      %3168 = vmatpush1.msra.mxu0 0.0
      %3169 = vmatprep.subr.mxu0 0.0
      %3170 = vmatpush1.msra.mxu0 0.0
      %3171 = vmatprep.subr.mxu0 0.0
      %3172 = vmatpush1.msra.mxu0 0.0
      %3173 = vmatprep.subr.mxu0 0.0
      %3174 = vmatpush1.msra.mxu0 0.0
      %3175 = vmatprep.subr.mxu0 0.0
      %3176 = vmatpush1.msra.mxu0 0.0
      %3177 = vmatprep.subr.mxu0 0.0
      %3178 = vmatpush1.msra.mxu0 0.0
      %3179 = vmatprep.subr.mxu0 0.0
      %3180 = vmatpush1.msra.mxu0 0.0
      %3181 = vmatprep.subr.mxu0 0.0
      %3182 = vmatpush1.msra.mxu0 0.0
      %3183 = vmatprep.subr.mxu0 0.0
      %3184 = vmatpush1.msra.mxu0 0.0
      %3185 = vmatprep.subr.mxu0 0.0
      %3186 = vmatpush1.msra.mxu0 0.0
      %3187 = vmatprep.subr.mxu0 0.0
      %3188 = vmatpush1.msra.mxu0 0.0
      %3189 = vmatprep.subr.mxu0 0.0
      %3190 = vmatpush1.msra.mxu0 0.0
      %3191 = vmatprep.subr.mxu0 0.0
      %3192 = vmatpush1.msra.mxu0 0.0
      %3193 = vmatprep.subr.mxu0 0.0
      %3194 = vmatpush1.msra.mxu0 0.0
      %3195 = vmatprep.subr.mxu0 0.0
      %3196 = vmatpush1.msra.mxu0 0.0
      %3197 = vmatprep.subr.mxu0 0.0
      %3198 = vmatpush1.msra.mxu0 0.0
      %3199 = vmatprep.subr.mxu0 0.0
      %3200 = vmatpush1.msra.mxu0 0.0
      %3201 = vmatprep.subr.mxu0 0.0
      %3202 = vmatpush1.msra.mxu0 0.0
      %3203 = vmatprep.subr.mxu0 0.0
      %3204 = vmatpush1.msra.mxu0 0.0
      %3205 = vmatprep.subr.mxu0 0.0
      %3206 = vmatpush1.msra.mxu0 0.0
      %3207 = vmatprep.subr.mxu0 0.0
      %3208 = vmatpush1.msra.mxu0 0.0
      %3209 = vmatprep.subr.mxu0 0.0
      %3210 = vmatpush1.msra.mxu0 0.0
      %3211 = vmatprep.subr.mxu0 0.0
      %3212 = vmatpush1.msra.mxu0 0.0
      %3213 = vmatprep.subr.mxu0 0.0
      %3214 = vmatpush1.msra.mxu0 0.0
      %3215 = vmatprep.subr.mxu0 0.0
      %3216 = vmatpush1.msra.mxu0 0.0
      %3217 = vmatprep.subr.mxu0 0.0
      %3218 = vmatpush1.msra.mxu0 0.0
      %3219 = vmatprep.subr.mxu0 0.0
      %3220 = vmatpush1.msra.mxu0 0.0
      %3221 = vmatprep.subr.mxu0 0.0
      %3222 = vmatpush1.msra.mxu0 0.0
      %3223 = vmatprep.subr.mxu0 0.0
      %3224 = vmatpush1.msra.mxu0 0.0
      %3225 = vmatprep.subr.mxu0 0.0
      %3226 = vmatpush1.msra.mxu0 0.0
      %3227 = vmatprep.mubr.f32.mxu0 0.0
      %3228 = vmatmul.mubr.f32.gmra.mrb[0].mxu0 %v3158
      %v3229 = vpop.f32.mrb[0].mxu0
      %v3230 = vadd.f32 0.0, %v3229
      %v3231 = vpop.f32.mrb[0].mxu0
      %3232 = vmatprep.mubr.f32.mxu0 0.0
      %3233 = vmatmul.mubr.f32.gmra.mrb[0].mxu0 %v3161
      %v3234 = vpop.f32.mrb[0].mxu0
      %v3235 = vadd.f32 0.0, %v3234
      %v3236 = vpop.f32.mrb[0].mxu0
      %3237 = vdwg.mxu0
      %3238 = vrot.lane.b32.xlu0 %v552, 124
      %v3239 = vpop.permute.xlu0 %3238
      %3240 = vrot.lane.b32.xlu0 %v557, 124
      %v3241 = vpop.permute.xlu0 %3240
      %v3245 = vsel %vm248, %v2016, 0
      %v3248 = vsel %vm248, %v2017, 0
      %3250 = vmatprep.subr.mxu0 0.0
      %3251 = vmatpush1.msra.mxu0 %v3239
      %3252 = vmatprep.subr.mxu0 0.0
      %3253 = vmatpush1.msra.mxu0 %v3241
      %3254 = vmatprep.subr.mxu0 0.0
      %3255 = vmatpush1.msra.mxu0 0.0
      %3256 = vmatprep.subr.mxu0 0.0
      %3257 = vmatpush1.msra.mxu0 0.0
      %3258 = vmatprep.subr.mxu0 0.0
      %3259 = vmatpush1.msra.mxu0 0.0
      %3260 = vmatprep.subr.mxu0 0.0
      %3261 = vmatpush1.msra.mxu0 0.0
      %3262 = vmatprep.subr.mxu0 0.0
      %3263 = vmatpush1.msra.mxu0 0.0
      %3264 = vmatprep.subr.mxu0 0.0
      %3265 = vmatpush1.msra.mxu0 0.0
      %3266 = vmatprep.subr.mxu0 0.0
      %3267 = vmatpush1.msra.mxu0 0.0
      %3268 = vmatprep.subr.mxu0 0.0
      %3269 = vmatpush1.msra.mxu0 0.0
      %3270 = vmatprep.subr.mxu0 0.0
      %3271 = vmatpush1.msra.mxu0 0.0
      %3272 = vmatprep.subr.mxu0 0.0
      %3273 = vmatpush1.msra.mxu0 0.0
      %3274 = vmatprep.subr.mxu0 0.0
      %3275 = vmatpush1.msra.mxu0 0.0
      %3276 = vmatprep.subr.mxu0 0.0
      %3277 = vmatpush1.msra.mxu0 0.0
      %3278 = vmatprep.subr.mxu0 0.0
      %3279 = vmatpush1.msra.mxu0 0.0
      %3280 = vmatprep.subr.mxu0 0.0
      %3281 = vmatpush1.msra.mxu0 0.0
      %3282 = vmatprep.subr.mxu0 0.0
      %3283 = vmatpush1.msra.mxu0 0.0
      %3284 = vmatprep.subr.mxu0 0.0
      %3285 = vmatpush1.msra.mxu0 0.0
      %3286 = vmatprep.subr.mxu0 0.0
      %3287 = vmatpush1.msra.mxu0 0.0
      %3288 = vmatprep.subr.mxu0 0.0
      %3289 = vmatpush1.msra.mxu0 0.0
      %3290 = vmatprep.subr.mxu0 0.0
      %3291 = vmatpush1.msra.mxu0 0.0
      %3292 = vmatprep.subr.mxu0 0.0
      %3293 = vmatpush1.msra.mxu0 0.0
      %3294 = vmatprep.subr.mxu0 0.0
      %3295 = vmatpush1.msra.mxu0 0.0
      %3296 = vmatprep.subr.mxu0 0.0
      %3297 = vmatpush1.msra.mxu0 0.0
      %3298 = vmatprep.subr.mxu0 0.0
      %3299 = vmatpush1.msra.mxu0 0.0
      %3300 = vmatprep.subr.mxu0 0.0
      %3301 = vmatpush1.msra.mxu0 0.0
      %3302 = vmatprep.subr.mxu0 0.0
      %3303 = vmatpush1.msra.mxu0 0.0
      %3304 = vmatprep.subr.mxu0 0.0
      %3305 = vmatpush1.msra.mxu0 0.0
      %3306 = vmatprep.subr.mxu0 0.0
      %3307 = vmatpush1.msra.mxu0 0.0
      %3308 = vmatprep.subr.mxu0 0.0
      %3309 = vmatpush1.msra.mxu0 0.0
      %3310 = vmatprep.subr.mxu0 0.0
      %3311 = vmatpush1.msra.mxu0 0.0
      %3312 = vmatprep.subr.mxu0 0.0
      %3313 = vmatpush1.msra.mxu0 0.0
      %3314 = vmatprep.mubr.f32.mxu0 0.0
      %3315 = vmatmul.mubr.f32.gmra.mrb[0].mxu0 %v3245
      %v3316 = vpop.f32.mrb[0].mxu0
      %v3317 = vadd.f32 0.0, %v3316
      %v3318 = vpop.f32.mrb[0].mxu0
      %3319 = vmatprep.mubr.f32.mxu0 0.0
      %3320 = vmatmul.mubr.f32.gmra.mrb[0].mxu0 %v3248
      %v3321 = vpop.f32.mrb[0].mxu0
      %v3322 = vadd.f32 0.0, %v3321
      %v3323 = vpop.f32.mrb[0].mxu0
      %3324 = vdwg.mxu0
      %3325 = vrot.lane.b32.xlu0 %v562, 124
      %v3326 = vpop.permute.xlu0 %3325
      %3327 = vrot.lane.b32.xlu0 %v567, 124
      %v3328 = vpop.permute.xlu0 %3327
      %v3332 = vsel %vm248, %v2018, 0
      %v3335 = vsel %vm248, %v2019, 0
      %3337 = vmatprep.subr.mxu0 0.0
      %3338 = vmatpush1.msra.mxu0 %v3326
      %3339 = vmatprep.subr.mxu0 0.0
      %3340 = vmatpush1.msra.mxu0 %v3328
      %3341 = vmatprep.subr.mxu0 0.0
      %3342 = vmatpush1.msra.mxu0 0.0
      %3343 = vmatprep.subr.mxu0 0.0
      %3344 = vmatpush1.msra.mxu0 0.0
      %3345 = vmatprep.subr.mxu0 0.0
      %3346 = vmatpush1.msra.mxu0 0.0
      %3347 = vmatprep.subr.mxu0 0.0
      %3348 = vmatpush1.msra.mxu0 0.0
      %3349 = vmatprep.subr.mxu0 0.0
      %3350 = vmatpush1.msra.mxu0 0.0
      %3351 = vmatprep.subr.mxu0 0.0
      %3352 = vmatpush1.msra.mxu0 0.0
      %3353 = vmatprep.subr.mxu0 0.0
      %3354 = vmatpush1.msra.mxu0 0.0
      %3355 = vmatprep.subr.mxu0 0.0
      %3356 = vmatpush1.msra.mxu0 0.0
      %3357 = vmatprep.subr.mxu0 0.0
      %3358 = vmatpush1.msra.mxu0 0.0
      %3359 = vmatprep.subr.mxu0 0.0
      %3360 = vmatpush1.msra.mxu0 0.0
      %3361 = vmatprep.subr.mxu0 0.0
      %3362 = vmatpush1.msra.mxu0 0.0
      %3363 = vmatprep.subr.mxu0 0.0
      %3364 = vmatpush1.msra.mxu0 0.0
      %3365 = vmatprep.subr.mxu0 0.0
      %3366 = vmatpush1.msra.mxu0 0.0
      %3367 = vmatprep.subr.mxu0 0.0
      %3368 = vmatpush1.msra.mxu0 0.0
      %3369 = vmatprep.subr.mxu0 0.0
      %3370 = vmatpush1.msra.mxu0 0.0
      %3371 = vmatprep.subr.mxu0 0.0
      %3372 = vmatpush1.msra.mxu0 0.0
      %3373 = vmatprep.subr.mxu0 0.0
      %3374 = vmatpush1.msra.mxu0 0.0
      %3375 = vmatprep.subr.mxu0 0.0
      %3376 = vmatpush1.msra.mxu0 0.0
      %3377 = vmatprep.subr.mxu0 0.0
      %3378 = vmatpush1.msra.mxu0 0.0
      %3379 = vmatprep.subr.mxu0 0.0
      %3380 = vmatpush1.msra.mxu0 0.0
      %3381 = vmatprep.subr.mxu0 0.0
      %3382 = vmatpush1.msra.mxu0 0.0
      %3383 = vmatprep.subr.mxu0 0.0
      %3384 = vmatpush1.msra.mxu0 0.0
      %3385 = vmatprep.subr.mxu0 0.0
      %3386 = vmatpush1.msra.mxu0 0.0
      %3387 = vmatprep.subr.mxu0 0.0
      %3388 = vmatpush1.msra.mxu0 0.0
      %3389 = vmatprep.subr.mxu0 0.0
      %3390 = vmatpush1.msra.mxu0 0.0
      %3391 = vmatprep.subr.mxu0 0.0
      %3392 = vmatpush1.msra.mxu0 0.0
      %3393 = vmatprep.subr.mxu0 0.0
      %3394 = vmatpush1.msra.mxu0 0.0
      %3395 = vmatprep.subr.mxu0 0.0
      %3396 = vmatpush1.msra.mxu0 0.0
      %3397 = vmatprep.subr.mxu0 0.0
      %3398 = vmatpush1.msra.mxu0 0.0
      %3399 = vmatprep.subr.mxu0 0.0
      %3400 = vmatpush1.msra.mxu0 0.0
      %3401 = vmatprep.mubr.f32.mxu0 0.0
      %3402 = vmatmul.mubr.f32.gmra.mrb[0].mxu0 %v3332
      %v3403 = vpop.f32.mrb[0].mxu0
      %v3404 = vadd.f32 0.0, %v3403
      %v3405 = vpop.f32.mrb[0].mxu0
      %3406 = vmatprep.mubr.f32.mxu0 0.0
      %3407 = vmatmul.mubr.f32.gmra.mrb[0].mxu0 %v3335
      %v3408 = vpop.f32.mrb[0].mxu0
      %v3409 = vadd.f32 0.0, %v3408
      %v3410 = vpop.f32.mrb[0].mxu0
      %3411 = vdwg.mxu0
      %s3412 = sld [smem:[#allocation2]]
      %v3413 = vstv %s3412
      %v3414 = vmul.f32 %v3413, %v2099
      %v3415 = vmul.f32 %v3413, %v2104
      %v3416 = vmul.f32 %v3413, %v2186
      %v3417 = vmul.f32 %v3413, %v2191
      %v3418 = vmul.f32 %v3413, %v2273
      %v3419 = vmul.f32 %v3413, %v2278
      %v3420 = vmul.f32 %v3413, %v2360
      %v3421 = vmul.f32 %v3413, %v2365
      %v3422 = vmul.f32 %v3413, %v2447
      %v3423 = vmul.f32 %v3413, %v2452
      %v3424 = vmul.f32 %v3413, %v2534
      %v3425 = vmul.f32 %v3413, %v2539
      %v3426 = vmul.f32 %v3413, %v2621
      %v3427 = vmul.f32 %v3413, %v2626
      %v3428 = vmul.f32 %v3413, %v2708
      %v3429 = vmul.f32 %v3413, %v2713
      %v3430 = vmul.f32 %v3413, %v2795
      %v3431 = vmul.f32 %v3413, %v2800
      %v3432 = vmul.f32 %v3413, %v2882
      %v3433 = vmul.f32 %v3413, %v2887
      %v3434 = vmul.f32 %v3413, %v2969
      %v3435 = vmul.f32 %v3413, %v2974
      %v3436 = vmul.f32 %v3413, %v3056
      %v3437 = vmul.f32 %v3413, %v3061
      %v3438 = vmul.f32 %v3413, %v3143
      %v3439 = vmul.f32 %v3413, %v3148
      %v3440 = vmul.f32 %v3413, %v3230
      %v3441 = vmul.f32 %v3413, %v3235
      %v3442 = vmul.f32 %v3413, %v3317
      %v3443 = vmul.f32 %v3413, %v3322
      %v3444 = vmul.f32 %v3413, %v3404
      %v3445 = vmul.f32 %v3413, %v3409
      %v3446 = vadd.f32 %v3414, %v207
      %v3447 = vadd.f32 %v3415, %v208
      %v3448 = vadd.f32 %v3416, %v209
      %v3449 = vadd.f32 %v3417, %v210
      %v3450 = vadd.f32 %v3418, %v211
      %v3451 = vadd.f32 %v3419, %v212
      %v3452 = vadd.f32 %v3420, %v213
      %v3453 = vadd.f32 %v3421, %v214
      %v3454 = vadd.f32 %v3422, %v215
      %v3455 = vadd.f32 %v3423, %v216
      %v3456 = vadd.f32 %v3424, %v217
      %v3457 = vadd.f32 %v3425, %v218
      %v3458 = vadd.f32 %v3426, %v219
      %v3459 = vadd.f32 %v3427, %v220
      %v3460 = vadd.f32 %v3428, %v221
      %v3461 = vadd.f32 %v3429, %v222
      %v3462 = vadd.f32 %v3430, %v223
      %v3463 = vadd.f32 %v3431, %v224
      %v3464 = vadd.f32 %v3432, %v225
      %v3465 = vadd.f32 %v3433, %v226
      %v3466 = vadd.f32 %v3434, %v227
      %v3467 = vadd.f32 %v3435, %v228
      %v3468 = vadd.f32 %v3436, %v229
      %v3469 = vadd.f32 %v3437, %v230
      %v3470 = vadd.f32 %v3438, %v231
      %v3471 = vadd.f32 %v3439, %v232
      %v3472 = vadd.f32 %v3440, %v233
      %v3473 = vadd.f32 %v3441, %v234
      %v3474 = vadd.f32 %v3442, %v235
      %v3475 = vadd.f32 %v3443, %v236
      %v3476 = vadd.f32 %v3444, %v237
      %v3477 = vadd.f32 %v3445, %v238
      %3478 = vst.msk [vmem:[%s205] sm:$0xff] %vm248, %v3446
      %3479 = vst.msk [vmem:[%s205 + $0x8] sm:$0xff] %vm248, %v3447
      %3480 = vst.msk [vmem:[%s205 + $0x10] sm:$0xff] %vm248, %v3448
      %3481 = vst.msk [vmem:[%s205 + $0x18] sm:$0xff] %vm248, %v3449
      %3482 = vst.msk [vmem:[%s205 + $0x20] sm:$0xff] %vm248, %v3450
      %3483 = vst.msk [vmem:[%s205 + $0x28] sm:$0xff] %vm248, %v3451
      %3484 = vst.msk [vmem:[%s205 + $0x30] sm:$0xff] %vm248, %v3452
      %3485 = vst.msk [vmem:[%s205 + $0x38] sm:$0xff] %vm248, %v3453
      %3486 = vst.msk [vmem:[%s205 + $0x40] sm:$0xff] %vm248, %v3454
      %3487 = vst.msk [vmem:[%s205 + $0x48] sm:$0xff] %vm248, %v3455
      %3488 = vst.msk [vmem:[%s205 + $0x50] sm:$0xff] %vm248, %v3456
      %3489 = vst.msk [vmem:[%s205 + $0x58] sm:$0xff] %vm248, %v3457
      %3490 = vst.msk [vmem:[%s205 + $0x60] sm:$0xff] %vm248, %v3458
      %3491 = vst.msk [vmem:[%s205 + $0x68] sm:$0xff] %vm248, %v3459
      %3492 = vst.msk [vmem:[%s205 + $0x70] sm:$0xff] %vm248, %v3460
      %3493 = vst.msk [vmem:[%s205 + $0x78] sm:$0xff] %vm248, %v3461
      %3494 = vst.msk [vmem:[%s205 + $0x80] sm:$0xff] %vm248, %v3462
      %3495 = vst.msk [vmem:[%s205 + $0x88] sm:$0xff] %vm248, %v3463
      %3496 = vst.msk [vmem:[%s205 + $0x90] sm:$0xff] %vm248, %v3464
      %3497 = vst.msk [vmem:[%s205 + $0x98] sm:$0xff] %vm248, %v3465
      %3498 = vst.msk [vmem:[%s205 + $0xa0] sm:$0xff] %vm248, %v3466
      %3499 = vst.msk [vmem:[%s205 + $0xa8] sm:$0xff] %vm248, %v3467
      %3500 = vst.msk [vmem:[%s205 + $0xb0] sm:$0xff] %vm248, %v3468
      %3501 = vst.msk [vmem:[%s205 + $0xb8] sm:$0xff] %vm248, %v3469
      %3502 = vst.msk [vmem:[%s205 + $0xc0] sm:$0xff] %vm248, %v3470
      %3503 = vst.msk [vmem:[%s205 + $0xc8] sm:$0xff] %vm248, %v3471
      %3504 = vst.msk [vmem:[%s205 + $0xd0] sm:$0xff] %vm248, %v3472
      %3505 = vst.msk [vmem:[%s205 + $0xd8] sm:$0xff] %vm248, %v3473
      %3506 = vst.msk [vmem:[%s205 + $0xe0] sm:$0xff] %vm248, %v3474
      %3507 = vst.msk [vmem:[%s205 + $0xe8] sm:$0xff] %vm248, %v3475
      %3508 = vst.msk [vmem:[%s205 + $0xf0] sm:$0xff] %vm248, %v3476
      %3509 = vst.msk [vmem:[%s205 + $0xf8] sm:$0xff] %vm248, %v3477
      %s3510 = smul.u32 16, %s16
      %p3511 = scmp.lt.s32.totalorder %s3510, 31
      %s3512 = scalar_select %p3511, %s3510, 31
      %s3513 = smul.addr %s3512, 2
      %s3514 = smul.addr %s3513, 8
      %s3515 = scalar_lea.vmem %s4, %s3514
      // Predicated region
      $region37: #{tpu_custom_call.1} parent=35 // pred_check
        %p3516 = pneg %p123
      $region38: #{tpu_custom_call.1} parent=35 // pred_check_branch
        %3518 = sbr.rel (%p3516) target = $region40
      $region39: #{tpu_custom_call.1} parent=35 // pred_region
        %s3519 = smul.u32 16, %s16
      $region40: #{tpu_custom_call.1} parent=35 // pred_fallthru
        _
    $region36: #{tpu_custom_call.1} parent=5 // pred_fallthru
      _
    %p3520 = scmp.le.s32.totalorder 2, %s11
    // Predicated region
    $region41: #{tpu_custom_call.1} parent=5 // pred_check
      %p3521 = pneg %p3520
    $region42: #{tpu_custom_call.1} parent=5 // pred_check_branch
      %3523 = sbr.rel (%p3521) target = $region44
    $region43: #{tpu_custom_call.1} parent=5 // pred_region
      %s3524 = ssub.s32 %s11, 2
      // Predicated region
      $region45: #{tpu_custom_call.1} parent=43 // pred_check
        %p3525 = pneg %p129
      $region46: #{tpu_custom_call.1} parent=43 // pred_check_branch
        %3527 = sbr.rel (%p3525) target = $region48
      $region47: #{tpu_custom_call.1} parent=43 // pred_region
        %s3528 = smul.u32 16, %s17
        %p3529 = scmp.lt.s32.totalorder %s3528, 31
        %s3530 = scalar_select %p3529, %s3528, 31
        %s3531 = smul.addr %s3530, 2
        %s3532 = smul.addr %s3531, 8
        %s3533 = scalar_lea.vmem %s4, %s3532
      $region48: #{tpu_custom_call.1} parent=43 // pred_fallthru
        _
    $region44: #{tpu_custom_call.1} parent=5 // pred_fallthru
      _
  $region6: #{tpu_custom_call.1} parent=0 // loop_footer
    %s15 = sadd.s32 1, %s11
  $region7: #{tpu_custom_call.1} parent=0 // loop_footer_branch
    %10 = sbr.rel target = $region3
  $region8: #{tpu_custom_call.1} parent=0 // loop_exit
    _

</llo_original>
